<compile_context>
chip_gen: v7x
topology: tpu7x:2x2x1
jax: 0.10.0
libtpu: 0.0.40
codegen_flags: <defaults>
</compile_context>

<pallas_src>
import jax
import jax.numpy as jnp
from jax.experimental import pallas as pl
from jax.experimental.pallas import tpu as pltpu


def _round_up(x, m):
    return (x + m - 1) // m * m


def _pick_tile(n, candidates):
    for c in candidates:
        if n % c == 0:
            return c
    return n  # fallback: single full-extent tile (still correct for small N)


def _self_attn_kernel(xq_ref, xk_ref, wq_ref, bq_ref, wk_ref, bk_ref,
                      wv_ref, bv_ref, gamma_ref, out_ref,
                      q_sc, m_sc, l_sc, acc_sc):
    """One (batch, query-tile, key-tile) grid step of flash self-attention."""
    ki = pl.program_id(2)

    # --- init per (batch, query tile): project Q once, reset online-softmax state
    @pl.when(ki == 0)
    def _init():
        xq = xq_ref[0].astype(jnp.bfloat16)                              # (tq, Cp)
        q = jnp.dot(xq, wq_ref[...], preferred_element_type=jnp.float32)
        q_sc[...] = q + bq_ref[...]                                      # (tq, Cqp) f32
        m_sc[...] = jnp.full(m_sc.shape, -jnp.inf, jnp.float32)
        l_sc[...] = jnp.zeros(l_sc.shape, jnp.float32)
        acc_sc[...] = jnp.zeros(acc_sc.shape, jnp.float32)

    # --- project K, V for this key tile (1x1 conv == channel matmul, bf16 on MXU)
    xk = xk_ref[0].astype(jnp.bfloat16)                                  # (tk, Cp)
    k = jnp.dot(xk, wk_ref[...], preferred_element_type=jnp.float32) + bk_ref[...]
    v = jnp.dot(xk, wv_ref[...], preferred_element_type=jnp.float32) + bv_ref[...]

    # energy[n, m] = q[n, :] . k[m, :]  — contract shared channel axis, no transpose
    s = jax.lax.dot_general(
        q_sc[...].astype(jnp.bfloat16), k.astype(jnp.bfloat16),
        dimension_numbers=(((1,), (1,)), ((), ())),
        preferred_element_type=jnp.float32)                              # (tq, tk)

    # --- online softmax update (all f32 elementwise)
    m_prev = m_sc[...]
    m_new = jnp.maximum(m_prev, jnp.max(s, axis=-1, keepdims=True))      # (tq, 1)
    alpha = jnp.exp(m_prev - m_new)
    p = jnp.exp(s - m_new)                                               # (tq, tk)
    l_sc[...] = alpha * l_sc[...] + jnp.sum(p, axis=-1, keepdims=True)
    acc_sc[...] = alpha * acc_sc[...] + jnp.dot(
        p.astype(jnp.bfloat16), v.astype(jnp.bfloat16),
        preferred_element_type=jnp.float32)                              # (tq, Cp)
    m_sc[...] = m_new

    # --- epilogue: normalize once, gamma * out + residual, single lane-dense store
    @pl.when(ki == pl.num_programs(2) - 1)
    def _finalize():
        o = acc_sc[...] * pl.reciprocal(l_sc[...], approx=True)          # (tq, Cp)
        gamma = gamma_ref[0]                                             # SMEM scalar
        out_ref[0] = (gamma * o + xq_ref[0]).astype(out_ref.dtype)


def self_attn_pallas(x_nchw, params):
    """x_nchw: (B, C, W, H) float32. Returns (B, C, W, H) float32."""
    B, C, W, H = x_nchw.shape
    N = W * H
    Cq = params["wq"].shape[1]

    Cp = _round_up(C, 128)       # lane-dense value/channel dim
    Cqp = _round_up(Cq, 128)     # lane-dense query/key projection dim

    tq = _pick_tile(N, (256, 128))        # query tile (bounds q/acc scratch)
    tk = _pick_tile(N, (512, 256, 128))   # key tile (bigger to amortize per-step cost)

    # NCHW -> (B, N, C) (flatten matches torch .view(B, C, W*H)); zero-pad channels.
    x_flat = jnp.transpose(x_nchw.reshape(B, C, N), (0, 2, 1)).astype(jnp.float32)
    x_pad = jnp.pad(x_flat, ((0, 0), (0, 0), (0, Cp - C)))

    # Weights stored (C_in, C_out) so the kernel does x @ w; zero-pad, bf16 for MXU.
    wq = jnp.pad(params["wq"], ((0, Cp - C), (0, Cqp - Cq))).astype(jnp.bfloat16)
    wk = jnp.pad(params["wk"], ((0, Cp - C), (0, Cqp - Cq))).astype(jnp.bfloat16)
    wv = jnp.pad(params["wv"], ((0, Cp - C), (0, Cp - C))).astype(jnp.bfloat16)
    bq = jnp.pad(params["bq"], (0, Cqp - Cq)).reshape(1, Cqp).astype(jnp.float32)
    bk = jnp.pad(params["bk"], (0, Cqp - Cq)).reshape(1, Cqp).astype(jnp.float32)
    bv = jnp.pad(params["bv"], (0, Cp - C)).reshape(1, Cp).astype(jnp.float32)
    gamma = params["gamma"].reshape(1).astype(jnp.float32)

    const = lambda shape: pl.BlockSpec(shape, lambda b, qi, ki: (0,) * len(shape))

    out_flat = pl.pallas_call(
        _self_attn_kernel,
        out_shape=jax.ShapeDtypeStruct((B, N, Cp), jnp.float32),
        grid_spec=pltpu.PrefetchScalarGridSpec(
            num_scalar_prefetch=0,
            grid=(B, N // tq, N // tk),
            in_specs=[
                pl.BlockSpec((1, tq, Cp), lambda b, qi, ki: (b, qi, 0)),   # x (query tile)
                pl.BlockSpec((1, tk, Cp), lambda b, qi, ki: (b, ki, 0)),   # x (key tile)
                const((Cp, Cqp)),                                          # wq
                const((1, Cqp)),                                           # bq
                const((Cp, Cqp)),                                          # wk
                const((1, Cqp)),                                           # bk
                const((Cp, Cp)),                                           # wv
                const((1, Cp)),                                            # bv
                pl.BlockSpec(memory_space=pltpu.MemorySpace.SMEM),         # gamma (scalar)
            ],
            out_specs=pl.BlockSpec((1, tq, Cp), lambda b, qi, ki: (b, qi, 0)),
            scratch_shapes=[
                pltpu.VMEM((tq, Cqp), jnp.float32),   # Q tile, reused across key tiles
                pltpu.VMEM((tq, 1), jnp.float32),     # running max
                pltpu.VMEM((tq, 1), jnp.float32),     # running sum
                pltpu.VMEM((tq, Cp), jnp.float32),    # output accumulator
            ],
        ),
        compiler_params=pltpu.CompilerParams(
            dimension_semantics=("parallel", "parallel", "arbitrary"),
            vmem_limit_bytes=32 * 1024 * 1024,   # tiles above sized well within this
        ),
    )(x_pad, x_pad, wq, bq, wk, bk, wv, bv, gamma)

    # (B, N, Cp) -> drop channel padding -> NCHW
    out = out_flat[:, :, :C]
    return jnp.transpose(out, (0, 2, 1)).reshape(B, C, W, H)


def self_attn_reference(x_nchw, params):
    """Pure-JAX f32 reference mirroring the PyTorch forward."""
    B, C, W, H = x_nchw.shape
    N = W * H
    xf = x_nchw.reshape(B, C, N)                                    # (B, C, N)
    wq, wk, wv = params["wq"], params["wk"], params["wv"]
    bq, bk, bv = params["bq"], params["bk"], params["bv"]
    q = jnp.einsum("bcn,co->bon", xf, wq) + bq[None, :, None]        # (B, Cq, N)
    k = jnp.einsum("bcn,co->bon", xf, wk) + bk[None, :, None]        # (B, Cq, N)
    v = jnp.einsum("bcn,co->bon", xf, wv) + bv[None, :, None]        # (B, C, N)
    proj_query = jnp.transpose(q, (0, 2, 1))                         # (B, N, Cq)
    energy = jnp.einsum("bnc,bcm->bnm", proj_query, k)               # (B, N, N)
    attn = jax.nn.softmax(energy, axis=-1)
    out = jnp.einsum("bcm,bnm->bcn", v, attn)                        # (B, C, N)
    out = out.reshape(B, C, W, H)
    return params["gamma"][0] * out + x_nchw


def init_params(key, in_dim):
    cq = in_dim // 8
    ks = jax.random.split(key, 6)
    scale = 0.1
    return {
        # weights stored as (C_in, C_out) so the kernel does x @ w
        "wq": scale * jax.random.normal(ks[0], (in_dim, cq), jnp.float32),
        "bq": scale * jax.random.normal(ks[1], (cq,), jnp.float32),
        "wk": scale * jax.random.normal(ks[2], (in_dim, cq), jnp.float32),
        "bk": scale * jax.random.normal(ks[3], (cq,), jnp.float32),
        "wv": scale * jax.random.normal(ks[4], (in_dim, in_dim), jnp.float32),
        "bv": scale * jax.random.normal(ks[5], (in_dim,), jnp.float32),
        "gamma": jnp.zeros((1,), jnp.float32),   # matches nn.Parameter(torch.zeros(1))
    }


if __name__ == "__main__":
    key = jax.random.PRNGKey(0)
    kx, kp = jax.random.split(key)

    # Tiled path: N = 32*32 = 1024 -> tq=256, tk=512 -> grid (2, 4, 2),
    # which exercises the online-softmax accumulation across key tiles.
    B, C, W, H = 2, 16, 32, 32
    x = jax.random.normal(kx, (B, C, W, H), jnp.float32)
    params = init_params(kp, C)

    # Module init has gamma = 0 -> output must equal the input exactly.
    out = jax.block_until_ready(self_attn_pallas(x, params))
    ref = self_attn_reference(x, params)
    assert jnp.allclose(out, ref, atol=1e-5, rtol=1e-5), "gamma=0 residual mismatch"

    # Nonzero gamma exercises the attention path (bf16 matmuls -> looser tolerance).
    params_nz = dict(params, gamma=jnp.ones((1,), jnp.float32))
    out_nz = jax.block_until_ready(self_attn_pallas(x, params_nz))
    ref_nz = self_attn_reference(x, params_nz)
    assert jnp.allclose(out_nz, ref_nz, atol=3e-2, rtol=3e-2), "gamma=1 mismatch"

    # Small-N fallback path (N=64 -> single full-extent tile per axis).
    x2 = jax.random.normal(kx, (2, 16, 8, 8), jnp.float32)
    out2 = jax.block_until_ready(self_attn_pallas(x2, params_nz))
    ref2 = self_attn_reference(x2, params_nz)
    assert jnp.allclose(out2, ref2, atol=3e-2, rtol=3e-2), "small-N fallback mismatch"

    print("KERNEL_OK")
</pallas_src>

<mosaic_0001>
module attributes {stable_mosaic.version = 11 : i64} {
  func.func @_self_attn_kernel(%arg0: i32, %arg1: i32, %arg2: i32, %arg3: memref<1x256x128xf32, #tpu.memory_space<vmem>>, %arg4: memref<1x512x128xf32, #tpu.memory_space<vmem>>, %arg5: memref<128x128xbf16, #tpu.memory_space<vmem>>, %arg6: memref<1x128xf32, #tpu.memory_space<vmem>>, %arg7: memref<128x128xbf16, #tpu.memory_space<vmem>>, %arg8: memref<1x128xf32, #tpu.memory_space<vmem>>, %arg9: memref<128x128xbf16, #tpu.memory_space<vmem>>, %arg10: memref<1x128xf32, #tpu.memory_space<vmem>>, %arg11: memref<1xf32, #tpu.memory_space<smem>>, %arg12: memref<1x256x128xf32, #tpu.memory_space<vmem>>, %arg13: memref<256x128xf32, #tpu.memory_space<vmem>>, %arg14: memref<256x1xf32, #tpu.memory_space<vmem>>, %arg15: memref<256x1xf32, #tpu.memory_space<vmem>>, %arg16: memref<256x128xf32, #tpu.memory_space<vmem>>) attributes {dimension_semantics = [#tpu.dimension_semantics<parallel>, #tpu.dimension_semantics<parallel>, #tpu.dimension_semantics<arbitrary>], iteration_bounds = array<i64: 2, 4, 2>, scalar_prefetch = 0 : i64, scratch_operands = 4 : i64, tpu.core_type = #tpu.core_type<tc>, window_params = [{transform_indices = @transform_0, window_bounds = array<i64: 1, 256, 128>}, {transform_indices = @transform_1, window_bounds = array<i64: 1, 512, 128>}, {pipeline_mode = #tpu.pipeline_mode<synchronous>, transform_indices = @transform_2, window_bounds = array<i64: 128, 128>}, {pipeline_mode = #tpu.pipeline_mode<synchronous>, transform_indices = @transform_3, window_bounds = array<i64: 1, 128>}, {pipeline_mode = #tpu.pipeline_mode<synchronous>, transform_indices = @transform_4, window_bounds = array<i64: 128, 128>}, {pipeline_mode = #tpu.pipeline_mode<synchronous>, transform_indices = @transform_5, window_bounds = array<i64: 1, 128>}, {pipeline_mode = #tpu.pipeline_mode<synchronous>, transform_indices = @transform_6, window_bounds = array<i64: 128, 128>}, {pipeline_mode = #tpu.pipeline_mode<synchronous>, transform_indices = @transform_7, window_bounds = array<i64: 1, 128>}, {transform_indices = @transform_8, window_bounds = array<i64: 1>}, {transform_indices = @transform_9, window_bounds = array<i64: 1, 256, 128>}]} {
    %c0_i32 = arith.constant 0 : i32
    %0 = arith.cmpi eq, %arg2, %c0_i32 : i32
    %1 = arith.extui %0 : i1 to i32
    %c0_i32_0 = arith.constant 0 : i32
    %2 = arith.cmpi ne, %1, %c0_i32_0 : i32
    scf.if %2 {
      %c0_31 = arith.constant 0 : index
      %c0_32 = arith.constant 0 : index
      %c0_33 = arith.constant 0 : index
      %47 = vector.load %arg3[%c0_31, %c0_32, %c0_33] : memref<1x256x128xf32, #tpu.memory_space<vmem>>, vector<1x256x128xf32>
      %48 = vector.shape_cast %47 : vector<1x256x128xf32> to vector<256x128xf32>
      %49 = arith.truncf %48 : vector<256x128xf32> to vector<256x128xbf16>
      %c0_34 = arith.constant 0 : index
      %c0_35 = arith.constant 0 : index
      %50 = vector.load %arg5[%c0_34, %c0_35] : memref<128x128xbf16, #tpu.memory_space<vmem>>, vector<128x128xbf16>
      %cst_36 = arith.constant dense<0.000000e+00> : vector<256x128xf32>
      %51 = tpu.matmul %49, %50, %cst_36 {dimension_numbers = #tpu.dot_dimension_numbers<[1], [0], [0], [1], [0, 0, 1, 1], [], []>} : vector<256x128xbf16>, vector<128x128xbf16>, vector<256x128xf32> -> vector<256x128xf32>
      %c0_37 = arith.constant 0 : index
      %c0_38 = arith.constant 0 : index
      %52 = vector.load %arg6[%c0_37, %c0_38] : memref<1x128xf32, #tpu.memory_space<vmem>>, vector<1x128xf32>
      %53 = vector.broadcast %52 : vector<1x128xf32> to vector<256x128xf32>
      %54 = arith.addf %51, %53 : vector<256x128xf32>
      %c0_39 = arith.constant 0 : index
      %c0_40 = arith.constant 0 : index
      %55 = vector.load %arg13[%c0_39, %c0_40] : memref<256x128xf32, #tpu.memory_space<vmem>>, vector<256x128xf32>
      tpu.vector_store %arg13[%c0_39, %c0_40], %54 {strides = array<i32>} : memref<256x128xf32, #tpu.memory_space<vmem>>, vector<256x128xf32>,
      %cst_41 = arith.constant 0xFF800000 : f32
      %56 = vector.broadcast %cst_41 : f32 to vector<256x1xf32>
      %c0_42 = arith.constant 0 : index
      %c0_43 = arith.constant 0 : index
      %57 = vector.load %arg14[%c0_42, %c0_43] : memref<256x1xf32, #tpu.memory_space<vmem>>, vector<256x1xf32>
      tpu.vector_store %arg14[%c0_42, %c0_43], %56 {strides = array<i32>} : memref<256x1xf32, #tpu.memory_space<vmem>>, vector<256x1xf32>,
      %cst_44 = arith.constant 0.000000e+00 : f32
      %58 = vector.broadcast %cst_44 : f32 to vector<256x1xf32>
      %c0_45 = arith.constant 0 : index
      %c0_46 = arith.constant 0 : index
      %59 = vector.load %arg15[%c0_45, %c0_46] : memref<256x1xf32, #tpu.memory_space<vmem>>, vector<256x1xf32>
      tpu.vector_store %arg15[%c0_45, %c0_46], %58 {strides = array<i32>} : memref<256x1xf32, #tpu.memory_space<vmem>>, vector<256x1xf32>,
      %cst_47 = arith.constant 0.000000e+00 : f32
      %60 = vector.broadcast %cst_47 : f32 to vector<256x128xf32>
      %c0_48 = arith.constant 0 : index
      %c0_49 = arith.constant 0 : index
      %61 = vector.load %arg16[%c0_48, %c0_49] : memref<256x128xf32, #tpu.memory_space<vmem>>, vector<256x128xf32>
      tpu.vector_store %arg16[%c0_48, %c0_49], %60 {strides = array<i32>} : memref<256x128xf32, #tpu.memory_space<vmem>>, vector<256x128xf32>,
    } else {
    }
    %c0 = arith.constant 0 : index
    %c0_1 = arith.constant 0 : index
    %c0_2 = arith.constant 0 : index
    %3 = vector.load %arg4[%c0, %c0_1, %c0_2] : memref<1x512x128xf32, #tpu.memory_space<vmem>>, vector<1x512x128xf32>
    %4 = vector.shape_cast %3 : vector<1x512x128xf32> to vector<512x128xf32>
    %5 = arith.truncf %4 : vector<512x128xf32> to vector<512x128xbf16>
    %c0_3 = arith.constant 0 : index
    %c0_4 = arith.constant 0 : index
    %6 = vector.load %arg7[%c0_3, %c0_4] : memref<128x128xbf16, #tpu.memory_space<vmem>>, vector<128x128xbf16>
    %cst = arith.constant dense<0.000000e+00> : vector<512x128xf32>
    %7 = tpu.matmul %5, %6, %cst {dimension_numbers = #tpu.dot_dimension_numbers<[1], [0], [0], [1], [0, 0, 1, 1], [], []>} : vector<512x128xbf16>, vector<128x128xbf16>, vector<512x128xf32> -> vector<512x128xf32>
    %c0_5 = arith.constant 0 : index
    %c0_6 = arith.constant 0 : index
    %8 = vector.load %arg8[%c0_5, %c0_6] : memref<1x128xf32, #tpu.memory_space<vmem>>, vector<1x128xf32>
    %9 = vector.broadcast %8 : vector<1x128xf32> to vector<512x128xf32>
    %10 = arith.addf %7, %9 : vector<512x128xf32>
    %c0_7 = arith.constant 0 : index
    %c0_8 = arith.constant 0 : index
    %11 = vector.load %arg9[%c0_7, %c0_8] : memref<128x128xbf16, #tpu.memory_space<vmem>>, vector<128x128xbf16>
    %cst_9 = arith.constant dense<0.000000e+00> : vector<512x128xf32>
    %12 = tpu.matmul %5, %11, %cst_9 {dimension_numbers = #tpu.dot_dimension_numbers<[1], [0], [0], [1], [0, 0, 1, 1], [], []>} : vector<512x128xbf16>, vector<128x128xbf16>, vector<512x128xf32> -> vector<512x128xf32>
    %c0_10 = arith.constant 0 : index
    %c0_11 = arith.constant 0 : index
    %13 = vector.load %arg10[%c0_10, %c0_11] : memref<1x128xf32, #tpu.memory_space<vmem>>, vector<1x128xf32>
    %14 = vector.broadcast %13 : vector<1x128xf32> to vector<512x128xf32>
    %15 = arith.addf %12, %14 : vector<512x128xf32>
    %c0_12 = arith.constant 0 : index
    %c0_13 = arith.constant 0 : index
    %16 = vector.load %arg13[%c0_12, %c0_13] : memref<256x128xf32, #tpu.memory_space<vmem>>, vector<256x128xf32>
    %17 = arith.truncf %16 : vector<256x128xf32> to vector<256x128xbf16>
    %18 = arith.truncf %10 : vector<512x128xf32> to vector<512x128xbf16>
    %cst_14 = arith.constant dense<0.000000e+00> : vector<256x512xf32>
    %19 = tpu.matmul %17, %18, %cst_14 {dimension_numbers = #tpu.dot_dimension_numbers<[1], [1], [0], [0], [0, 0, 1, 0], [], []>} : vector<256x128xbf16>, vector<512x128xbf16>, vector<256x512xf32> -> vector<256x512xf32>
    %c0_15 = arith.constant 0 : index
    %c0_16 = arith.constant 0 : index
    %20 = vector.load %arg14[%c0_15, %c0_16] : memref<256x1xf32, #tpu.memory_space<vmem>>, vector<256x1xf32>
    %cst_17 = arith.constant dense<0xFF800000> : vector<256xf32>
    %21 = vector.multi_reduction <maximumf>, %19, %cst_17 [1] : vector<256x512xf32> to vector<256xf32>
    %22 = vector.shape_cast %21 : vector<256xf32> to vector<256x1xf32>
    %23 = arith.maximumf %20, %22 : vector<256x1xf32>
    %24 = arith.subf %20, %23 : vector<256x1xf32>
    %25 = math.exp %24 : vector<256x1xf32>
    %26 = vector.broadcast %23 : vector<256x1xf32> to vector<256x512xf32>
    %27 = arith.subf %19, %26 : vector<256x512xf32>
    %28 = math.exp %27 : vector<256x512xf32>
    %c0_18 = arith.constant 0 : index
    %c0_19 = arith.constant 0 : index
    %29 = vector.load %arg15[%c0_18, %c0_19] : memref<256x1xf32, #tpu.memory_space<vmem>>, vector<256x1xf32>
    %30 = arith.mulf %25, %29 : vector<256x1xf32>
    %cst_20 = arith.constant dense<0.000000e+00> : vector<256xf32>
    %31 = vector.multi_reduction <add>, %28, %cst_20 [1] : vector<256x512xf32> to vector<256xf32>
    %32 = vector.shape_cast %31 : vector<256xf32> to vector<256x1xf32>
    %33 = arith.addf %30, %32 : vector<256x1xf32>
    %c0_21 = arith.constant 0 : index
    %c0_22 = arith.constant 0 : index
    %34 = vector.load %arg15[%c0_21, %c0_22] : memref<256x1xf32, #tpu.memory_space<vmem>>, vector<256x1xf32>
    tpu.vector_store %arg15[%c0_21, %c0_22], %33 {strides = array<i32>} : memref<256x1xf32, #tpu.memory_space<vmem>>, vector<256x1xf32>,
    %c0_23 = arith.constant 0 : index
    %c0_24 = arith.constant 0 : index
    %35 = vector.load %arg16[%c0_23, %c0_24] : memref<256x128xf32, #tpu.memory_space<vmem>>, vector<256x128xf32>
    %36 = vector.broadcast %25 : vector<256x1xf32> to vector<256x128xf32>
    %37 = arith.mulf %36, %35 : vector<256x128xf32>
    %38 = arith.truncf %28 : vector<256x512xf32> to vector<256x512xbf16>
    %39 = arith.truncf %15 : vector<512x128xf32> to vector<512x128xbf16>
    %cst_25 = arith.constant dense<0.000000e+00> : vector<256x128xf32>
    %40 = tpu.matmul %38, %39, %cst_25 {dimension_numbers = #tpu.dot_dimension_numbers<[1], [0], [0], [1], [0, 0, 1, 1], [], []>} : vector<256x512xbf16>, vector<512x128xbf16>, vector<256x128xf32> -> vector<256x128xf32>
    %41 = arith.addf %37, %40 : vector<256x128xf32>
    %c0_26 = arith.constant 0 : index
    %c0_27 = arith.constant 0 : index
    %42 = vector.load %arg16[%c0_26, %c0_27] : memref<256x128xf32, #tpu.memory_space<vmem>>, vector<256x128xf32>
    tpu.vector_store %arg16[%c0_26, %c0_27], %41 {strides = array<i32>} : memref<256x128xf32, #tpu.memory_space<vmem>>, vector<256x128xf32>,
    %c0_28 = arith.constant 0 : index
    %c0_29 = arith.constant 0 : index
    %43 = vector.load %arg14[%c0_28, %c0_29] : memref<256x1xf32, #tpu.memory_space<vmem>>, vector<256x1xf32>
    tpu.vector_store %arg14[%c0_28, %c0_29], %23 {strides = array<i32>} : memref<256x1xf32, #tpu.memory_space<vmem>>, vector<256x1xf32>,
    %c1_i32 = arith.constant 1 : i32
    %44 = arith.cmpi eq, %arg2, %c1_i32 : i32
    %45 = arith.extui %44 : i1 to i32
    %c0_i32_30 = arith.constant 0 : i32
    %46 = arith.cmpi ne, %45, %c0_i32_30 : i32
    scf.if %46 {
      %c0_31 = arith.constant 0 : index
      %c0_32 = arith.constant 0 : index
      %47 = vector.load %arg16[%c0_31, %c0_32] : memref<256x128xf32, #tpu.memory_space<vmem>>, vector<256x128xf32>
      %c0_33 = arith.constant 0 : index
      %c0_34 = arith.constant 0 : index
      %48 = vector.load %arg15[%c0_33, %c0_34] : memref<256x1xf32, #tpu.memory_space<vmem>>, vector<256x1xf32>
      %49 = tpu.reciprocal %48 {approx = true} : vector<256x1xf32> -> vector<256x1xf32>
      %50 = vector.broadcast %49 : vector<256x1xf32> to vector<256x128xf32>
      %51 = arith.mulf %47, %50 : vector<256x128xf32>
      %c0_35 = arith.constant 0 : index
      %52 = memref.load %arg11[%c0_35] : memref<1xf32, #tpu.memory_space<smem>>
      %53 = vector.broadcast %52 : f32 to vector<256x128xf32>
      %54 = arith.mulf %53, %51 : vector<256x128xf32>
      %c0_36 = arith.constant 0 : index
      %c0_37 = arith.constant 0 : index
      %c0_38 = arith.constant 0 : index
      %55 = vector.load %arg3[%c0_36, %c0_37, %c0_38] : memref<1x256x128xf32, #tpu.memory_space<vmem>>, vector<1x256x128xf32>
      %56 = vector.shape_cast %55 : vector<1x256x128xf32> to vector<256x128xf32>
      %57 = arith.addf %54, %56 : vector<256x128xf32>
      %c0_39 = arith.constant 0 : index
      %c0_40 = arith.constant 0 : index
      %c0_41 = arith.constant 0 : index
      %58 = vector.load %arg12[%c0_39, %c0_40, %c0_41] : memref<1x256x128xf32, #tpu.memory_space<vmem>>, vector<1x256x128xf32>
      %59 = vector.shape_cast %58 : vector<1x256x128xf32> to vector<256x128xf32>
      %60 = vector.shape_cast %57 : vector<256x128xf32> to vector<1x256x128xf32>
      tpu.vector_store %arg12[%c0_39, %c0_40, %c0_41], %60 {strides = array<i32>} : memref<1x256x128xf32, #tpu.memory_space<vmem>>, vector<1x256x128xf32>,
    } else {
    }
    return
  }
  func.func @transform_0(%arg0: i32, %arg1: i32, %arg2: i32) -> (i32, i32, i32) {
    %c0_i32 = arith.constant 0 : i32
    %c0_i32_0 = arith.constant 0 : i32
    return %arg0, %arg1, %c0_i32 : i32, i32, i32
  }
  func.func @transform_1(%arg0: i32, %arg1: i32, %arg2: i32) -> (i32, i32, i32) {
    %c0_i32 = arith.constant 0 : i32
    %c0_i32_0 = arith.constant 0 : i32
    return %arg0, %arg2, %c0_i32 : i32, i32, i32
  }
  func.func @transform_2(%arg0: i32, %arg1: i32, %arg2: i32) -> (i32, i32) {
    %c0_i32 = arith.constant 0 : i32
    %c0_i32_0 = arith.constant 0 : i32
    %c0_i32_1 = arith.constant 0 : i32
    return %c0_i32, %c0_i32_0 : i32, i32
  }
  func.func @transform_3(%arg0: i32, %arg1: i32, %arg2: i32) -> (i32, i32) {
    %c0_i32 = arith.constant 0 : i32
    %c0_i32_0 = arith.constant 0 : i32
    %c0_i32_1 = arith.constant 0 : i32
    return %c0_i32, %c0_i32_0 : i32, i32
  }
  func.func @transform_4(%arg0: i32, %arg1: i32, %arg2: i32) -> (i32, i32) {
    %c0_i32 = arith.constant 0 : i32
    %c0_i32_0 = arith.constant 0 : i32
    %c0_i32_1 = arith.constant 0 : i32
    return %c0_i32, %c0_i32_0 : i32, i32
  }
  func.func @transform_5(%arg0: i32, %arg1: i32, %arg2: i32) -> (i32, i32) {
    %c0_i32 = arith.constant 0 : i32
    %c0_i32_0 = arith.constant 0 : i32
    %c0_i32_1 = arith.constant 0 : i32
    return %c0_i32, %c0_i32_0 : i32, i32
  }
  func.func @transform_6(%arg0: i32, %arg1: i32, %arg2: i32) -> (i32, i32) {
    %c0_i32 = arith.constant 0 : i32
    %c0_i32_0 = arith.constant 0 : i32
    %c0_i32_1 = arith.constant 0 : i32
    return %c0_i32, %c0_i32_0 : i32, i32
  }
  func.func @transform_7(%arg0: i32, %arg1: i32, %arg2: i32) -> (i32, i32) {
    %c0_i32 = arith.constant 0 : i32
    %c0_i32_0 = arith.constant 0 : i32
    %c0_i32_1 = arith.constant 0 : i32
    return %c0_i32, %c0_i32_0 : i32, i32
  }
  func.func @transform_8(%arg0: i32, %arg1: i32, %arg2: i32) -> i32 {
    %c0_i32 = arith.constant 0 : i32
    %c0_i32_0 = arith.constant 0 : i32
    return %c0_i32 : i32
  }
  func.func @transform_9(%arg0: i32, %arg1: i32, %arg2: i32) -> (i32, i32, i32) {
    %c0_i32 = arith.constant 0 : i32
    %c0_i32_0 = arith.constant 0 : i32
    return %arg0, %arg1, %c0_i32 : i32, i32, i32
  }
}

</mosaic_0001>

<llo_original>
// kernel: tpu_custom_call.1
$region0: #{tpu_custom_call.1}
  #allocation0 [shape = 'u32[]', space=smem, size = 0x4, offset = 0x4, fixed_abs, tag = 'smem constant byte address 0x4 - core index']
  #allocation1 [shape = 'u32[144,128]{1,0:T(1,128)}', space=vmem, size = 0x12000, scoped, tag = 'internal scratch']
  #allocation2 [shape = 'f32[256,128]{1,0:T(8,128)}', space=vmem, size = 0x20000, scoped, tag = 'scratch operand']
  #allocation3 [shape = 'f32[256,1]{1,0:T(8,128)}', space=vmem, size = 0x20000, scoped, tag = 'scratch operand']
  #allocation4 [shape = 'f32[256,1]{1,0:T(8,128)}', space=vmem, size = 0x20000, scoped, tag = 'scratch operand']
  #allocation5 [shape = 'f32[256,128]{1,0:T(8,128)}', space=vmem, size = 0x20000, scoped, tag = 'scratch operand']
  #allocation6 [shape = 'f32[1]{0:T(128)S(6)}', space=smem, size = 0x200, scoped, tag = 'scoped memory for tpu_custom_call.1']
  %s0 = inlined_call_operand.hbm [shape: f32[2,1024,128], index: 0, kind: input, shape index: {}]
  %s1 = inlined_call_operand.hbm [shape: f32[2,1024,128], index: 1, kind: input, shape index: {}]
  %s2 = inlined_call_operand.hbm [shape: bf16[128,128], index: 2, kind: input, shape index: {}]
  %s3 = inlined_call_operand.vmem [shape: f32[1,128], index: 3, kind: input, shape index: {}]
  %s4 = inlined_call_operand.hbm [shape: bf16[128,128], index: 4, kind: input, shape index: {}]
  %s5 = inlined_call_operand.vmem [shape: f32[1,128], index: 5, kind: input, shape index: {}]
  %s6 = inlined_call_operand.hbm [shape: bf16[128,128], index: 6, kind: input, shape index: {}]
  %s7 = inlined_call_operand.vmem [shape: f32[1,128], index: 7, kind: input, shape index: {}]
  %s8 = inlined_call_operand.<no memory space> [shape: f32[1], index: 8, kind: input, shape index: {}]
  %s9 = inlined_call_operand.hbm [shape: f32[2,1024,128], index: 9, kind: output, shape index: {}]
  %s10 = sld [smem:[#allocation0]]
  $region97: #{tpu_custom_call.1} parent=0
    _
  %s12 = ssub.s32 1, %s10
  %s13 = scalar_select 0, %s12, %s10
  %14 = sst [smem:[#allocation6]] %s8
  $region1: #{tpu_custom_call.1} parent=0
    #allocation7 [shape = 'u8[262144]{0}', space=vmem, size = 0x40000, scoped, tag = 'input window, operand 0']
    #allocation8 [shape = 's32[2]{0}', space=sflag, size = 0x8, scoped, tag = 'scoped memory for tpu_custom_call.1']
    #allocation9 [shape = 's32[2]{0}', space=sflag, size = 0x8, scoped, tag = 'scoped memory for tpu_custom_call.1']
    #allocation10 [shape = 'u8[524288]{0}', space=vmem, size = 0x80000, scoped, tag = 'input window, operand 1']
    #allocation11 [shape = 's32[2]{0}', space=sflag, size = 0x8, scoped, tag = 'scoped memory for tpu_custom_call.1']
    #allocation12 [shape = 'u8[32768]{0}', space=vmem, size = 0x8000, scoped, tag = 'input window, operand 2, single buffered']
    #allocation13 [shape = 'u8[32768]{0}', space=vmem, size = 0x8000, scoped, tag = 'input window, operand 4, single buffered']
    #allocation14 [shape = 's32[1]{0}', space=sflag, size = 0x4, scoped, tag = 'scoped memory for tpu_custom_call.1']
    #allocation15 [shape = 'u8[32768]{0}', space=vmem, size = 0x8000, scoped, tag = 'input window, operand 6, single buffered']
    #allocation16 [shape = 'u8[262144]{0}', space=vmem, size = 0x40000, scoped, tag = 'output window, operand 0']
    %15 = vsyncpa [#allocation8], 0
    %s16 = scalar_lea.sflag [#allocation8], 1
    %17 = vsyncpa %s16, 0
    %18 = vsyncpa [#allocation11], 0
    %s19 = scalar_lea.sflag [#allocation11], 1
    %20 = vsyncpa %s19, 0
    %21 = vsyncpa [#allocation14], 0
    %22 = vsyncpa [#allocation9], 0
    %s23 = scalar_lea.sflag [#allocation9], 1
    %24 = vsyncpa %s23, 0
    loop: start=0, step=1, limit=18
    $region2: #{tpu_custom_call.1} parent=1 // loop_pre_header
      _
    $region3: #{tpu_custom_call.1} parent=1 // loop_header
      %s26 = sphi 0, %s30
      %p27 = scmp.ge.s32.totalorder %s26, 18
      %s33 = sphi 0, %s52
      %s34 = sphi 0, %s48
      %s35 = sphi 0, %s44
      %s36 = sphi 0, %s33
      %s37 = sphi 0, %s34
      %s38 = sphi 0, %s35
      %s39 = sphi 0, %s36
      %s40 = sphi 0, %s37
      %s41 = sphi 0, %s38
      %s57 = sphi 0, %s59
      %s60 = sphi 0, %s57
      %s61 = sphi 0, %s60
      %s77 = sphi 0, %s61
      %s85 = sphi 0, %s87
      %s88 = sphi 0, %s85
      %s89 = sphi 0, %s88
      %s105 = sphi 0, %s89
      %s109 = sphi 0, %s109
      %s111 = sphi 0, %s109
      %s112 = sphi 0, %s111
      %s126 = sphi 0, %s112
      %s130 = sphi 0, %s130
      %s132 = sphi 0, %s130
      %s133 = sphi 0, %s132
      %s147 = sphi 0, %s133
      %s151 = sphi 0, %s151
      %s153 = sphi 0, %s151
      %s154 = sphi 0, %s153
      %s168 = sphi 0, %s154
      %s172 = sphi 0, %s172
      %s174 = sphi 0, %s172
      %s175 = sphi 0, %s174
      %s189 = sphi 0, %s175
      %s193 = sphi 0, %s193
      %s195 = sphi 0, %s193
      %s196 = sphi 0, %s195
      %s210 = sphi 0, %s196
      %s214 = sphi 0, %s214
      %s216 = sphi 0, %s214
      %s217 = sphi 0, %s216
      %s231 = sphi 0, %s217
      %s235 = sphi 0, %s235
      %s237 = sphi 0, %s235
      %s238 = sphi 0, %s237
      %s252 = sphi 0, %s238
      %s260 = sphi 0, %s262
      %s263 = sphi 0, %s260
      %s264 = sphi 0, %s263
      %s280 = sphi 0, %s264
    $region4: #{tpu_custom_call.1} parent=1 // loop_header_branch
      %29 = sbr.rel (%p27) target = $region8
    $region5: #{tpu_custom_call.1} parent=1 // loop_body
      %s31 = ssub.s32 %s26, 1
      %s32 = ssub.s32 %s26, 2
      %s42 = sadd.s32 1, %s35
      %p43 = scmp.ge.s32.totalorder %s42, 2
      %s44 = scalar_select %p43, 0, %s42
      %s45 = sadd.s32 1, %s34
      %s46 = scalar_select %p43, %s45, %s34
      %p47 = scmp.ge.s32.totalorder %s46, 4
      %s48 = scalar_select %p47, 0, %s46
      %s49 = sadd.s32 1, %s33
      %s50 = scalar_select %p47, %s49, %s33
      %p51 = scmp.ge.s32.totalorder %s50, 2
      %s52 = scalar_select %p51, 0, %s50
      %s53 = ssub.s32 %s33, %s52
      %s54 = ssub.s32 %s34, %s48
      %s55 = sor.u32 %s53, %s54
      %p56 = scmp.eq.s32.totalorder %s55, 0
      %s58 = sadd.s32 %s57, 1
      %s59 = scalar_select %p56, %s57, %s58
      %p62 = pneg %p56
      %p63 = scmp.eq.s32.totalorder %s26, 15
      %p64 = por %p62, %p63
      %p65 = scmp.ne.s32.totalorder %s57, %s60
      %p66 = scmp.eq.s32.totalorder %s26, 0
      %p67 = por %p65, %p66
      %p68 = scmp.ne.s32.totalorder %s57, %s60
      %p69 = scmp.eq.s32.totalorder %s31, 15
      %p70 = por %p68, %p69
      %p71 = scmp.ne.s32.totalorder %s60, %s61
      %p72 = scmp.eq.s32.totalorder %s31, 0
      %p73 = por %p71, %p72
      %p74 = scmp.ne.s32.totalorder %s60, %s61
      %p75 = scmp.eq.s32.totalorder %s32, 15
      %p76 = por %p74, %p75
      %p78 = scmp.ne.s32.totalorder %s61, %s77
      %p79 = scmp.eq.s32.totalorder %s32, 0
      %p80 = por %p78, %p79
      %s81 = ssub.s32 %s33, %s52
      %s82 = ssub.s32 %s35, %s44
      %s83 = sor.u32 %s81, %s82
      %p84 = scmp.eq.s32.totalorder %s83, 0
      %s86 = sadd.s32 %s85, 1
      %s87 = scalar_select %p84, %s85, %s86
      %p90 = pneg %p84
      %p91 = scmp.eq.s32.totalorder %s26, 15
      %p92 = por %p90, %p91
      %p93 = scmp.ne.s32.totalorder %s85, %s88
      %p94 = scmp.eq.s32.totalorder %s26, 0
      %p95 = por %p93, %p94
      %p96 = scmp.ne.s32.totalorder %s85, %s88
      %p97 = scmp.eq.s32.totalorder %s31, 15
      %p98 = por %p96, %p97
      %p99 = scmp.ne.s32.totalorder %s88, %s89
      %p100 = scmp.eq.s32.totalorder %s31, 0
      %p101 = por %p99, %p100
      %p102 = scmp.ne.s32.totalorder %s88, %s89
      %p103 = scmp.eq.s32.totalorder %s32, 15
      %p104 = por %p102, %p103
      %p106 = scmp.ne.s32.totalorder %s89, %s105
      %p107 = scmp.eq.s32.totalorder %s32, 0
      %p108 = por %p106, %p107
      %s110 = sadd.s32 %s109, 1
      %p113 = scmp.eq.s32.totalorder %s26, 15
      %p114 = scmp.ne.s32.totalorder %s109, %s111
      %p115 = scmp.eq.s32.totalorder %s26, 0
      %p116 = por %p114, %p115
      %p117 = scmp.ne.s32.totalorder %s109, %s111
      %p118 = scmp.eq.s32.totalorder %s31, 15
      %p119 = por %p117, %p118
      %p120 = scmp.ne.s32.totalorder %s111, %s112
      %p121 = scmp.eq.s32.totalorder %s31, 0
      %p122 = por %p120, %p121
      %p123 = scmp.ne.s32.totalorder %s111, %s112
      %p124 = scmp.eq.s32.totalorder %s32, 15
      %p125 = por %p123, %p124
      %p127 = scmp.ne.s32.totalorder %s112, %s126
      %p128 = scmp.eq.s32.totalorder %s32, 0
      %p129 = por %p127, %p128
      %s131 = sadd.s32 %s130, 1
      %p134 = scmp.eq.s32.totalorder %s26, 15
      %p135 = scmp.ne.s32.totalorder %s130, %s132
      %p136 = scmp.eq.s32.totalorder %s26, 0
      %p137 = por %p135, %p136
      %p138 = scmp.ne.s32.totalorder %s130, %s132
      %p139 = scmp.eq.s32.totalorder %s31, 15
      %p140 = por %p138, %p139
      %p141 = scmp.ne.s32.totalorder %s132, %s133
      %p142 = scmp.eq.s32.totalorder %s31, 0
      %p143 = por %p141, %p142
      %p144 = scmp.ne.s32.totalorder %s132, %s133
      %p145 = scmp.eq.s32.totalorder %s32, 15
      %p146 = por %p144, %p145
      %p148 = scmp.ne.s32.totalorder %s133, %s147
      %p149 = scmp.eq.s32.totalorder %s32, 0
      %p150 = por %p148, %p149
      %s152 = sadd.s32 %s151, 1
      %p155 = scmp.eq.s32.totalorder %s26, 15
      %p156 = scmp.ne.s32.totalorder %s151, %s153
      %p157 = scmp.eq.s32.totalorder %s26, 0
      %p158 = por %p156, %p157
      %p159 = scmp.ne.s32.totalorder %s151, %s153
      %p160 = scmp.eq.s32.totalorder %s31, 15
      %p161 = por %p159, %p160
      %p162 = scmp.ne.s32.totalorder %s153, %s154
      %p163 = scmp.eq.s32.totalorder %s31, 0
      %p164 = por %p162, %p163
      %p165 = scmp.ne.s32.totalorder %s153, %s154
      %p166 = scmp.eq.s32.totalorder %s32, 15
      %p167 = por %p165, %p166
      %p169 = scmp.ne.s32.totalorder %s154, %s168
      %p170 = scmp.eq.s32.totalorder %s32, 0
      %p171 = por %p169, %p170
      %s173 = sadd.s32 %s172, 1
      %p176 = scmp.eq.s32.totalorder %s26, 15
      %p177 = scmp.ne.s32.totalorder %s172, %s174
      %p178 = scmp.eq.s32.totalorder %s26, 0
      %p179 = por %p177, %p178
      %p180 = scmp.ne.s32.totalorder %s172, %s174
      %p181 = scmp.eq.s32.totalorder %s31, 15
      %p182 = por %p180, %p181
      %p183 = scmp.ne.s32.totalorder %s174, %s175
      %p184 = scmp.eq.s32.totalorder %s31, 0
      %p185 = por %p183, %p184
      %p186 = scmp.ne.s32.totalorder %s174, %s175
      %p187 = scmp.eq.s32.totalorder %s32, 15
      %p188 = por %p186, %p187
      %p190 = scmp.ne.s32.totalorder %s175, %s189
      %p191 = scmp.eq.s32.totalorder %s32, 0
      %p192 = por %p190, %p191
      %s194 = sadd.s32 %s193, 1
      %p197 = scmp.eq.s32.totalorder %s26, 15
      %p198 = scmp.ne.s32.totalorder %s193, %s195
      %p199 = scmp.eq.s32.totalorder %s26, 0
      %p200 = por %p198, %p199
      %p201 = scmp.ne.s32.totalorder %s193, %s195
      %p202 = scmp.eq.s32.totalorder %s31, 15
      %p203 = por %p201, %p202
      %p204 = scmp.ne.s32.totalorder %s195, %s196
      %p205 = scmp.eq.s32.totalorder %s31, 0
      %p206 = por %p204, %p205
      %p207 = scmp.ne.s32.totalorder %s195, %s196
      %p208 = scmp.eq.s32.totalorder %s32, 15
      %p209 = por %p207, %p208
      %p211 = scmp.ne.s32.totalorder %s196, %s210
      %p212 = scmp.eq.s32.totalorder %s32, 0
      %p213 = por %p211, %p212
      %s215 = sadd.s32 %s214, 1
      %p218 = scmp.eq.s32.totalorder %s26, 15
      %p219 = scmp.ne.s32.totalorder %s214, %s216
      %p220 = scmp.eq.s32.totalorder %s26, 0
      %p221 = por %p219, %p220
      %p222 = scmp.ne.s32.totalorder %s214, %s216
      %p223 = scmp.eq.s32.totalorder %s31, 15
      %p224 = por %p222, %p223
      %p225 = scmp.ne.s32.totalorder %s216, %s217
      %p226 = scmp.eq.s32.totalorder %s31, 0
      %p227 = por %p225, %p226
      %p228 = scmp.ne.s32.totalorder %s216, %s217
      %p229 = scmp.eq.s32.totalorder %s32, 15
      %p230 = por %p228, %p229
      %p232 = scmp.ne.s32.totalorder %s217, %s231
      %p233 = scmp.eq.s32.totalorder %s32, 0
      %p234 = por %p232, %p233
      %s236 = sadd.s32 %s235, 1
      %p239 = scmp.eq.s32.totalorder %s26, 15
      %p240 = scmp.ne.s32.totalorder %s235, %s237
      %p241 = scmp.eq.s32.totalorder %s26, 0
      %p242 = por %p240, %p241
      %p243 = scmp.ne.s32.totalorder %s235, %s237
      %p244 = scmp.eq.s32.totalorder %s31, 15
      %p245 = por %p243, %p244
      %p246 = scmp.ne.s32.totalorder %s237, %s238
      %p247 = scmp.eq.s32.totalorder %s31, 0
      %p248 = por %p246, %p247
      %p249 = scmp.ne.s32.totalorder %s237, %s238
      %p250 = scmp.eq.s32.totalorder %s32, 15
      %p251 = por %p249, %p250
      %p253 = scmp.ne.s32.totalorder %s238, %s252
      %p254 = scmp.eq.s32.totalorder %s32, 0
      %p255 = por %p253, %p254
      %s256 = ssub.s32 %s33, %s52
      %s257 = ssub.s32 %s34, %s48
      %s258 = sor.u32 %s256, %s257
      %p259 = scmp.eq.s32.totalorder %s258, 0
      %s261 = sadd.s32 %s260, 1
      %s262 = scalar_select %p259, %s260, %s261
      %p265 = pneg %p259
      %p266 = scmp.eq.s32.totalorder %s26, 15
      %p267 = por %p265, %p266
      %p268 = scmp.ne.s32.totalorder %s260, %s263
      %p269 = scmp.eq.s32.totalorder %s26, 0
      %p270 = por %p268, %p269
      %p271 = scmp.ne.s32.totalorder %s260, %s263
      %p272 = scmp.eq.s32.totalorder %s31, 15
      %p273 = por %p271, %p272
      %p274 = scmp.ne.s32.totalorder %s263, %s264
      %p275 = scmp.eq.s32.totalorder %s31, 0
      %p276 = por %p274, %p275
      %p277 = scmp.ne.s32.totalorder %s263, %s264
      %p278 = scmp.eq.s32.totalorder %s32, 15
      %p279 = por %p277, %p278
      %p281 = scmp.ne.s32.totalorder %s264, %s280
      %p282 = scmp.eq.s32.totalorder %s32, 0
      %p283 = por %p281, %p282
      %p284 = scmp.le.s32.totalorder 1, %s26
      %p285 = scmp.lt.s32.totalorder %s26, 17
      %p286 = pnand %p284, %p285
      %p287 = pneg %p286
      // Predicated region
      $region9: #{tpu_custom_call.1} parent=5 // pred_check
        _
      $region10: #{tpu_custom_call.1} parent=5 // pred_check_branch
        %289 = sbr.rel (%p286) target = $region12
      $region11: #{tpu_custom_call.1} parent=5 // pred_region
        %s290 = ssub.s32 %s26, 1
        // Predicated region
        $region13: #{tpu_custom_call.1} parent=11 // pred_check
          %p291 = pneg %p122
        $region14: #{tpu_custom_call.1} parent=11 // pred_check_branch
          %293 = sbr.rel (%p291) target = $region16
        $region15: #{tpu_custom_call.1} parent=11 // pred_region
          %s295 = ssub.s32 1024, 1024
          %296 = vsyncadd [#allocation11], %s295
          %s297 = sshll.u32 [#allocation12], 4
          %s298 = int_to_ptr.vmem [resolvable:$true] %s297
          %303 = dma.hbm_to_vmem [thread:$0]  %s2, 1024, %s298, [#allocation11], 64, 64, 4
        $region16: #{tpu_custom_call.1} parent=11 // pred_fallthru
          _
        // Predicated region
        $region17: #{tpu_custom_call.1} parent=11 // pred_check
          %p304 = pneg %p143
        $region18: #{tpu_custom_call.1} parent=11 // pred_check_branch
          %306 = sbr.rel (%p304) target = $region20
        $region19: #{tpu_custom_call.1} parent=11 // pred_region
          _
        $region20: #{tpu_custom_call.1} parent=11 // pred_fallthru
          _
        // Predicated region
        $region21: #{tpu_custom_call.1} parent=11 // pred_check
          %p307 = pneg %p164
        $region22: #{tpu_custom_call.1} parent=11 // pred_check_branch
          %309 = sbr.rel (%p307) target = $region24
        $region23: #{tpu_custom_call.1} parent=11 // pred_region
          %s311 = ssub.s32 1024, 1024
          %312 = vsyncadd [#allocation14], %s311
          %s313 = sshll.u32 [#allocation13], 4
          %s314 = int_to_ptr.vmem [resolvable:$true] %s313
          %319 = dma.hbm_to_vmem [thread:$0]  %s4, 1024, %s314, [#allocation14], 64, 64, 4
        $region24: #{tpu_custom_call.1} parent=11 // pred_fallthru
          _
        // Predicated region
        $region25: #{tpu_custom_call.1} parent=11 // pred_check
          %p320 = pneg %p185
        $region26: #{tpu_custom_call.1} parent=11 // pred_check_branch
          %322 = sbr.rel (%p320) target = $region28
        $region27: #{tpu_custom_call.1} parent=11 // pred_region
          _
        $region28: #{tpu_custom_call.1} parent=11 // pred_fallthru
          _
        // Predicated region
        $region29: #{tpu_custom_call.1} parent=11 // pred_check
          %p323 = pneg %p206
        $region30: #{tpu_custom_call.1} parent=11 // pred_check_branch
          %325 = sbr.rel (%p323) target = $region32
        $region31: #{tpu_custom_call.1} parent=11 // pred_region
          %s327 = ssub.s32 1024, 1024
          %328 = vsyncadd [#allocation14], %s327
          %s329 = sshll.u32 [#allocation15], 4
          %s330 = int_to_ptr.vmem [resolvable:$true] %s329
          %335 = dma.hbm_to_vmem [thread:$0]  %s6, 1024, %s330, [#allocation14], 64, 64, 4
        $region32: #{tpu_custom_call.1} parent=11 // pred_fallthru
          _
        // Predicated region
        $region33: #{tpu_custom_call.1} parent=11 // pred_check
          %p336 = pneg %p227
        $region34: #{tpu_custom_call.1} parent=11 // pred_check_branch
          %338 = sbr.rel (%p336) target = $region36
        $region35: #{tpu_custom_call.1} parent=11 // pred_region
          _
        $region36: #{tpu_custom_call.1} parent=11 // pred_fallthru
          _
        // Predicated region
        $region37: #{tpu_custom_call.1} parent=11 // pred_check
          %p339 = pneg %p248
        $region38: #{tpu_custom_call.1} parent=11 // pred_check_branch
          %341 = sbr.rel (%p339) target = $region40
        $region39: #{tpu_custom_call.1} parent=11 // pred_region
          _
        $region40: #{tpu_custom_call.1} parent=11 // pred_fallthru
          _
      $region12: #{tpu_custom_call.1} parent=5 // pred_fallthru
        _
      %p342 = scmp.lt.s32.totalorder %s26, 16
      // Predicated region
      $region41: #{tpu_custom_call.1} parent=5 // pred_check
        %p343 = pneg %p342
      $region42: #{tpu_custom_call.1} parent=5 // pred_check_branch
        %345 = sbr.rel (%p343) target = $region44
      $region43: #{tpu_custom_call.1} parent=5 // pred_region
        // Predicated region
        $region45: #{tpu_custom_call.1} parent=43 // pred_check
          %p346 = pneg %p67
        $region46: #{tpu_custom_call.1} parent=43 // pred_check_branch
          %348 = sbr.rel (%p346) target = $region48
        $region47: #{tpu_custom_call.1} parent=43 // pred_region
          %s349 = sand.u32 %s57, 1
          %s350 = scalar_lea.sflag [#allocation8], %s349
          %s351 = sand.u32 %s57, 1
          %s352 = smul.addr %s351, 256
          %s353 = scalar_lea.vmem [#allocation7], %s352
          %s354 = smul.u32 32, %s34
          %s356 = ssub.s32 4096, 4096
          %357 = vsyncadd %s350, %s356
          %s358 = smul.addr %s33, 128
          %s359 = sadd.s32 %s354, %s358
          %s360 = smul.addr %s359, 128
          %s361 = scalar_lea.hbm %s0, %s360
          %s362 = sshll.u32 %s353, 4
          %s363 = int_to_ptr.vmem [resolvable:$true] %s362
          %368 = dma.hbm_to_vmem [thread:$0]  %s361, 4096, %s363, %s350, 128, 128, 8
        $region48: #{tpu_custom_call.1} parent=43 // pred_fallthru
          _
        // Predicated region
        $region49: #{tpu_custom_call.1} parent=43 // pred_check
          %p369 = pneg %p95
        $region50: #{tpu_custom_call.1} parent=43 // pred_check_branch
          %371 = sbr.rel (%p369) target = $region52
        $region51: #{tpu_custom_call.1} parent=43 // pred_region
          %s372 = sand.u32 %s26, 1
          %s373 = scalar_lea.sflag [#allocation11], %s372
          %s374 = sand.u32 %s85, 1
          %s375 = smul.addr %s374, 512
          %s376 = scalar_lea.vmem [#allocation10], %s375
          %s377 = smul.u32 64, %s35
          %s379 = ssub.s32 8192, 8192
          %380 = vsyncadd %s373, %s379
          %s381 = smul.addr %s33, 128
          %s382 = sadd.s32 %s377, %s381
          %s383 = smul.addr %s382, 128
          %s384 = scalar_lea.hbm %s1, %s383
          %s385 = sshll.u32 %s376, 4
          %s386 = int_to_ptr.vmem [resolvable:$true] %s385
          %391 = dma.hbm_to_vmem [thread:$0]  %s384, 8192, %s386, %s373, 128, 128, 8
        $region52: #{tpu_custom_call.1} parent=43 // pred_fallthru
          _
      $region44: #{tpu_custom_call.1} parent=5 // pred_fallthru
        _
      %p392 = scmp.le.s32.totalorder 1, %s26
      %p393 = scmp.lt.s32.totalorder %s26, 17
      %p394 = pnand %p392, %p393
      %p395 = pneg %p394
      // Predicated region
      $region53: #{tpu_custom_call.1} parent=5 // pred_check
        _
      $region54: #{tpu_custom_call.1} parent=5 // pred_check_branch
        %397 = sbr.rel (%p394) target = $region56
      $region55: #{tpu_custom_call.1} parent=5 // pred_region
        %s398 = ssub.s32 %s26, 1
        %s399 = sand.u32 %s60, 1
        %s400 = scalar_lea.sflag [#allocation8], %s399
        %s401 = sand.u32 %s60, 1
        %s402 = smul.addr %s401, 256
        %s403 = scalar_lea.vmem [#allocation7], %s402
        // Predicated region
        $region57: #{tpu_custom_call.1} parent=55 // pred_check
          %p404 = pneg %p73
        $region58: #{tpu_custom_call.1} parent=55 // pred_check_branch
          %406 = sbr.rel (%p404) target = $region60
        $region59: #{tpu_custom_call.1} parent=55 // pred_region
          %407 = dma.done %s400, 4096
        $region60: #{tpu_custom_call.1} parent=55 // pred_fallthru
          _
        %s408 = sand.u32 %s31, 1
        %s409 = scalar_lea.sflag [#allocation11], %s408
        %s410 = sand.u32 %s88, 1
        %s411 = smul.addr %s410, 512
        %s412 = scalar_lea.vmem [#allocation10], %s411
        // Predicated region
        $region61: #{tpu_custom_call.1} parent=55 // pred_check
          %p413 = pneg %p101
        $region62: #{tpu_custom_call.1} parent=55 // pred_check_branch
          %415 = sbr.rel (%p413) target = $region64
        $region63: #{tpu_custom_call.1} parent=55 // pred_region
          %416 = dma.done %s409, 8192
        $region64: #{tpu_custom_call.1} parent=55 // pred_fallthru
          _
        // Predicated region
        $region65: #{tpu_custom_call.1} parent=55 // pred_check
          %p417 = pneg %p122
        $region66: #{tpu_custom_call.1} parent=55 // pred_check_branch
          %419 = sbr.rel (%p417) target = $region68
        $region67: #{tpu_custom_call.1} parent=55 // pred_region
          %420 = dma.done [#allocation11], 1024
        $region68: #{tpu_custom_call.1} parent=55 // pred_fallthru
          _
        // Predicated region
        $region69: #{tpu_custom_call.1} parent=55 // pred_check
          %p421 = pneg %p164
        $region70: #{tpu_custom_call.1} parent=55 // pred_check_branch
          %423 = sbr.rel (%p421) target = $region72
        $region71: #{tpu_custom_call.1} parent=55 // pred_region
          %424 = dma.done [#allocation14], 1024
        $region72: #{tpu_custom_call.1} parent=55 // pred_fallthru
          _
        // Predicated region
        $region73: #{tpu_custom_call.1} parent=55 // pred_check
          %p425 = pneg %p206
        $region74: #{tpu_custom_call.1} parent=55 // pred_check_branch
          %427 = sbr.rel (%p425) target = $region76
        $region75: #{tpu_custom_call.1} parent=55 // pred_region
          %428 = dma.done [#allocation14], 1024
        $region76: #{tpu_custom_call.1} parent=55 // pred_fallthru
          _
        %s429 = sand.u32 %s60, 1
        %s430 = scalar_lea.sflag [#allocation8], %s429
        %s431 = sand.u32 %s60, 1
        %s432 = smul.addr %s431, 256
        %s433 = scalar_lea.vmem [#allocation7], %s432
        %p434 = pneg %p73
        %p435 = pneg %p70
        %s436 = sand.u32 %s31, 1
        %s437 = scalar_lea.sflag [#allocation11], %s436
        %s438 = sand.u32 %s88, 1
        %s439 = smul.addr %s438, 512
        %s440 = scalar_lea.vmem [#allocation10], %s439
        %p441 = pneg %p101
        %p442 = pneg %p98
        %p443 = pneg %p122
        %p444 = pneg %p119
        %p445 = pneg %p143
        %p446 = pneg %p140
        %p447 = pneg %p164
        %p448 = pneg %p161
        %p449 = pneg %p185
        %p450 = pneg %p182
        %p451 = pneg %p206
        %p452 = pneg %p203
        %p453 = pneg %p227
        %p454 = pneg %p224
        %p455 = pneg %p248
        %p456 = pneg %p245
        %p457 = pneg %p276
        %p458 = pneg %p273
        %s459 = sand.u32 %s263, 1
        %s460 = scalar_lea.sflag [#allocation9], %s459
        %s461 = sand.u32 %s263, 1
        %s462 = smul.addr %s461, 256
        %s463 = scalar_lea.vmem [#allocation16], %s462
        %s464 = smul.u32 32, %s37
        %s465 = smul.u32 64, %s38
        %s466 = smul.u32 32, %s37
        %p468 = scmp.eq.s32.totalorder %s38, 0
        // Predicated region
        $region77: #{tpu_custom_call.1} parent=55 // pred_check
          %p469 = pneg %p468
        $region78: #{tpu_custom_call.1} parent=55 // pred_check_branch
          %471 = sbr.rel (%p469) target = $region80
        $region79: #{tpu_custom_call.1} parent=55 // pred_region
          %v472 = vld [vmem:[%s403] sm:$0xff]
          %v473 = vld [vmem:[%s403 + $0x8] sm:$0xff]
          %v474 = vld [vmem:[%s403 + $0x10] sm:$0xff]
          %v475 = vld [vmem:[%s403 + $0x18] sm:$0xff]
          %v476 = vld [vmem:[%s403 + $0x20] sm:$0xff]
          %v477 = vld [vmem:[%s403 + $0x28] sm:$0xff]
          %v478 = vld [vmem:[%s403 + $0x30] sm:$0xff]
          %v479 = vld [vmem:[%s403 + $0x38] sm:$0xff]
          %v480 = vld [vmem:[%s403 + $0x40] sm:$0xff]
          %v481 = vld [vmem:[%s403 + $0x48] sm:$0xff]
          %v482 = vld [vmem:[%s403 + $0x50] sm:$0xff]
          %v483 = vld [vmem:[%s403 + $0x58] sm:$0xff]
          %v484 = vld [vmem:[%s403 + $0x60] sm:$0xff]
          %v485 = vld [vmem:[%s403 + $0x68] sm:$0xff]
          %v486 = vld [vmem:[%s403 + $0x70] sm:$0xff]
          %v487 = vld [vmem:[%s403 + $0x78] sm:$0xff]
          %v488 = vld [vmem:[%s403 + $0x80] sm:$0xff]
          %v489 = vld [vmem:[%s403 + $0x88] sm:$0xff]
          %v490 = vld [vmem:[%s403 + $0x90] sm:$0xff]
          %v491 = vld [vmem:[%s403 + $0x98] sm:$0xff]
          %v492 = vld [vmem:[%s403 + $0xa0] sm:$0xff]
          %v493 = vld [vmem:[%s403 + $0xa8] sm:$0xff]
          %v494 = vld [vmem:[%s403 + $0xb0] sm:$0xff]
          %v495 = vld [vmem:[%s403 + $0xb8] sm:$0xff]
          %v496 = vld [vmem:[%s403 + $0xc0] sm:$0xff]
          %v497 = vld [vmem:[%s403 + $0xc8] sm:$0xff]
          %v498 = vld [vmem:[%s403 + $0xd0] sm:$0xff]
          %v499 = vld [vmem:[%s403 + $0xd8] sm:$0xff]
          %v500 = vld [vmem:[%s403 + $0xe0] sm:$0xff]
          %v501 = vld [vmem:[%s403 + $0xe8] sm:$0xff]
          %v502 = vld [vmem:[%s403 + $0xf0] sm:$0xff]
          %v503 = vld [vmem:[%s403 + $0xf8] sm:$0xff]
          %v504 = vpack.c.bf16 %v473, %v472
          %v505 = vpack.c.bf16 %v475, %v474
          %v506 = vpack.c.bf16 %v477, %v476
          %v507 = vpack.c.bf16 %v479, %v478
          %v508 = vpack.c.bf16 %v481, %v480
          %v509 = vpack.c.bf16 %v483, %v482
          %v510 = vpack.c.bf16 %v485, %v484
          %v511 = vpack.c.bf16 %v487, %v486
          %v512 = vpack.c.bf16 %v489, %v488
          %v513 = vpack.c.bf16 %v491, %v490
          %v514 = vpack.c.bf16 %v493, %v492
          %v515 = vpack.c.bf16 %v495, %v494
          %v516 = vpack.c.bf16 %v497, %v496
          %v517 = vpack.c.bf16 %v499, %v498
          %v518 = vpack.c.bf16 %v501, %v500
          %v519 = vpack.c.bf16 %v503, %v502
          %v520 = vld [vmem:[#allocation12] sm:$0xf]
          %v521 = vld [vmem:[#allocation12 + $0x4] sm:$0xf]
          %v522 = vld [vmem:[#allocation12 + $0x8] sm:$0xf]
          %v523 = vld [vmem:[#allocation12 + $0xc] sm:$0xf]
          %v524 = vld [vmem:[#allocation12 + $0x10] sm:$0xf]
          %v525 = vld [vmem:[#allocation12 + $0x14] sm:$0xf]
          %v526 = vld [vmem:[#allocation12 + $0x18] sm:$0xf]
          %v527 = vld [vmem:[#allocation12 + $0x1c] sm:$0xf]
          %v528 = vld [vmem:[#allocation12 + $0x20] sm:$0xf]
          %v529 = vld [vmem:[#allocation12 + $0x24] sm:$0xf]
          %v530 = vld [vmem:[#allocation12 + $0x28] sm:$0xf]
          %v531 = vld [vmem:[#allocation12 + $0x2c] sm:$0xf]
          %v532 = vld [vmem:[#allocation12 + $0x30] sm:$0xf]
          %v533 = vld [vmem:[#allocation12 + $0x34] sm:$0xf]
          %v534 = vld [vmem:[#allocation12 + $0x38] sm:$0xf]
          %v535 = vld [vmem:[#allocation12 + $0x3c] sm:$0xf]
          %v536 = vld [vmem:[%s3] sm:$0x1]
          %v538 = vlaneseq
          %v539 = vshrl.u32 %v538, 7
          %v540 = vsub.s32 0, %v539
          %v541 = vrot.slane %v536, %v540
          %v559 = vunpack.c.l.b16 %v520
          %v560 = vunpack.c.l.b16 %v521
          %v561 = vunpack.c.l.b16 %v522
          %v562 = vunpack.c.l.b16 %v523
          %v563 = vunpack.c.l.b16 %v524
          %v564 = vunpack.c.l.b16 %v525
          %v565 = vunpack.c.l.b16 %v526
          %v566 = vunpack.c.l.b16 %v527
          %v567 = vunpack.c.l.b16 %v528
          %v568 = vunpack.c.l.b16 %v529
          %v569 = vunpack.c.l.b16 %v530
          %v570 = vunpack.c.l.b16 %v531
          %v571 = vunpack.c.l.b16 %v532
          %v572 = vunpack.c.l.b16 %v533
          %v573 = vunpack.c.l.b16 %v534
          %v574 = vunpack.c.l.b16 %v535
          %v575 = vpack.c.b16 %v560, %v559
          %v576 = vpack.c.b16 %v562, %v561
          %v577 = vpack.c.b16 %v564, %v563
          %v578 = vpack.c.b16 %v566, %v565
          %v579 = vpack.c.b16 %v568, %v567
          %v580 = vpack.c.b16 %v570, %v569
          %v581 = vpack.c.b16 %v572, %v571
          %v582 = vpack.c.b16 %v574, %v573
          %591 = vmatprep.subr.bf16.mxu0 0
          %592 = vmatpush1.bf16.msra.mxu0 %v575
          %593 = vmatprep.subr.bf16.mxu0 0
          %594 = vmatpush1.bf16.msra.mxu0 %v576
          %595 = vmatprep.subr.bf16.mxu0 0
          %596 = vmatpush1.bf16.msra.mxu0 %v577
          %597 = vmatprep.subr.bf16.mxu0 0
          %598 = vmatpush1.bf16.msra.mxu0 %v578
          %599 = vmatprep.subr.bf16.mxu0 0
          %600 = vmatpush1.bf16.msra.mxu0 %v579
          %601 = vmatprep.subr.bf16.mxu0 0
          %602 = vmatpush1.bf16.msra.mxu0 %v580
          %603 = vmatprep.subr.bf16.mxu0 0
          %604 = vmatpush1.bf16.msra.mxu0 %v581
          %605 = vmatprep.subr.bf16.mxu0 0
          %606 = vmatpush1.bf16.msra.mxu0 %v582
          %607 = vmatprep.subr.bf16.mxu0 0
          %608 = vmatpush1.bf16.msra.mxu0 0
          %609 = vmatprep.subr.bf16.mxu0 0
          %610 = vmatpush1.bf16.msra.mxu0 0
          %611 = vmatprep.subr.bf16.mxu0 0
          %612 = vmatpush1.bf16.msra.mxu0 0
          %613 = vmatprep.subr.bf16.mxu0 0
          %614 = vmatpush1.bf16.msra.mxu0 0
          %615 = vmatprep.subr.bf16.mxu0 0
          %616 = vmatpush1.bf16.msra.mxu0 0
          %617 = vmatprep.subr.bf16.mxu0 0
          %618 = vmatpush1.bf16.msra.mxu0 0
          %619 = vmatprep.subr.bf16.mxu0 0
          %620 = vmatpush1.bf16.msra.mxu0 0
          %621 = vmatprep.subr.bf16.mxu0 0
          %622 = vmatpush1.bf16.msra.mxu0 0
          %623 = vmatprep.mubr.bf16.mxu0 0
          %624 = vmatmul.mubr.bf16.gmra.mrb[0].mxu0 %v504
          %v625 = vpop.f32.mrb[0].mxu0
          %v626 = vadd.f32 %v541, %v625
          %v627 = vpop.f32.mrb[0].mxu0
          %v628 = vpop.f32.mrb[0].mxu0
          %v629 = vadd.f32 %v541, %v628
          %v630 = vpop.f32.mrb[0].mxu0
          %631 = vmatprep.mubr.bf16.mxu0 0
          %632 = vmatmul.mubr.bf16.gmra.mrb[0].mxu0 %v505
          %v633 = vpop.f32.mrb[0].mxu0
          %v634 = vadd.f32 %v541, %v633
          %v635 = vpop.f32.mrb[0].mxu0
          %v636 = vpop.f32.mrb[0].mxu0
          %v637 = vadd.f32 %v541, %v636
          %v638 = vpop.f32.mrb[0].mxu0
          %639 = vmatprep.mubr.bf16.mxu0 0
          %640 = vmatmul.mubr.bf16.gmra.mrb[0].mxu0 %v506
          %v641 = vpop.f32.mrb[0].mxu0
          %v642 = vadd.f32 %v541, %v641
          %v643 = vpop.f32.mrb[0].mxu0
          %v644 = vpop.f32.mrb[0].mxu0
          %v645 = vadd.f32 %v541, %v644
          %v646 = vpop.f32.mrb[0].mxu0
          %647 = vmatprep.mubr.bf16.mxu0 0
          %648 = vmatmul.mubr.bf16.gmra.mrb[0].mxu0 %v507
          %v649 = vpop.f32.mrb[0].mxu0
          %v650 = vadd.f32 %v541, %v649
          %v651 = vpop.f32.mrb[0].mxu0
          %v652 = vpop.f32.mrb[0].mxu0
          %v653 = vadd.f32 %v541, %v652
          %v654 = vpop.f32.mrb[0].mxu0
          %655 = vmatprep.mubr.bf16.mxu0 0
          %656 = vmatmul.mubr.bf16.gmra.mrb[0].mxu0 %v508
          %v657 = vpop.f32.mrb[0].mxu0
          %v658 = vadd.f32 %v541, %v657
          %v659 = vpop.f32.mrb[0].mxu0
          %v660 = vpop.f32.mrb[0].mxu0
          %v661 = vadd.f32 %v541, %v660
          %v662 = vpop.f32.mrb[0].mxu0
          %663 = vmatprep.mubr.bf16.mxu0 0
          %664 = vmatmul.mubr.bf16.gmra.mrb[0].mxu0 %v509
          %v665 = vpop.f32.mrb[0].mxu0
          %v666 = vadd.f32 %v541, %v665
          %v667 = vpop.f32.mrb[0].mxu0
          %v668 = vpop.f32.mrb[0].mxu0
          %v669 = vadd.f32 %v541, %v668
          %v670 = vpop.f32.mrb[0].mxu0
          %671 = vmatprep.mubr.bf16.mxu0 0
          %672 = vmatmul.mubr.bf16.gmra.mrb[0].mxu0 %v510
          %v673 = vpop.f32.mrb[0].mxu0
          %v674 = vadd.f32 %v541, %v673
          %v675 = vpop.f32.mrb[0].mxu0
          %v676 = vpop.f32.mrb[0].mxu0
          %v677 = vadd.f32 %v541, %v676
          %v678 = vpop.f32.mrb[0].mxu0
          %679 = vmatprep.mubr.bf16.mxu0 0
          %680 = vmatmul.mubr.bf16.gmra.mrb[0].mxu0 %v511
          %v681 = vpop.f32.mrb[0].mxu0
          %v682 = vadd.f32 %v541, %v681
          %v683 = vpop.f32.mrb[0].mxu0
          %v684 = vpop.f32.mrb[0].mxu0
          %v685 = vadd.f32 %v541, %v684
          %v686 = vpop.f32.mrb[0].mxu0
          %687 = vmatprep.mubr.bf16.mxu0 0
          %688 = vmatmul.mubr.bf16.gmra.mrb[0].mxu0 %v512
          %v689 = vpop.f32.mrb[0].mxu0
          %v690 = vadd.f32 %v541, %v689
          %v691 = vpop.f32.mrb[0].mxu0
          %v692 = vpop.f32.mrb[0].mxu0
          %v693 = vadd.f32 %v541, %v692
          %v694 = vpop.f32.mrb[0].mxu0
          %695 = vmatprep.mubr.bf16.mxu0 0
          %696 = vmatmul.mubr.bf16.gmra.mrb[0].mxu0 %v513
          %v697 = vpop.f32.mrb[0].mxu0
          %v698 = vadd.f32 %v541, %v697
          %v699 = vpop.f32.mrb[0].mxu0
          %v700 = vpop.f32.mrb[0].mxu0
          %v701 = vadd.f32 %v541, %v700
          %v702 = vpop.f32.mrb[0].mxu0
          %703 = vmatprep.mubr.bf16.mxu0 0
          %704 = vmatmul.mubr.bf16.gmra.mrb[0].mxu0 %v514
          %v705 = vpop.f32.mrb[0].mxu0
          %v706 = vadd.f32 %v541, %v705
          %v707 = vpop.f32.mrb[0].mxu0
          %v708 = vpop.f32.mrb[0].mxu0
          %v709 = vadd.f32 %v541, %v708
          %v710 = vpop.f32.mrb[0].mxu0
          %711 = vmatprep.mubr.bf16.mxu0 0
          %712 = vmatmul.mubr.bf16.gmra.mrb[0].mxu0 %v515
          %v713 = vpop.f32.mrb[0].mxu0
          %v714 = vadd.f32 %v541, %v713
          %v715 = vpop.f32.mrb[0].mxu0
          %v716 = vpop.f32.mrb[0].mxu0
          %v717 = vadd.f32 %v541, %v716
          %v718 = vpop.f32.mrb[0].mxu0
          %719 = vmatprep.mubr.bf16.mxu0 0
          %720 = vmatmul.mubr.bf16.gmra.mrb[0].mxu0 %v516
          %v721 = vpop.f32.mrb[0].mxu0
          %v722 = vadd.f32 %v541, %v721
          %v723 = vpop.f32.mrb[0].mxu0
          %v724 = vpop.f32.mrb[0].mxu0
          %v725 = vadd.f32 %v541, %v724
          %v726 = vpop.f32.mrb[0].mxu0
          %727 = vmatprep.mubr.bf16.mxu0 0
          %728 = vmatmul.mubr.bf16.gmra.mrb[0].mxu0 %v517
          %v729 = vpop.f32.mrb[0].mxu0
          %v730 = vadd.f32 %v541, %v729
          %v731 = vpop.f32.mrb[0].mxu0
          %v732 = vpop.f32.mrb[0].mxu0
          %v733 = vadd.f32 %v541, %v732
          %v734 = vpop.f32.mrb[0].mxu0
          %735 = vmatprep.mubr.bf16.mxu0 0
          %736 = vmatmul.mubr.bf16.gmra.mrb[0].mxu0 %v518
          %v737 = vpop.f32.mrb[0].mxu0
          %v738 = vadd.f32 %v541, %v737
          %v739 = vpop.f32.mrb[0].mxu0
          %v740 = vpop.f32.mrb[0].mxu0
          %v741 = vadd.f32 %v541, %v740
          %v742 = vpop.f32.mrb[0].mxu0
          %743 = vmatprep.mubr.bf16.mxu0 0
          %744 = vmatmul.mubr.bf16.gmra.mrb[0].mxu0 %v519
          %v745 = vpop.f32.mrb[0].mxu0
          %v746 = vadd.f32 %v541, %v745
          %v747 = vpop.f32.mrb[0].mxu0
          %v748 = vpop.f32.mrb[0].mxu0
          %v749 = vadd.f32 %v541, %v748
          %v750 = vpop.f32.mrb[0].mxu0
          %751 = vdwg.mxu0
          %752 = vst [vmem:[#allocation2] sm:$0xff] %v626
          %753 = vst [vmem:[#allocation2 + $0x8] sm:$0xff] %v629
          %754 = vst [vmem:[#allocation2 + $0x10] sm:$0xff] %v634
          %755 = vst [vmem:[#allocation2 + $0x18] sm:$0xff] %v637
          %756 = vst [vmem:[#allocation2 + $0x20] sm:$0xff] %v642
          %757 = vst [vmem:[#allocation2 + $0x28] sm:$0xff] %v645
          %758 = vst [vmem:[#allocation2 + $0x30] sm:$0xff] %v650
          %759 = vst [vmem:[#allocation2 + $0x38] sm:$0xff] %v653
          %760 = vst [vmem:[#allocation2 + $0x40] sm:$0xff] %v658
          %761 = vst [vmem:[#allocation2 + $0x48] sm:$0xff] %v661
          %762 = vst [vmem:[#allocation2 + $0x50] sm:$0xff] %v666
          %763 = vst [vmem:[#allocation2 + $0x58] sm:$0xff] %v669
          %764 = vst [vmem:[#allocation2 + $0x60] sm:$0xff] %v674
          %765 = vst [vmem:[#allocation2 + $0x68] sm:$0xff] %v677
          %766 = vst [vmem:[#allocation2 + $0x70] sm:$0xff] %v682
          %767 = vst [vmem:[#allocation2 + $0x78] sm:$0xff] %v685
          %768 = vst [vmem:[#allocation2 + $0x80] sm:$0xff] %v690
          %769 = vst [vmem:[#allocation2 + $0x88] sm:$0xff] %v693
          %770 = vst [vmem:[#allocation2 + $0x90] sm:$0xff] %v698
          %771 = vst [vmem:[#allocation2 + $0x98] sm:$0xff] %v701
          %772 = vst [vmem:[#allocation2 + $0xa0] sm:$0xff] %v706
          %773 = vst [vmem:[#allocation2 + $0xa8] sm:$0xff] %v709
          %774 = vst [vmem:[#allocation2 + $0xb0] sm:$0xff] %v714
          %775 = vst [vmem:[#allocation2 + $0xb8] sm:$0xff] %v717
          %776 = vst [vmem:[#allocation2 + $0xc0] sm:$0xff] %v722
          %777 = vst [vmem:[#allocation2 + $0xc8] sm:$0xff] %v725
          %778 = vst [vmem:[#allocation2 + $0xd0] sm:$0xff] %v730
          %779 = vst [vmem:[#allocation2 + $0xd8] sm:$0xff] %v733
          %780 = vst [vmem:[#allocation2 + $0xe0] sm:$0xff] %v738
          %781 = vst [vmem:[#allocation2 + $0xe8] sm:$0xff] %v741
          %782 = vst [vmem:[#allocation2 + $0xf0] sm:$0xff] %v746
          %783 = vst [vmem:[#allocation2 + $0xf8] sm:$0xff] %v749
          %vm784 = vcmask 7168
          %785 = vst.msk [vmem:[#allocation3] sm:$0xff] %vm784, -inf
          %786 = vst.msk [vmem:[#allocation3 + $0x8] sm:$0xff] %vm784, -inf
          %787 = vst.msk [vmem:[#allocation3 + $0x10] sm:$0xff] %vm784, -inf
          %788 = vst.msk [vmem:[#allocation3 + $0x18] sm:$0xff] %vm784, -inf
          %789 = vst.msk [vmem:[#allocation3 + $0x20] sm:$0xff] %vm784, -inf
          %790 = vst.msk [vmem:[#allocation3 + $0x28] sm:$0xff] %vm784, -inf
          %791 = vst.msk [vmem:[#allocation3 + $0x30] sm:$0xff] %vm784, -inf
          %792 = vst.msk [vmem:[#allocation3 + $0x38] sm:$0xff] %vm784, -inf
          %793 = vst.msk [vmem:[#allocation3 + $0x40] sm:$0xff] %vm784, -inf
          %794 = vst.msk [vmem:[#allocation3 + $0x48] sm:$0xff] %vm784, -inf
          %795 = vst.msk [vmem:[#allocation3 + $0x50] sm:$0xff] %vm784, -inf
          %796 = vst.msk [vmem:[#allocation3 + $0x58] sm:$0xff] %vm784, -inf
          %797 = vst.msk [vmem:[#allocation3 + $0x60] sm:$0xff] %vm784, -inf
          %798 = vst.msk [vmem:[#allocation3 + $0x68] sm:$0xff] %vm784, -inf
          %799 = vst.msk [vmem:[#allocation3 + $0x70] sm:$0xff] %vm784, -inf
          %800 = vst.msk [vmem:[#allocation3 + $0x78] sm:$0xff] %vm784, -inf
          %801 = vst.msk [vmem:[#allocation3 + $0x80] sm:$0xff] %vm784, -inf
          %802 = vst.msk [vmem:[#allocation3 + $0x88] sm:$0xff] %vm784, -inf
          %803 = vst.msk [vmem:[#allocation3 + $0x90] sm:$0xff] %vm784, -inf
          %804 = vst.msk [vmem:[#allocation3 + $0x98] sm:$0xff] %vm784, -inf
          %805 = vst.msk [vmem:[#allocation3 + $0xa0] sm:$0xff] %vm784, -inf
          %806 = vst.msk [vmem:[#allocation3 + $0xa8] sm:$0xff] %vm784, -inf
          %807 = vst.msk [vmem:[#allocation3 + $0xb0] sm:$0xff] %vm784, -inf
          %808 = vst.msk [vmem:[#allocation3 + $0xb8] sm:$0xff] %vm784, -inf
          %809 = vst.msk [vmem:[#allocation3 + $0xc0] sm:$0xff] %vm784, -inf
          %810 = vst.msk [vmem:[#allocation3 + $0xc8] sm:$0xff] %vm784, -inf
          %811 = vst.msk [vmem:[#allocation3 + $0xd0] sm:$0xff] %vm784, -inf
          %812 = vst.msk [vmem:[#allocation3 + $0xd8] sm:$0xff] %vm784, -inf
          %813 = vst.msk [vmem:[#allocation3 + $0xe0] sm:$0xff] %vm784, -inf
          %814 = vst.msk [vmem:[#allocation3 + $0xe8] sm:$0xff] %vm784, -inf
          %815 = vst.msk [vmem:[#allocation3 + $0xf0] sm:$0xff] %vm784, -inf
          %816 = vst.msk [vmem:[#allocation3 + $0xf8] sm:$0xff] %vm784, -inf
          %817 = vst.msk [vmem:[#allocation4] sm:$0xff] %vm784, 0.0
          %818 = vst.msk [vmem:[#allocation4 + $0x8] sm:$0xff] %vm784, 0.0
          %819 = vst.msk [vmem:[#allocation4 + $0x10] sm:$0xff] %vm784, 0.0
          %820 = vst.msk [vmem:[#allocation4 + $0x18] sm:$0xff] %vm784, 0.0
          %821 = vst.msk [vmem:[#allocation4 + $0x20] sm:$0xff] %vm784, 0.0
          %822 = vst.msk [vmem:[#allocation4 + $0x28] sm:$0xff] %vm784, 0.0
          %823 = vst.msk [vmem:[#allocation4 + $0x30] sm:$0xff] %vm784, 0.0
          %824 = vst.msk [vmem:[#allocation4 + $0x38] sm:$0xff] %vm784, 0.0
          %825 = vst.msk [vmem:[#allocation4 + $0x40] sm:$0xff] %vm784, 0.0
          %826 = vst.msk [vmem:[#allocation4 + $0x48] sm:$0xff] %vm784, 0.0
          %827 = vst.msk [vmem:[#allocation4 + $0x50] sm:$0xff] %vm784, 0.0
          %828 = vst.msk [vmem:[#allocation4 + $0x58] sm:$0xff] %vm784, 0.0
          %829 = vst.msk [vmem:[#allocation4 + $0x60] sm:$0xff] %vm784, 0.0
          %830 = vst.msk [vmem:[#allocation4 + $0x68] sm:$0xff] %vm784, 0.0
          %831 = vst.msk [vmem:[#allocation4 + $0x70] sm:$0xff] %vm784, 0.0
          %832 = vst.msk [vmem:[#allocation4 + $0x78] sm:$0xff] %vm784, 0.0
          %833 = vst.msk [vmem:[#allocation4 + $0x80] sm:$0xff] %vm784, 0.0
          %834 = vst.msk [vmem:[#allocation4 + $0x88] sm:$0xff] %vm784, 0.0
          %835 = vst.msk [vmem:[#allocation4 + $0x90] sm:$0xff] %vm784, 0.0
          %836 = vst.msk [vmem:[#allocation4 + $0x98] sm:$0xff] %vm784, 0.0
          %837 = vst.msk [vmem:[#allocation4 + $0xa0] sm:$0xff] %vm784, 0.0
          %838 = vst.msk [vmem:[#allocation4 + $0xa8] sm:$0xff] %vm784, 0.0
          %839 = vst.msk [vmem:[#allocation4 + $0xb0] sm:$0xff] %vm784, 0.0
          %840 = vst.msk [vmem:[#allocation4 + $0xb8] sm:$0xff] %vm784, 0.0
          %841 = vst.msk [vmem:[#allocation4 + $0xc0] sm:$0xff] %vm784, 0.0
          %842 = vst.msk [vmem:[#allocation4 + $0xc8] sm:$0xff] %vm784, 0.0
          %843 = vst.msk [vmem:[#allocation4 + $0xd0] sm:$0xff] %vm784, 0.0
          %844 = vst.msk [vmem:[#allocation4 + $0xd8] sm:$0xff] %vm784, 0.0
          %845 = vst.msk [vmem:[#allocation4 + $0xe0] sm:$0xff] %vm784, 0.0
          %846 = vst.msk [vmem:[#allocation4 + $0xe8] sm:$0xff] %vm784, 0.0
          %847 = vst.msk [vmem:[#allocation4 + $0xf0] sm:$0xff] %vm784, 0.0
          %848 = vst.msk [vmem:[#allocation4 + $0xf8] sm:$0xff] %vm784, 0.0
          %849 = vst [vmem:[#allocation5] sm:$0xff] 0.0
          %850 = vst [vmem:[#allocation5 + $0x8] sm:$0xff] 0.0
          %851 = vst [vmem:[#allocation5 + $0x10] sm:$0xff] 0.0
          %852 = vst [vmem:[#allocation5 + $0x18] sm:$0xff] 0.0
          %853 = vst [vmem:[#allocation5 + $0x20] sm:$0xff] 0.0
          %854 = vst [vmem:[#allocation5 + $0x28] sm:$0xff] 0.0
          %855 = vst [vmem:[#allocation5 + $0x30] sm:$0xff] 0.0
          %856 = vst [vmem:[#allocation5 + $0x38] sm:$0xff] 0.0
          %857 = vst [vmem:[#allocation5 + $0x40] sm:$0xff] 0.0
          %858 = vst [vmem:[#allocation5 + $0x48] sm:$0xff] 0.0
          %859 = vst [vmem:[#allocation5 + $0x50] sm:$0xff] 0.0
          %860 = vst [vmem:[#allocation5 + $0x58] sm:$0xff] 0.0
          %861 = vst [vmem:[#allocation5 + $0x60] sm:$0xff] 0.0
          %862 = vst [vmem:[#allocation5 + $0x68] sm:$0xff] 0.0
          %863 = vst [vmem:[#allocation5 + $0x70] sm:$0xff] 0.0
          %864 = vst [vmem:[#allocation5 + $0x78] sm:$0xff] 0.0
          %865 = vst [vmem:[#allocation5 + $0x80] sm:$0xff] 0.0
          %866 = vst [vmem:[#allocation5 + $0x88] sm:$0xff] 0.0
          %867 = vst [vmem:[#allocation5 + $0x90] sm:$0xff] 0.0
          %868 = vst [vmem:[#allocation5 + $0x98] sm:$0xff] 0.0
          %869 = vst [vmem:[#allocation5 + $0xa0] sm:$0xff] 0.0
          %870 = vst [vmem:[#allocation5 + $0xa8] sm:$0xff] 0.0
          %871 = vst [vmem:[#allocation5 + $0xb0] sm:$0xff] 0.0
          %872 = vst [vmem:[#allocation5 + $0xb8] sm:$0xff] 0.0
          %873 = vst [vmem:[#allocation5 + $0xc0] sm:$0xff] 0.0
          %874 = vst [vmem:[#allocation5 + $0xc8] sm:$0xff] 0.0
          %875 = vst [vmem:[#allocation5 + $0xd0] sm:$0xff] 0.0
          %876 = vst [vmem:[#allocation5 + $0xd8] sm:$0xff] 0.0
          %877 = vst [vmem:[#allocation5 + $0xe0] sm:$0xff] 0.0
          %878 = vst [vmem:[#allocation5 + $0xe8] sm:$0xff] 0.0
          %879 = vst [vmem:[#allocation5 + $0xf0] sm:$0xff] 0.0
          %880 = vst [vmem:[#allocation5 + $0xf8] sm:$0xff] 0.0
        $region80: #{tpu_custom_call.1} parent=55 // pred_fallthru
          _
        %v881 = vld [vmem:[%s412] sm:$0xff]
        %v882 = vld [vmem:[%s412 + $0x8] sm:$0xff]
        %v883 = vld [vmem:[%s412 + $0x10] sm:$0xff]
        %v884 = vld [vmem:[%s412 + $0x18] sm:$0xff]
        %v885 = vld [vmem:[%s412 + $0x20] sm:$0xff]
        %v886 = vld [vmem:[%s412 + $0x28] sm:$0xff]
        %v887 = vld [vmem:[%s412 + $0x30] sm:$0xff]
        %v888 = vld [vmem:[%s412 + $0x38] sm:$0xff]
        %v889 = vld [vmem:[%s412 + $0x40] sm:$0xff]
        %v890 = vld [vmem:[%s412 + $0x48] sm:$0xff]
        %v891 = vld [vmem:[%s412 + $0x50] sm:$0xff]
        %v892 = vld [vmem:[%s412 + $0x58] sm:$0xff]
        %v893 = vld [vmem:[%s412 + $0x60] sm:$0xff]
        %v894 = vld [vmem:[%s412 + $0x68] sm:$0xff]
        %v895 = vld [vmem:[%s412 + $0x70] sm:$0xff]
        %v896 = vld [vmem:[%s412 + $0x78] sm:$0xff]
        %v897 = vld [vmem:[%s412 + $0x80] sm:$0xff]
        %v898 = vld [vmem:[%s412 + $0x88] sm:$0xff]
        %v899 = vld [vmem:[%s412 + $0x90] sm:$0xff]
        %v900 = vld [vmem:[%s412 + $0x98] sm:$0xff]
        %v901 = vld [vmem:[%s412 + $0xa0] sm:$0xff]
        %v902 = vld [vmem:[%s412 + $0xa8] sm:$0xff]
        %v903 = vld [vmem:[%s412 + $0xb0] sm:$0xff]
        %v904 = vld [vmem:[%s412 + $0xb8] sm:$0xff]
        %v905 = vld [vmem:[%s412 + $0xc0] sm:$0xff]
        %v906 = vld [vmem:[%s412 + $0xc8] sm:$0xff]
        %v907 = vld [vmem:[%s412 + $0xd0] sm:$0xff]
        %v908 = vld [vmem:[%s412 + $0xd8] sm:$0xff]
        %v909 = vld [vmem:[%s412 + $0xe0] sm:$0xff]
        %v910 = vld [vmem:[%s412 + $0xe8] sm:$0xff]
        %v911 = vld [vmem:[%s412 + $0xf0] sm:$0xff]
        %v912 = vld [vmem:[%s412 + $0xf8] sm:$0xff]
        %v913 = vld [vmem:[%s412 + $0x100] sm:$0xff]
        %v914 = vld [vmem:[%s412 + $0x108] sm:$0xff]
        %v915 = vld [vmem:[%s412 + $0x110] sm:$0xff]
        %v916 = vld [vmem:[%s412 + $0x118] sm:$0xff]
        %v917 = vld [vmem:[%s412 + $0x120] sm:$0xff]
        %v918 = vld [vmem:[%s412 + $0x128] sm:$0xff]
        %v919 = vld [vmem:[%s412 + $0x130] sm:$0xff]
        %v920 = vld [vmem:[%s412 + $0x138] sm:$0xff]
        %v921 = vld [vmem:[%s412 + $0x140] sm:$0xff]
        %v922 = vld [vmem:[%s412 + $0x148] sm:$0xff]
        %v923 = vld [vmem:[%s412 + $0x150] sm:$0xff]
        %v924 = vld [vmem:[%s412 + $0x158] sm:$0xff]
        %v925 = vld [vmem:[%s412 + $0x160] sm:$0xff]
        %v926 = vld [vmem:[%s412 + $0x168] sm:$0xff]
        %v927 = vld [vmem:[%s412 + $0x170] sm:$0xff]
        %v928 = vld [vmem:[%s412 + $0x178] sm:$0xff]
        %v929 = vld [vmem:[%s412 + $0x180] sm:$0xff]
        %v930 = vld [vmem:[%s412 + $0x188] sm:$0xff]
        %v931 = vld [vmem:[%s412 + $0x190] sm:$0xff]
        %v932 = vld [vmem:[%s412 + $0x198] sm:$0xff]
        %v933 = vld [vmem:[%s412 + $0x1a0] sm:$0xff]
        %v934 = vld [vmem:[%s412 + $0x1a8] sm:$0xff]
        %v935 = vld [vmem:[%s412 + $0x1b0] sm:$0xff]
        %v936 = vld [vmem:[%s412 + $0x1b8] sm:$0xff]
        %v937 = vld [vmem:[%s412 + $0x1c0] sm:$0xff]
        %v938 = vld [vmem:[%s412 + $0x1c8] sm:$0xff]
        %v939 = vld [vmem:[%s412 + $0x1d0] sm:$0xff]
        %v940 = vld [vmem:[%s412 + $0x1d8] sm:$0xff]
        %v941 = vld [vmem:[%s412 + $0x1e0] sm:$0xff]
        %v942 = vld [vmem:[%s412 + $0x1e8] sm:$0xff]
        %v943 = vld [vmem:[%s412 + $0x1f0] sm:$0xff]
        %v944 = vld [vmem:[%s412 + $0x1f8] sm:$0xff]
        %v945 = vpack.c.bf16 %v882, %v881
        %v946 = vpack.c.bf16 %v884, %v883
        %v947 = vpack.c.bf16 %v886, %v885
        %v948 = vpack.c.bf16 %v888, %v887
        %v949 = vpack.c.bf16 %v890, %v889
        %v950 = vpack.c.bf16 %v892, %v891
        %v951 = vpack.c.bf16 %v894, %v893
        %v952 = vpack.c.bf16 %v896, %v895
        %v953 = vpack.c.bf16 %v898, %v897
        %v954 = vpack.c.bf16 %v900, %v899
        %v955 = vpack.c.bf16 %v902, %v901
        %v956 = vpack.c.bf16 %v904, %v903
        %v957 = vpack.c.bf16 %v906, %v905
        %v958 = vpack.c.bf16 %v908, %v907
        %v959 = vpack.c.bf16 %v910, %v909
        %v960 = vpack.c.bf16 %v912, %v911
        %v961 = vpack.c.bf16 %v914, %v913
        %v962 = vpack.c.bf16 %v916, %v915
        %v963 = vpack.c.bf16 %v918, %v917
        %v964 = vpack.c.bf16 %v920, %v919
        %v965 = vpack.c.bf16 %v922, %v921
        %v966 = vpack.c.bf16 %v924, %v923
        %v967 = vpack.c.bf16 %v926, %v925
        %v968 = vpack.c.bf16 %v928, %v927
        %v969 = vpack.c.bf16 %v930, %v929
        %v970 = vpack.c.bf16 %v932, %v931
        %v971 = vpack.c.bf16 %v934, %v933
        %v972 = vpack.c.bf16 %v936, %v935
        %v973 = vpack.c.bf16 %v938, %v937
        %v974 = vpack.c.bf16 %v940, %v939
        %v975 = vpack.c.bf16 %v942, %v941
        %v976 = vpack.c.bf16 %v944, %v943
        %v977 = vld [vmem:[#allocation13] sm:$0xf]
        %v978 = vld [vmem:[#allocation13 + $0x4] sm:$0xf]
        %v979 = vld [vmem:[#allocation13 + $0x8] sm:$0xf]
        %v980 = vld [vmem:[#allocation13 + $0xc] sm:$0xf]
        %v981 = vld [vmem:[#allocation13 + $0x10] sm:$0xf]
        %v982 = vld [vmem:[#allocation13 + $0x14] sm:$0xf]
        %v983 = vld [vmem:[#allocation13 + $0x18] sm:$0xf]
        %v984 = vld [vmem:[#allocation13 + $0x1c] sm:$0xf]
        %v985 = vld [vmem:[#allocation13 + $0x20] sm:$0xf]
        %v986 = vld [vmem:[#allocation13 + $0x24] sm:$0xf]
        %v987 = vld [vmem:[#allocation13 + $0x28] sm:$0xf]
        %v988 = vld [vmem:[#allocation13 + $0x2c] sm:$0xf]
        %v989 = vld [vmem:[#allocation13 + $0x30] sm:$0xf]
        %v990 = vld [vmem:[#allocation13 + $0x34] sm:$0xf]
        %v991 = vld [vmem:[#allocation13 + $0x38] sm:$0xf]
        %v992 = vld [vmem:[#allocation13 + $0x3c] sm:$0xf]
        %v993 = vld [vmem:[%s5] sm:$0x1]
        %v995 = vlaneseq
        %v996 = vshrl.u32 %v995, 7
        %v997 = vsub.s32 0, %v996
        %v998 = vrot.slane %v993, %v997
        %v1016 = vunpack.c.l.b16 %v977
        %v1017 = vunpack.c.l.b16 %v978
        %v1018 = vunpack.c.l.b16 %v979
        %v1019 = vunpack.c.l.b16 %v980
        %v1020 = vunpack.c.l.b16 %v981
        %v1021 = vunpack.c.l.b16 %v982
        %v1022 = vunpack.c.l.b16 %v983
        %v1023 = vunpack.c.l.b16 %v984
        %v1024 = vunpack.c.l.b16 %v985
        %v1025 = vunpack.c.l.b16 %v986
        %v1026 = vunpack.c.l.b16 %v987
        %v1027 = vunpack.c.l.b16 %v988
        %v1028 = vunpack.c.l.b16 %v989
        %v1029 = vunpack.c.l.b16 %v990
        %v1030 = vunpack.c.l.b16 %v991
        %v1031 = vunpack.c.l.b16 %v992
        %v1032 = vpack.c.b16 %v1017, %v1016
        %v1033 = vpack.c.b16 %v1019, %v1018
        %v1034 = vpack.c.b16 %v1021, %v1020
        %v1035 = vpack.c.b16 %v1023, %v1022
        %v1036 = vpack.c.b16 %v1025, %v1024
        %v1037 = vpack.c.b16 %v1027, %v1026
        %v1038 = vpack.c.b16 %v1029, %v1028
        %v1039 = vpack.c.b16 %v1031, %v1030
        %1048 = vmatprep.subr.bf16.mxu0 0
        %1049 = vmatpush1.bf16.msra.mxu0 %v1032
        %1050 = vmatprep.subr.bf16.mxu0 0
        %1051 = vmatpush1.bf16.msra.mxu0 %v1033
        %1052 = vmatprep.subr.bf16.mxu0 0
        %1053 = vmatpush1.bf16.msra.mxu0 %v1034
        %1054 = vmatprep.subr.bf16.mxu0 0
        %1055 = vmatpush1.bf16.msra.mxu0 %v1035
        %1056 = vmatprep.subr.bf16.mxu0 0
        %1057 = vmatpush1.bf16.msra.mxu0 %v1036
        %1058 = vmatprep.subr.bf16.mxu0 0
        %1059 = vmatpush1.bf16.msra.mxu0 %v1037
        %1060 = vmatprep.subr.bf16.mxu0 0
        %1061 = vmatpush1.bf16.msra.mxu0 %v1038
        %1062 = vmatprep.subr.bf16.mxu0 0
        %1063 = vmatpush1.bf16.msra.mxu0 %v1039
        %1064 = vmatprep.subr.bf16.mxu0 0
        %1065 = vmatpush1.bf16.msra.mxu0 0
        %1066 = vmatprep.subr.bf16.mxu0 0
        %1067 = vmatpush1.bf16.msra.mxu0 0
        %1068 = vmatprep.subr.bf16.mxu0 0
        %1069 = vmatpush1.bf16.msra.mxu0 0
        %1070 = vmatprep.subr.bf16.mxu0 0
        %1071 = vmatpush1.bf16.msra.mxu0 0
        %1072 = vmatprep.subr.bf16.mxu0 0
        %1073 = vmatpush1.bf16.msra.mxu0 0
        %1074 = vmatprep.subr.bf16.mxu0 0
        %1075 = vmatpush1.bf16.msra.mxu0 0
        %1076 = vmatprep.subr.bf16.mxu0 0
        %1077 = vmatpush1.bf16.msra.mxu0 0
        %1078 = vmatprep.subr.bf16.mxu0 0
        %1079 = vmatpush1.bf16.msra.mxu0 0
        %1080 = vmatprep.mubr.bf16.mxu0 0
        %1081 = vmatmul.mubr.bf16.gmra.mrb[0].mxu0 %v945
        %v1082 = vpop.f32.mrb[0].mxu0
        %v1083 = vadd.f32 %v998, %v1082
        %v1084 = vpop.f32.mrb[0].mxu0
        %v1085 = vpop.f32.mrb[0].mxu0
        %v1086 = vadd.f32 %v998, %v1085
        %v1087 = vpop.f32.mrb[0].mxu0
        %1088 = vmatprep.mubr.bf16.mxu0 0
        %1089 = vmatmul.mubr.bf16.gmra.mrb[0].mxu0 %v946
        %v1090 = vpop.f32.mrb[0].mxu0
        %v1091 = vadd.f32 %v998, %v1090
        %v1092 = vpop.f32.mrb[0].mxu0
        %v1093 = vpop.f32.mrb[0].mxu0
        %v1094 = vadd.f32 %v998, %v1093
        %v1095 = vpop.f32.mrb[0].mxu0
        %1096 = vmatprep.mubr.bf16.mxu0 0
        %1097 = vmatmul.mubr.bf16.gmra.mrb[0].mxu0 %v947
        %v1098 = vpop.f32.mrb[0].mxu0
        %v1099 = vadd.f32 %v998, %v1098
        %v1100 = vpop.f32.mrb[0].mxu0
        %v1101 = vpop.f32.mrb[0].mxu0
        %v1102 = vadd.f32 %v998, %v1101
        %v1103 = vpop.f32.mrb[0].mxu0
        %1104 = vmatprep.mubr.bf16.mxu0 0
        %1105 = vmatmul.mubr.bf16.gmra.mrb[0].mxu0 %v948
        %v1106 = vpop.f32.mrb[0].mxu0
        %v1107 = vadd.f32 %v998, %v1106
        %v1108 = vpop.f32.mrb[0].mxu0
        %v1109 = vpop.f32.mrb[0].mxu0
        %v1110 = vadd.f32 %v998, %v1109
        %v1111 = vpop.f32.mrb[0].mxu0
        %1112 = vmatprep.mubr.bf16.mxu0 0
        %1113 = vmatmul.mubr.bf16.gmra.mrb[0].mxu0 %v949
        %v1114 = vpop.f32.mrb[0].mxu0
        %v1115 = vadd.f32 %v998, %v1114
        %v1116 = vpop.f32.mrb[0].mxu0
        %v1117 = vpop.f32.mrb[0].mxu0
        %v1118 = vadd.f32 %v998, %v1117
        %v1119 = vpop.f32.mrb[0].mxu0
        %1120 = vmatprep.mubr.bf16.mxu0 0
        %1121 = vmatmul.mubr.bf16.gmra.mrb[0].mxu0 %v950
        %v1122 = vpop.f32.mrb[0].mxu0
        %v1123 = vadd.f32 %v998, %v1122
        %v1124 = vpop.f32.mrb[0].mxu0
        %v1125 = vpop.f32.mrb[0].mxu0
        %v1126 = vadd.f32 %v998, %v1125
        %v1127 = vpop.f32.mrb[0].mxu0
        %1128 = vmatprep.mubr.bf16.mxu0 0
        %1129 = vmatmul.mubr.bf16.gmra.mrb[0].mxu0 %v951
        %v1130 = vpop.f32.mrb[0].mxu0
        %v1131 = vadd.f32 %v998, %v1130
        %v1132 = vpop.f32.mrb[0].mxu0
        %v1133 = vpop.f32.mrb[0].mxu0
        %v1134 = vadd.f32 %v998, %v1133
        %v1135 = vpop.f32.mrb[0].mxu0
        %1136 = vmatprep.mubr.bf16.mxu0 0
        %1137 = vmatmul.mubr.bf16.gmra.mrb[0].mxu0 %v952
        %v1138 = vpop.f32.mrb[0].mxu0
        %v1139 = vadd.f32 %v998, %v1138
        %v1140 = vpop.f32.mrb[0].mxu0
        %v1141 = vpop.f32.mrb[0].mxu0
        %v1142 = vadd.f32 %v998, %v1141
        %v1143 = vpop.f32.mrb[0].mxu0
        %1144 = vmatprep.mubr.bf16.mxu0 0
        %1145 = vmatmul.mubr.bf16.gmra.mrb[0].mxu0 %v953
        %v1146 = vpop.f32.mrb[0].mxu0
        %v1147 = vadd.f32 %v998, %v1146
        %v1148 = vpop.f32.mrb[0].mxu0
        %v1149 = vpop.f32.mrb[0].mxu0
        %v1150 = vadd.f32 %v998, %v1149
        %v1151 = vpop.f32.mrb[0].mxu0
        %1152 = vmatprep.mubr.bf16.mxu0 0
        %1153 = vmatmul.mubr.bf16.gmra.mrb[0].mxu0 %v954
        %v1154 = vpop.f32.mrb[0].mxu0
        %v1155 = vadd.f32 %v998, %v1154
        %v1156 = vpop.f32.mrb[0].mxu0
        %v1157 = vpop.f32.mrb[0].mxu0
        %v1158 = vadd.f32 %v998, %v1157
        %v1159 = vpop.f32.mrb[0].mxu0
        %1160 = vmatprep.mubr.bf16.mxu0 0
        %1161 = vmatmul.mubr.bf16.gmra.mrb[0].mxu0 %v955
        %v1162 = vpop.f32.mrb[0].mxu0
        %v1163 = vadd.f32 %v998, %v1162
        %v1164 = vpop.f32.mrb[0].mxu0
        %v1165 = vpop.f32.mrb[0].mxu0
        %v1166 = vadd.f32 %v998, %v1165
        %v1167 = vpop.f32.mrb[0].mxu0
        %1168 = vmatprep.mubr.bf16.mxu0 0
        %1169 = vmatmul.mubr.bf16.gmra.mrb[0].mxu0 %v956
        %v1170 = vpop.f32.mrb[0].mxu0
        %v1171 = vadd.f32 %v998, %v1170
        %v1172 = vpop.f32.mrb[0].mxu0
        %v1173 = vpop.f32.mrb[0].mxu0
        %v1174 = vadd.f32 %v998, %v1173
        %v1175 = vpop.f32.mrb[0].mxu0
        %1176 = vmatprep.mubr.bf16.mxu0 0
        %1177 = vmatmul.mubr.bf16.gmra.mrb[0].mxu0 %v957
        %v1178 = vpop.f32.mrb[0].mxu0
        %v1179 = vadd.f32 %v998, %v1178
        %v1180 = vpop.f32.mrb[0].mxu0
        %v1181 = vpop.f32.mrb[0].mxu0
        %v1182 = vadd.f32 %v998, %v1181
        %v1183 = vpop.f32.mrb[0].mxu0
        %1184 = vmatprep.mubr.bf16.mxu0 0
        %1185 = vmatmul.mubr.bf16.gmra.mrb[0].mxu0 %v958
        %v1186 = vpop.f32.mrb[0].mxu0
        %v1187 = vadd.f32 %v998, %v1186
        %v1188 = vpop.f32.mrb[0].mxu0
        %v1189 = vpop.f32.mrb[0].mxu0
        %v1190 = vadd.f32 %v998, %v1189
        %v1191 = vpop.f32.mrb[0].mxu0
        %1192 = vmatprep.mubr.bf16.mxu0 0
        %1193 = vmatmul.mubr.bf16.gmra.mrb[0].mxu0 %v959
        %v1194 = vpop.f32.mrb[0].mxu0
        %v1195 = vadd.f32 %v998, %v1194
        %v1196 = vpop.f32.mrb[0].mxu0
        %v1197 = vpop.f32.mrb[0].mxu0
        %v1198 = vadd.f32 %v998, %v1197
        %v1199 = vpop.f32.mrb[0].mxu0
        %1200 = vmatprep.mubr.bf16.mxu0 0
        %1201 = vmatmul.mubr.bf16.gmra.mrb[0].mxu0 %v960
        %v1202 = vpop.f32.mrb[0].mxu0
        %v1203 = vadd.f32 %v998, %v1202
        %v1204 = vpop.f32.mrb[0].mxu0
        %v1205 = vpop.f32.mrb[0].mxu0
        %v1206 = vadd.f32 %v998, %v1205
        %v1207 = vpop.f32.mrb[0].mxu0
        %1208 = vmatprep.mubr.bf16.mxu0 0
        %1209 = vmatmul.mubr.bf16.gmra.mrb[0].mxu0 %v961
        %v1210 = vpop.f32.mrb[0].mxu0
        %v1211 = vadd.f32 %v998, %v1210
        %v1212 = vpop.f32.mrb[0].mxu0
        %v1213 = vpop.f32.mrb[0].mxu0
        %v1214 = vadd.f32 %v998, %v1213
        %v1215 = vpop.f32.mrb[0].mxu0
        %1216 = vmatprep.mubr.bf16.mxu0 0
        %1217 = vmatmul.mubr.bf16.gmra.mrb[0].mxu0 %v962
        %v1218 = vpop.f32.mrb[0].mxu0
        %v1219 = vadd.f32 %v998, %v1218
        %v1220 = vpop.f32.mrb[0].mxu0
        %v1221 = vpop.f32.mrb[0].mxu0
        %v1222 = vadd.f32 %v998, %v1221
        %v1223 = vpop.f32.mrb[0].mxu0
        %1224 = vmatprep.mubr.bf16.mxu0 0
        %1225 = vmatmul.mubr.bf16.gmra.mrb[0].mxu0 %v963
        %v1226 = vpop.f32.mrb[0].mxu0
        %v1227 = vadd.f32 %v998, %v1226
        %v1228 = vpop.f32.mrb[0].mxu0
        %v1229 = vpop.f32.mrb[0].mxu0
        %v1230 = vadd.f32 %v998, %v1229
        %v1231 = vpop.f32.mrb[0].mxu0
        %1232 = vmatprep.mubr.bf16.mxu0 0
        %1233 = vmatmul.mubr.bf16.gmra.mrb[0].mxu0 %v964
        %v1234 = vpop.f32.mrb[0].mxu0
        %v1235 = vadd.f32 %v998, %v1234
        %v1236 = vpop.f32.mrb[0].mxu0
        %v1237 = vpop.f32.mrb[0].mxu0
        %v1238 = vadd.f32 %v998, %v1237
        %v1239 = vpop.f32.mrb[0].mxu0
        %1240 = vmatprep.mubr.bf16.mxu0 0
        %1241 = vmatmul.mubr.bf16.gmra.mrb[0].mxu0 %v965
        %v1242 = vpop.f32.mrb[0].mxu0
        %v1243 = vadd.f32 %v998, %v1242
        %v1244 = vpop.f32.mrb[0].mxu0
        %v1245 = vpop.f32.mrb[0].mxu0
        %v1246 = vadd.f32 %v998, %v1245
        %v1247 = vpop.f32.mrb[0].mxu0
        %1248 = vmatprep.mubr.bf16.mxu0 0
        %1249 = vmatmul.mubr.bf16.gmra.mrb[0].mxu0 %v966
        %v1250 = vpop.f32.mrb[0].mxu0
        %v1251 = vadd.f32 %v998, %v1250
        %v1252 = vpop.f32.mrb[0].mxu0
        %v1253 = vpop.f32.mrb[0].mxu0
        %v1254 = vadd.f32 %v998, %v1253
        %v1255 = vpop.f32.mrb[0].mxu0
        %1256 = vmatprep.mubr.bf16.mxu0 0
        %1257 = vmatmul.mubr.bf16.gmra.mrb[0].mxu0 %v967
        %v1258 = vpop.f32.mrb[0].mxu0
        %v1259 = vadd.f32 %v998, %v1258
        %v1260 = vpop.f32.mrb[0].mxu0
        %v1261 = vpop.f32.mrb[0].mxu0
        %v1262 = vadd.f32 %v998, %v1261
        %v1263 = vpop.f32.mrb[0].mxu0
        %1264 = vmatprep.mubr.bf16.mxu0 0
        %1265 = vmatmul.mubr.bf16.gmra.mrb[0].mxu0 %v968
        %v1266 = vpop.f32.mrb[0].mxu0
        %v1267 = vadd.f32 %v998, %v1266
        %v1268 = vpop.f32.mrb[0].mxu0
        %v1269 = vpop.f32.mrb[0].mxu0
        %v1270 = vadd.f32 %v998, %v1269
        %v1271 = vpop.f32.mrb[0].mxu0
        %1272 = vmatprep.mubr.bf16.mxu0 0
        %1273 = vmatmul.mubr.bf16.gmra.mrb[0].mxu0 %v969
        %v1274 = vpop.f32.mrb[0].mxu0
        %v1275 = vadd.f32 %v998, %v1274
        %v1276 = vpop.f32.mrb[0].mxu0
        %v1277 = vpop.f32.mrb[0].mxu0
        %v1278 = vadd.f32 %v998, %v1277
        %v1279 = vpop.f32.mrb[0].mxu0
        %1280 = vmatprep.mubr.bf16.mxu0 0
        %1281 = vmatmul.mubr.bf16.gmra.mrb[0].mxu0 %v970
        %v1282 = vpop.f32.mrb[0].mxu0
        %v1283 = vadd.f32 %v998, %v1282
        %v1284 = vpop.f32.mrb[0].mxu0
        %v1285 = vpop.f32.mrb[0].mxu0
        %v1286 = vadd.f32 %v998, %v1285
        %v1287 = vpop.f32.mrb[0].mxu0
        %1288 = vmatprep.mubr.bf16.mxu0 0
        %1289 = vmatmul.mubr.bf16.gmra.mrb[0].mxu0 %v971
        %v1290 = vpop.f32.mrb[0].mxu0
        %v1291 = vadd.f32 %v998, %v1290
        %v1292 = vpop.f32.mrb[0].mxu0
        %v1293 = vpop.f32.mrb[0].mxu0
        %v1294 = vadd.f32 %v998, %v1293
        %v1295 = vpop.f32.mrb[0].mxu0
        %1296 = vmatprep.mubr.bf16.mxu0 0
        %1297 = vmatmul.mubr.bf16.gmra.mrb[0].mxu0 %v972
        %v1298 = vpop.f32.mrb[0].mxu0
        %v1299 = vadd.f32 %v998, %v1298
        %v1300 = vpop.f32.mrb[0].mxu0
        %v1301 = vpop.f32.mrb[0].mxu0
        %v1302 = vadd.f32 %v998, %v1301
        %v1303 = vpop.f32.mrb[0].mxu0
        %1304 = vmatprep.mubr.bf16.mxu0 0
        %1305 = vmatmul.mubr.bf16.gmra.mrb[0].mxu0 %v973
        %v1306 = vpop.f32.mrb[0].mxu0
        %v1307 = vadd.f32 %v998, %v1306
        %v1308 = vpop.f32.mrb[0].mxu0
        %v1309 = vpop.f32.mrb[0].mxu0
        %v1310 = vadd.f32 %v998, %v1309
        %v1311 = vpop.f32.mrb[0].mxu0
        %1312 = vmatprep.mubr.bf16.mxu0 0
        %1313 = vmatmul.mubr.bf16.gmra.mrb[0].mxu0 %v974
        %v1314 = vpop.f32.mrb[0].mxu0
        %v1315 = vadd.f32 %v998, %v1314
        %v1316 = vpop.f32.mrb[0].mxu0
        %v1317 = vpop.f32.mrb[0].mxu0
        %v1318 = vadd.f32 %v998, %v1317
        %v1319 = vpop.f32.mrb[0].mxu0
        %1320 = vmatprep.mubr.bf16.mxu0 0
        %1321 = vmatmul.mubr.bf16.gmra.mrb[0].mxu0 %v975
        %v1322 = vpop.f32.mrb[0].mxu0
        %v1323 = vadd.f32 %v998, %v1322
        %v1324 = vpop.f32.mrb[0].mxu0
        %v1325 = vpop.f32.mrb[0].mxu0
        %v1326 = vadd.f32 %v998, %v1325
        %v1327 = vpop.f32.mrb[0].mxu0
        %1328 = vmatprep.mubr.bf16.mxu0 0
        %1329 = vmatmul.mubr.bf16.gmra.mrb[0].mxu0 %v976
        %v1330 = vpop.f32.mrb[0].mxu0
        %v1331 = vadd.f32 %v998, %v1330
        %v1332 = vpop.f32.mrb[0].mxu0
        %v1333 = vpop.f32.mrb[0].mxu0
        %v1334 = vadd.f32 %v998, %v1333
        %v1335 = vpop.f32.mrb[0].mxu0
        %1336 = vdwg.mxu0
        %v1337 = vld [vmem:[#allocation15] sm:$0xf]
        %v1338 = vld [vmem:[#allocation15 + $0x4] sm:$0xf]
        %v1339 = vld [vmem:[#allocation15 + $0x8] sm:$0xf]
        %v1340 = vld [vmem:[#allocation15 + $0xc] sm:$0xf]
        %v1341 = vld [vmem:[#allocation15 + $0x10] sm:$0xf]
        %v1342 = vld [vmem:[#allocation15 + $0x14] sm:$0xf]
        %v1343 = vld [vmem:[#allocation15 + $0x18] sm:$0xf]
        %v1344 = vld [vmem:[#allocation15 + $0x1c] sm:$0xf]
        %v1345 = vld [vmem:[#allocation15 + $0x20] sm:$0xf]
        %v1346 = vld [vmem:[#allocation15 + $0x24] sm:$0xf]
        %v1347 = vld [vmem:[#allocation15 + $0x28] sm:$0xf]
        %v1348 = vld [vmem:[#allocation15 + $0x2c] sm:$0xf]
        %v1349 = vld [vmem:[#allocation15 + $0x30] sm:$0xf]
        %v1350 = vld [vmem:[#allocation15 + $0x34] sm:$0xf]
        %v1351 = vld [vmem:[#allocation15 + $0x38] sm:$0xf]
        %v1352 = vld [vmem:[#allocation15 + $0x3c] sm:$0xf]
        %v1353 = vld [vmem:[%s7] sm:$0x1]
        %v1355 = vlaneseq
        %v1356 = vshrl.u32 %v1355, 7
        %v1357 = vsub.s32 0, %v1356
        %v1358 = vrot.slane %v1353, %v1357
        %v1376 = vunpack.c.l.b16 %v1337
        %v1377 = vunpack.c.l.b16 %v1338
        %v1378 = vunpack.c.l.b16 %v1339
        %v1379 = vunpack.c.l.b16 %v1340
        %v1380 = vunpack.c.l.b16 %v1341
        %v1381 = vunpack.c.l.b16 %v1342
        %v1382 = vunpack.c.l.b16 %v1343
        %v1383 = vunpack.c.l.b16 %v1344
        %v1384 = vunpack.c.l.b16 %v1345
        %v1385 = vunpack.c.l.b16 %v1346
        %v1386 = vunpack.c.l.b16 %v1347
        %v1387 = vunpack.c.l.b16 %v1348
        %v1388 = vunpack.c.l.b16 %v1349
        %v1389 = vunpack.c.l.b16 %v1350
        %v1390 = vunpack.c.l.b16 %v1351
        %v1391 = vunpack.c.l.b16 %v1352
        %v1392 = vpack.c.b16 %v1377, %v1376
        %v1393 = vpack.c.b16 %v1379, %v1378
        %v1394 = vpack.c.b16 %v1381, %v1380
        %v1395 = vpack.c.b16 %v1383, %v1382
        %v1396 = vpack.c.b16 %v1385, %v1384
        %v1397 = vpack.c.b16 %v1387, %v1386
        %v1398 = vpack.c.b16 %v1389, %v1388
        %v1399 = vpack.c.b16 %v1391, %v1390
        %1408 = vmatprep.subr.bf16.mxu0 0
        %1409 = vmatpush1.bf16.msra.mxu0 %v1392
        %1410 = vmatprep.subr.bf16.mxu0 0
        %1411 = vmatpush1.bf16.msra.mxu0 %v1393
        %1412 = vmatprep.subr.bf16.mxu0 0
        %1413 = vmatpush1.bf16.msra.mxu0 %v1394
        %1414 = vmatprep.subr.bf16.mxu0 0
        %1415 = vmatpush1.bf16.msra.mxu0 %v1395
        %1416 = vmatprep.subr.bf16.mxu0 0
        %1417 = vmatpush1.bf16.msra.mxu0 %v1396
        %1418 = vmatprep.subr.bf16.mxu0 0
        %1419 = vmatpush1.bf16.msra.mxu0 %v1397
        %1420 = vmatprep.subr.bf16.mxu0 0
        %1421 = vmatpush1.bf16.msra.mxu0 %v1398
        %1422 = vmatprep.subr.bf16.mxu0 0
        %1423 = vmatpush1.bf16.msra.mxu0 %v1399
        %1424 = vmatprep.subr.bf16.mxu0 0
        %1425 = vmatpush1.bf16.msra.mxu0 0
        %1426 = vmatprep.subr.bf16.mxu0 0
        %1427 = vmatpush1.bf16.msra.mxu0 0
        %1428 = vmatprep.subr.bf16.mxu0 0
        %1429 = vmatpush1.bf16.msra.mxu0 0
        %1430 = vmatprep.subr.bf16.mxu0 0
        %1431 = vmatpush1.bf16.msra.mxu0 0
        %1432 = vmatprep.subr.bf16.mxu0 0
        %1433 = vmatpush1.bf16.msra.mxu0 0
        %1434 = vmatprep.subr.bf16.mxu0 0
        %1435 = vmatpush1.bf16.msra.mxu0 0
        %1436 = vmatprep.subr.bf16.mxu0 0
        %1437 = vmatpush1.bf16.msra.mxu0 0
        %1438 = vmatprep.subr.bf16.mxu0 0
        %1439 = vmatpush1.bf16.msra.mxu0 0
        %1440 = vmatprep.mubr.bf16.mxu0 0
        %1441 = vmatmul.mubr.bf16.gmra.mrb[0].mxu0 %v945
        %v1442 = vpop.f32.mrb[0].mxu0
        %v1443 = vadd.f32 %v1358, %v1442
        %v1444 = vpop.f32.mrb[0].mxu0
        %v1445 = vpop.f32.mrb[0].mxu0
        %v1446 = vadd.f32 %v1358, %v1445
        %v1447 = vpop.f32.mrb[0].mxu0
        %1448 = vmatprep.mubr.bf16.mxu0 0
        %1449 = vmatmul.mubr.bf16.gmra.mrb[0].mxu0 %v946
        %v1450 = vpop.f32.mrb[0].mxu0
        %v1451 = vadd.f32 %v1358, %v1450
        %v1452 = vpop.f32.mrb[0].mxu0
        %v1453 = vpop.f32.mrb[0].mxu0
        %v1454 = vadd.f32 %v1358, %v1453
        %v1455 = vpop.f32.mrb[0].mxu0
        %1456 = vmatprep.mubr.bf16.mxu0 0
        %1457 = vmatmul.mubr.bf16.gmra.mrb[0].mxu0 %v947
        %v1458 = vpop.f32.mrb[0].mxu0
        %v1459 = vadd.f32 %v1358, %v1458
        %v1460 = vpop.f32.mrb[0].mxu0
        %v1461 = vpop.f32.mrb[0].mxu0
        %v1462 = vadd.f32 %v1358, %v1461
        %v1463 = vpop.f32.mrb[0].mxu0
        %1464 = vmatprep.mubr.bf16.mxu0 0
        %1465 = vmatmul.mubr.bf16.gmra.mrb[0].mxu0 %v948
        %v1466 = vpop.f32.mrb[0].mxu0
        %v1467 = vadd.f32 %v1358, %v1466
        %v1468 = vpop.f32.mrb[0].mxu0
        %v1469 = vpop.f32.mrb[0].mxu0
        %v1470 = vadd.f32 %v1358, %v1469
        %v1471 = vpop.f32.mrb[0].mxu0
        %1472 = vmatprep.mubr.bf16.mxu0 0
        %1473 = vmatmul.mubr.bf16.gmra.mrb[0].mxu0 %v949
        %v1474 = vpop.f32.mrb[0].mxu0
        %v1475 = vadd.f32 %v1358, %v1474
        %v1476 = vpop.f32.mrb[0].mxu0
        %v1477 = vpop.f32.mrb[0].mxu0
        %v1478 = vadd.f32 %v1358, %v1477
        %v1479 = vpop.f32.mrb[0].mxu0
        %1480 = vmatprep.mubr.bf16.mxu0 0
        %1481 = vmatmul.mubr.bf16.gmra.mrb[0].mxu0 %v950
        %v1482 = vpop.f32.mrb[0].mxu0
        %v1483 = vadd.f32 %v1358, %v1482
        %v1484 = vpop.f32.mrb[0].mxu0
        %v1485 = vpop.f32.mrb[0].mxu0
        %v1486 = vadd.f32 %v1358, %v1485
        %v1487 = vpop.f32.mrb[0].mxu0
        %1488 = vmatprep.mubr.bf16.mxu0 0
        %1489 = vmatmul.mubr.bf16.gmra.mrb[0].mxu0 %v951
        %v1490 = vpop.f32.mrb[0].mxu0
        %v1491 = vadd.f32 %v1358, %v1490
        %v1492 = vpop.f32.mrb[0].mxu0
        %v1493 = vpop.f32.mrb[0].mxu0
        %v1494 = vadd.f32 %v1358, %v1493
        %v1495 = vpop.f32.mrb[0].mxu0
        %1496 = vmatprep.mubr.bf16.mxu0 0
        %1497 = vmatmul.mubr.bf16.gmra.mrb[0].mxu0 %v952
        %v1498 = vpop.f32.mrb[0].mxu0
        %v1499 = vadd.f32 %v1358, %v1498
        %v1500 = vpop.f32.mrb[0].mxu0
        %v1501 = vpop.f32.mrb[0].mxu0
        %v1502 = vadd.f32 %v1358, %v1501
        %v1503 = vpop.f32.mrb[0].mxu0
        %1504 = vmatprep.mubr.bf16.mxu0 0
        %1505 = vmatmul.mubr.bf16.gmra.mrb[0].mxu0 %v953
        %v1506 = vpop.f32.mrb[0].mxu0
        %v1507 = vadd.f32 %v1358, %v1506
        %v1508 = vpop.f32.mrb[0].mxu0
        %v1509 = vpop.f32.mrb[0].mxu0
        %v1510 = vadd.f32 %v1358, %v1509
        %v1511 = vpop.f32.mrb[0].mxu0
        %1512 = vmatprep.mubr.bf16.mxu0 0
        %1513 = vmatmul.mubr.bf16.gmra.mrb[0].mxu0 %v954
        %v1514 = vpop.f32.mrb[0].mxu0
        %v1515 = vadd.f32 %v1358, %v1514
        %v1516 = vpop.f32.mrb[0].mxu0
        %v1517 = vpop.f32.mrb[0].mxu0
        %v1518 = vadd.f32 %v1358, %v1517
        %v1519 = vpop.f32.mrb[0].mxu0
        %1520 = vmatprep.mubr.bf16.mxu0 0
        %1521 = vmatmul.mubr.bf16.gmra.mrb[0].mxu0 %v955
        %v1522 = vpop.f32.mrb[0].mxu0
        %v1523 = vadd.f32 %v1358, %v1522
        %v1524 = vpop.f32.mrb[0].mxu0
        %v1525 = vpop.f32.mrb[0].mxu0
        %v1526 = vadd.f32 %v1358, %v1525
        %v1527 = vpop.f32.mrb[0].mxu0
        %1528 = vmatprep.mubr.bf16.mxu0 0
        %1529 = vmatmul.mubr.bf16.gmra.mrb[0].mxu0 %v956
        %v1530 = vpop.f32.mrb[0].mxu0
        %v1531 = vadd.f32 %v1358, %v1530
        %v1532 = vpop.f32.mrb[0].mxu0
        %v1533 = vpop.f32.mrb[0].mxu0
        %v1534 = vadd.f32 %v1358, %v1533
        %v1535 = vpop.f32.mrb[0].mxu0
        %1536 = vmatprep.mubr.bf16.mxu0 0
        %1537 = vmatmul.mubr.bf16.gmra.mrb[0].mxu0 %v957
        %v1538 = vpop.f32.mrb[0].mxu0
        %v1539 = vadd.f32 %v1358, %v1538
        %v1540 = vpop.f32.mrb[0].mxu0
        %v1541 = vpop.f32.mrb[0].mxu0
        %v1542 = vadd.f32 %v1358, %v1541
        %v1543 = vpop.f32.mrb[0].mxu0
        %1544 = vmatprep.mubr.bf16.mxu0 0
        %1545 = vmatmul.mubr.bf16.gmra.mrb[0].mxu0 %v958
        %v1546 = vpop.f32.mrb[0].mxu0
        %v1547 = vadd.f32 %v1358, %v1546
        %v1548 = vpop.f32.mrb[0].mxu0
        %v1549 = vpop.f32.mrb[0].mxu0
        %v1550 = vadd.f32 %v1358, %v1549
        %v1551 = vpop.f32.mrb[0].mxu0
        %1552 = vmatprep.mubr.bf16.mxu0 0
        %1553 = vmatmul.mubr.bf16.gmra.mrb[0].mxu0 %v959
        %v1554 = vpop.f32.mrb[0].mxu0
        %v1555 = vadd.f32 %v1358, %v1554
        %v1556 = vpop.f32.mrb[0].mxu0
        %v1557 = vpop.f32.mrb[0].mxu0
        %v1558 = vadd.f32 %v1358, %v1557
        %v1559 = vpop.f32.mrb[0].mxu0
        %1560 = vmatprep.mubr.bf16.mxu0 0
        %1561 = vmatmul.mubr.bf16.gmra.mrb[0].mxu0 %v960
        %v1562 = vpop.f32.mrb[0].mxu0
        %v1563 = vadd.f32 %v1358, %v1562
        %v1564 = vpop.f32.mrb[0].mxu0
        %v1565 = vpop.f32.mrb[0].mxu0
        %v1566 = vadd.f32 %v1358, %v1565
        %v1567 = vpop.f32.mrb[0].mxu0
        %1568 = vmatprep.mubr.bf16.mxu0 0
        %1569 = vmatmul.mubr.bf16.gmra.mrb[0].mxu0 %v961
        %v1570 = vpop.f32.mrb[0].mxu0
        %v1571 = vadd.f32 %v1358, %v1570
        %v1572 = vpop.f32.mrb[0].mxu0
        %v1573 = vpop.f32.mrb[0].mxu0
        %v1574 = vadd.f32 %v1358, %v1573
        %v1575 = vpop.f32.mrb[0].mxu0
        %1576 = vmatprep.mubr.bf16.mxu0 0
        %1577 = vmatmul.mubr.bf16.gmra.mrb[0].mxu0 %v962
        %v1578 = vpop.f32.mrb[0].mxu0
        %v1579 = vadd.f32 %v1358, %v1578
        %v1580 = vpop.f32.mrb[0].mxu0
        %v1581 = vpop.f32.mrb[0].mxu0
        %v1582 = vadd.f32 %v1358, %v1581
        %v1583 = vpop.f32.mrb[0].mxu0
        %1584 = vmatprep.mubr.bf16.mxu0 0
        %1585 = vmatmul.mubr.bf16.gmra.mrb[0].mxu0 %v963
        %v1586 = vpop.f32.mrb[0].mxu0
        %v1587 = vadd.f32 %v1358, %v1586
        %v1588 = vpop.f32.mrb[0].mxu0
        %v1589 = vpop.f32.mrb[0].mxu0
        %v1590 = vadd.f32 %v1358, %v1589
        %v1591 = vpop.f32.mrb[0].mxu0
        %1592 = vmatprep.mubr.bf16.mxu0 0
        %1593 = vmatmul.mubr.bf16.gmra.mrb[0].mxu0 %v964
        %v1594 = vpop.f32.mrb[0].mxu0
        %v1595 = vadd.f32 %v1358, %v1594
        %v1596 = vpop.f32.mrb[0].mxu0
        %v1597 = vpop.f32.mrb[0].mxu0
        %v1598 = vadd.f32 %v1358, %v1597
        %v1599 = vpop.f32.mrb[0].mxu0
        %1600 = vmatprep.mubr.bf16.mxu0 0
        %1601 = vmatmul.mubr.bf16.gmra.mrb[0].mxu0 %v965
        %v1602 = vpop.f32.mrb[0].mxu0
        %v1603 = vadd.f32 %v1358, %v1602
        %v1604 = vpop.f32.mrb[0].mxu0
        %v1605 = vpop.f32.mrb[0].mxu0
        %v1606 = vadd.f32 %v1358, %v1605
        %v1607 = vpop.f32.mrb[0].mxu0
        %1608 = vmatprep.mubr.bf16.mxu0 0
        %1609 = vmatmul.mubr.bf16.gmra.mrb[0].mxu0 %v966
        %v1610 = vpop.f32.mrb[0].mxu0
        %v1611 = vadd.f32 %v1358, %v1610
        %v1612 = vpop.f32.mrb[0].mxu0
        %v1613 = vpop.f32.mrb[0].mxu0
        %v1614 = vadd.f32 %v1358, %v1613
        %v1615 = vpop.f32.mrb[0].mxu0
        %1616 = vmatprep.mubr.bf16.mxu0 0
        %1617 = vmatmul.mubr.bf16.gmra.mrb[0].mxu0 %v967
        %v1618 = vpop.f32.mrb[0].mxu0
        %v1619 = vadd.f32 %v1358, %v1618
        %v1620 = vpop.f32.mrb[0].mxu0
        %v1621 = vpop.f32.mrb[0].mxu0
        %v1622 = vadd.f32 %v1358, %v1621
        %v1623 = vpop.f32.mrb[0].mxu0
        %1624 = vmatprep.mubr.bf16.mxu0 0
        %1625 = vmatmul.mubr.bf16.gmra.mrb[0].mxu0 %v968
        %v1626 = vpop.f32.mrb[0].mxu0
        %v1627 = vadd.f32 %v1358, %v1626
        %v1628 = vpop.f32.mrb[0].mxu0
        %v1629 = vpop.f32.mrb[0].mxu0
        %v1630 = vadd.f32 %v1358, %v1629
        %v1631 = vpop.f32.mrb[0].mxu0
        %1632 = vmatprep.mubr.bf16.mxu0 0
        %1633 = vmatmul.mubr.bf16.gmra.mrb[0].mxu0 %v969
        %v1634 = vpop.f32.mrb[0].mxu0
        %v1635 = vadd.f32 %v1358, %v1634
        %v1636 = vpop.f32.mrb[0].mxu0
        %v1637 = vpop.f32.mrb[0].mxu0
        %v1638 = vadd.f32 %v1358, %v1637
        %v1639 = vpop.f32.mrb[0].mxu0
        %1640 = vmatprep.mubr.bf16.mxu0 0
        %1641 = vmatmul.mubr.bf16.gmra.mrb[0].mxu0 %v970
        %v1642 = vpop.f32.mrb[0].mxu0
        %v1643 = vadd.f32 %v1358, %v1642
        %v1644 = vpop.f32.mrb[0].mxu0
        %v1645 = vpop.f32.mrb[0].mxu0
        %v1646 = vadd.f32 %v1358, %v1645
        %v1647 = vpop.f32.mrb[0].mxu0
        %1648 = vmatprep.mubr.bf16.mxu0 0
        %1649 = vmatmul.mubr.bf16.gmra.mrb[0].mxu0 %v971
        %v1650 = vpop.f32.mrb[0].mxu0
        %v1651 = vadd.f32 %v1358, %v1650
        %v1652 = vpop.f32.mrb[0].mxu0
        %v1653 = vpop.f32.mrb[0].mxu0
        %v1654 = vadd.f32 %v1358, %v1653
        %v1655 = vpop.f32.mrb[0].mxu0
        %1656 = vmatprep.mubr.bf16.mxu0 0
        %1657 = vmatmul.mubr.bf16.gmra.mrb[0].mxu0 %v972
        %v1658 = vpop.f32.mrb[0].mxu0
        %v1659 = vadd.f32 %v1358, %v1658
        %v1660 = vpop.f32.mrb[0].mxu0
        %v1661 = vpop.f32.mrb[0].mxu0
        %v1662 = vadd.f32 %v1358, %v1661
        %v1663 = vpop.f32.mrb[0].mxu0
        %1664 = vmatprep.mubr.bf16.mxu0 0
        %1665 = vmatmul.mubr.bf16.gmra.mrb[0].mxu0 %v973
        %v1666 = vpop.f32.mrb[0].mxu0
        %v1667 = vadd.f32 %v1358, %v1666
        %v1668 = vpop.f32.mrb[0].mxu0
        %v1669 = vpop.f32.mrb[0].mxu0
        %v1670 = vadd.f32 %v1358, %v1669
        %v1671 = vpop.f32.mrb[0].mxu0
        %1672 = vmatprep.mubr.bf16.mxu0 0
        %1673 = vmatmul.mubr.bf16.gmra.mrb[0].mxu0 %v974
        %v1674 = vpop.f32.mrb[0].mxu0
        %v1675 = vadd.f32 %v1358, %v1674
        %v1676 = vpop.f32.mrb[0].mxu0
        %v1677 = vpop.f32.mrb[0].mxu0
        %v1678 = vadd.f32 %v1358, %v1677
        %v1679 = vpop.f32.mrb[0].mxu0
        %1680 = vmatprep.mubr.bf16.mxu0 0
        %1681 = vmatmul.mubr.bf16.gmra.mrb[0].mxu0 %v975
        %v1682 = vpop.f32.mrb[0].mxu0
        %v1683 = vadd.f32 %v1358, %v1682
        %v1684 = vpop.f32.mrb[0].mxu0
        %v1685 = vpop.f32.mrb[0].mxu0
        %v1686 = vadd.f32 %v1358, %v1685
        %v1687 = vpop.f32.mrb[0].mxu0
        %1688 = vmatprep.mubr.bf16.mxu0 0
        %1689 = vmatmul.mubr.bf16.gmra.mrb[0].mxu0 %v976
        %v1690 = vpop.f32.mrb[0].mxu0
        %v1691 = vadd.f32 %v1358, %v1690
        %v1692 = vpop.f32.mrb[0].mxu0
        %v1693 = vpop.f32.mrb[0].mxu0
        %v1694 = vadd.f32 %v1358, %v1693
        %v1695 = vpop.f32.mrb[0].mxu0
        %1696 = vdwg.mxu0
        %v1697 = vld [vmem:[#allocation2] sm:$0xff]
        %v1698 = vld [vmem:[#allocation2 + $0x8] sm:$0xff]
        %v1699 = vld [vmem:[#allocation2 + $0x10] sm:$0xff]
        %v1700 = vld [vmem:[#allocation2 + $0x18] sm:$0xff]
        %v1701 = vld [vmem:[#allocation2 + $0x20] sm:$0xff]
        %v1702 = vld [vmem:[#allocation2 + $0x28] sm:$0xff]
        %v1703 = vld [vmem:[#allocation2 + $0x30] sm:$0xff]
        %v1704 = vld [vmem:[#allocation2 + $0x38] sm:$0xff]
        %v1705 = vld [vmem:[#allocation2 + $0x40] sm:$0xff]
        %v1706 = vld [vmem:[#allocation2 + $0x48] sm:$0xff]
        %v1707 = vld [vmem:[#allocation2 + $0x50] sm:$0xff]
        %v1708 = vld [vmem:[#allocation2 + $0x58] sm:$0xff]
        %v1709 = vld [vmem:[#allocation2 + $0x60] sm:$0xff]
        %v1710 = vld [vmem:[#allocation2 + $0x68] sm:$0xff]
        %v1711 = vld [vmem:[#allocation2 + $0x70] sm:$0xff]
        %v1712 = vld [vmem:[#allocation2 + $0x78] sm:$0xff]
        %v1713 = vld [vmem:[#allocation2 + $0x80] sm:$0xff]
        %v1714 = vld [vmem:[#allocation2 + $0x88] sm:$0xff]
        %v1715 = vld [vmem:[#allocation2 + $0x90] sm:$0xff]
        %v1716 = vld [vmem:[#allocation2 + $0x98] sm:$0xff]
        %v1717 = vld [vmem:[#allocation2 + $0xa0] sm:$0xff]
        %v1718 = vld [vmem:[#allocation2 + $0xa8] sm:$0xff]
        %v1719 = vld [vmem:[#allocation2 + $0xb0] sm:$0xff]
        %v1720 = vld [vmem:[#allocation2 + $0xb8] sm:$0xff]
        %v1721 = vld [vmem:[#allocation2 + $0xc0] sm:$0xff]
        %v1722 = vld [vmem:[#allocation2 + $0xc8] sm:$0xff]
        %v1723 = vld [vmem:[#allocation2 + $0xd0] sm:$0xff]
        %v1724 = vld [vmem:[#allocation2 + $0xd8] sm:$0xff]
        %v1725 = vld [vmem:[#allocation2 + $0xe0] sm:$0xff]
        %v1726 = vld [vmem:[#allocation2 + $0xe8] sm:$0xff]
        %v1727 = vld [vmem:[#allocation2 + $0xf0] sm:$0xff]
        %v1728 = vld [vmem:[#allocation2 + $0xf8] sm:$0xff]
        %v1729 = vpack.c.bf16 %v1698, %v1697
        %v1730 = vpack.c.bf16 %v1700, %v1699
        %v1731 = vpack.c.bf16 %v1702, %v1701
        %v1732 = vpack.c.bf16 %v1704, %v1703
        %v1733 = vpack.c.bf16 %v1706, %v1705
        %v1734 = vpack.c.bf16 %v1708, %v1707
        %v1735 = vpack.c.bf16 %v1710, %v1709
        %v1736 = vpack.c.bf16 %v1712, %v1711
        %v1737 = vpack.c.bf16 %v1714, %v1713
        %v1738 = vpack.c.bf16 %v1716, %v1715
        %v1739 = vpack.c.bf16 %v1718, %v1717
        %v1740 = vpack.c.bf16 %v1720, %v1719
        %v1741 = vpack.c.bf16 %v1722, %v1721
        %v1742 = vpack.c.bf16 %v1724, %v1723
        %v1743 = vpack.c.bf16 %v1726, %v1725
        %v1744 = vpack.c.bf16 %v1728, %v1727
        %v1745 = vpack.c.bf16 %v1086, %v1083
        %v1746 = vpack.c.bf16 %v1094, %v1091
        %v1747 = vpack.c.bf16 %v1102, %v1099
        %v1748 = vpack.c.bf16 %v1110, %v1107
        %v1749 = vpack.c.bf16 %v1118, %v1115
        %v1750 = vpack.c.bf16 %v1126, %v1123
        %v1751 = vpack.c.bf16 %v1134, %v1131
        %v1752 = vpack.c.bf16 %v1142, %v1139
        %v1753 = vpack.c.bf16 %v1150, %v1147
        %v1754 = vpack.c.bf16 %v1158, %v1155
        %v1755 = vpack.c.bf16 %v1166, %v1163
        %v1756 = vpack.c.bf16 %v1174, %v1171
        %v1757 = vpack.c.bf16 %v1182, %v1179
        %v1758 = vpack.c.bf16 %v1190, %v1187
        %v1759 = vpack.c.bf16 %v1198, %v1195
        %v1760 = vpack.c.bf16 %v1206, %v1203
        %v1761 = vpack.c.bf16 %v1214, %v1211
        %v1762 = vpack.c.bf16 %v1222, %v1219
        %v1763 = vpack.c.bf16 %v1230, %v1227
        %v1764 = vpack.c.bf16 %v1238, %v1235
        %v1765 = vpack.c.bf16 %v1246, %v1243
        %v1766 = vpack.c.bf16 %v1254, %v1251
        %v1767 = vpack.c.bf16 %v1262, %v1259
        %v1768 = vpack.c.bf16 %v1270, %v1267
        %v1769 = vpack.c.bf16 %v1278, %v1275
        %v1770 = vpack.c.bf16 %v1286, %v1283
        %v1771 = vpack.c.bf16 %v1294, %v1291
        %v1772 = vpack.c.bf16 %v1302, %v1299
        %v1773 = vpack.c.bf16 %v1310, %v1307
        %v1774 = vpack.c.bf16 %v1318, %v1315
        %v1775 = vpack.c.bf16 %v1326, %v1323
        %v1776 = vpack.c.bf16 %v1334, %v1331
        %1777 = vmatprep.subr.bf16.mxu0 0
        %1778 = vmatpush1.bf16.xpose.msra.mxu0 %v1745
        %1779 = vmatprep.subr.bf16.mxu0 0
        %1780 = vmatpush1.bf16.xpose.msra.mxu0 %v1746
        %1781 = vmatprep.subr.bf16.mxu0 0
        %1782 = vmatpush1.bf16.xpose.msra.mxu0 %v1747
        %1783 = vmatprep.subr.bf16.mxu0 0
        %1784 = vmatpush1.bf16.xpose.msra.mxu0 %v1748
        %1785 = vmatprep.subr.bf16.mxu0 0
        %1786 = vmatpush1.bf16.xpose.msra.mxu0 %v1749
        %1787 = vmatprep.subr.bf16.mxu0 0
        %1788 = vmatpush1.bf16.xpose.msra.mxu0 %v1750
        %1789 = vmatprep.subr.bf16.mxu0 0
        %1790 = vmatpush1.bf16.xpose.msra.mxu0 %v1751
        %1791 = vmatprep.subr.bf16.mxu0 0
        %1792 = vmatpush1.bf16.xpose.msra.mxu0 %v1752
        %1793 = vmatprep.subr.bf16.mxu0 0
        %1794 = vmatpush1.bf16.xpose.msra.mxu0 %v1753
        %1795 = vmatprep.subr.bf16.mxu0 0
        %1796 = vmatpush1.bf16.xpose.msra.mxu0 %v1754
        %1797 = vmatprep.subr.bf16.mxu0 0
        %1798 = vmatpush1.bf16.xpose.msra.mxu0 %v1755
        %1799 = vmatprep.subr.bf16.mxu0 0
        %1800 = vmatpush1.bf16.xpose.msra.mxu0 %v1756
        %1801 = vmatprep.subr.bf16.mxu0 0
        %1802 = vmatpush1.bf16.xpose.msra.mxu0 %v1757
        %1803 = vmatprep.subr.bf16.mxu0 0
        %1804 = vmatpush1.bf16.xpose.msra.mxu0 %v1758
        %1805 = vmatprep.subr.bf16.mxu0 0
        %1806 = vmatpush1.bf16.xpose.msra.mxu0 %v1759
        %1807 = vmatprep.subr.bf16.mxu0 0
        %1808 = vmatpush1.bf16.xpose.msra.mxu0 %v1760
        %1809 = vmatprep.mubr.bf16.mxu0 0
        %1810 = vmatmul.mubr.bf16.gmra.mrb[0].mxu0 %v1729
        %v1811 = vpop.f32.mrb[0].mxu0
        %v1812 = vadd.f32 0.0, %v1811
        %v1813 = vpop.f32.mrb[0].mxu0
        %v1814 = vadd.f32 0.0, %v1813
        %v1815 = vpop.f32.mrb[0].mxu0
        %v1816 = vadd.f32 0.0, %v1815
        %v1817 = vpop.f32.mrb[0].mxu0
        %v1818 = vadd.f32 0.0, %v1817
        %1819 = vmatprep.mubr.bf16.mxu0 0
        %1820 = vmatmul.mubr.bf16.gmra.mrb[0].mxu0 %v1730
        %v1821 = vpop.f32.mrb[0].mxu0
        %v1822 = vadd.f32 0.0, %v1821
        %v1823 = vpop.f32.mrb[0].mxu0
        %v1824 = vadd.f32 0.0, %v1823
        %v1825 = vpop.f32.mrb[0].mxu0
        %v1826 = vadd.f32 0.0, %v1825
        %v1827 = vpop.f32.mrb[0].mxu0
        %v1828 = vadd.f32 0.0, %v1827
        %1829 = vmatprep.mubr.bf16.mxu0 0
        %1830 = vmatmul.mubr.bf16.gmra.mrb[0].mxu0 %v1731
        %v1831 = vpop.f32.mrb[0].mxu0
        %v1832 = vadd.f32 0.0, %v1831
        %v1833 = vpop.f32.mrb[0].mxu0
        %v1834 = vadd.f32 0.0, %v1833
        %v1835 = vpop.f32.mrb[0].mxu0
        %v1836 = vadd.f32 0.0, %v1835
        %v1837 = vpop.f32.mrb[0].mxu0
        %v1838 = vadd.f32 0.0, %v1837
        %1839 = vmatprep.mubr.bf16.mxu0 0
        %1840 = vmatmul.mubr.bf16.gmra.mrb[0].mxu0 %v1732
        %v1841 = vpop.f32.mrb[0].mxu0
        %v1842 = vadd.f32 0.0, %v1841
        %v1843 = vpop.f32.mrb[0].mxu0
        %v1844 = vadd.f32 0.0, %v1843
        %v1845 = vpop.f32.mrb[0].mxu0
        %v1846 = vadd.f32 0.0, %v1845
        %v1847 = vpop.f32.mrb[0].mxu0
        %v1848 = vadd.f32 0.0, %v1847
        %1849 = vmatprep.mubr.bf16.mxu0 0
        %1850 = vmatmul.mubr.bf16.gmra.mrb[0].mxu0 %v1733
        %v1851 = vpop.f32.mrb[0].mxu0
        %v1852 = vadd.f32 0.0, %v1851
        %v1853 = vpop.f32.mrb[0].mxu0
        %v1854 = vadd.f32 0.0, %v1853
        %v1855 = vpop.f32.mrb[0].mxu0
        %v1856 = vadd.f32 0.0, %v1855
        %v1857 = vpop.f32.mrb[0].mxu0
        %v1858 = vadd.f32 0.0, %v1857
        %1859 = vmatprep.mubr.bf16.mxu0 0
        %1860 = vmatmul.mubr.bf16.gmra.mrb[0].mxu0 %v1734
        %v1861 = vpop.f32.mrb[0].mxu0
        %v1862 = vadd.f32 0.0, %v1861
        %v1863 = vpop.f32.mrb[0].mxu0
        %v1864 = vadd.f32 0.0, %v1863
        %v1865 = vpop.f32.mrb[0].mxu0
        %v1866 = vadd.f32 0.0, %v1865
        %v1867 = vpop.f32.mrb[0].mxu0
        %v1868 = vadd.f32 0.0, %v1867
        %1869 = vmatprep.mubr.bf16.mxu0 0
        %1870 = vmatmul.mubr.bf16.gmra.mrb[0].mxu0 %v1735
        %v1871 = vpop.f32.mrb[0].mxu0
        %v1872 = vadd.f32 0.0, %v1871
        %v1873 = vpop.f32.mrb[0].mxu0
        %v1874 = vadd.f32 0.0, %v1873
        %v1875 = vpop.f32.mrb[0].mxu0
        %v1876 = vadd.f32 0.0, %v1875
        %v1877 = vpop.f32.mrb[0].mxu0
        %v1878 = vadd.f32 0.0, %v1877
        %1879 = vmatprep.mubr.bf16.mxu0 0
        %1880 = vmatmul.mubr.bf16.gmra.mrb[0].mxu0 %v1736
        %v1881 = vpop.f32.mrb[0].mxu0
        %v1882 = vadd.f32 0.0, %v1881
        %v1883 = vpop.f32.mrb[0].mxu0
        %v1884 = vadd.f32 0.0, %v1883
        %v1885 = vpop.f32.mrb[0].mxu0
        %v1886 = vadd.f32 0.0, %v1885
        %v1887 = vpop.f32.mrb[0].mxu0
        %v1888 = vadd.f32 0.0, %v1887
        %1889 = vmatprep.mubr.bf16.mxu0 0
        %1890 = vmatmul.mubr.bf16.gmra.mrb[0].mxu0 %v1737
        %v1891 = vpop.f32.mrb[0].mxu0
        %v1892 = vadd.f32 0.0, %v1891
        %v1893 = vpop.f32.mrb[0].mxu0
        %v1894 = vadd.f32 0.0, %v1893
        %v1895 = vpop.f32.mrb[0].mxu0
        %v1896 = vadd.f32 0.0, %v1895
        %v1897 = vpop.f32.mrb[0].mxu0
        %v1898 = vadd.f32 0.0, %v1897
        %1899 = vmatprep.mubr.bf16.mxu0 0
        %1900 = vmatmul.mubr.bf16.gmra.mrb[0].mxu0 %v1738
        %v1901 = vpop.f32.mrb[0].mxu0
        %v1902 = vadd.f32 0.0, %v1901
        %v1903 = vpop.f32.mrb[0].mxu0
        %v1904 = vadd.f32 0.0, %v1903
        %v1905 = vpop.f32.mrb[0].mxu0
        %v1906 = vadd.f32 0.0, %v1905
        %v1907 = vpop.f32.mrb[0].mxu0
        %v1908 = vadd.f32 0.0, %v1907
        %1909 = vmatprep.mubr.bf16.mxu0 0
        %1910 = vmatmul.mubr.bf16.gmra.mrb[0].mxu0 %v1739
        %v1911 = vpop.f32.mrb[0].mxu0
        %v1912 = vadd.f32 0.0, %v1911
        %v1913 = vpop.f32.mrb[0].mxu0
        %v1914 = vadd.f32 0.0, %v1913
        %v1915 = vpop.f32.mrb[0].mxu0
        %v1916 = vadd.f32 0.0, %v1915
        %v1917 = vpop.f32.mrb[0].mxu0
        %v1918 = vadd.f32 0.0, %v1917
        %1919 = vmatprep.mubr.bf16.mxu0 0
        %1920 = vmatmul.mubr.bf16.gmra.mrb[0].mxu0 %v1740
        %v1921 = vpop.f32.mrb[0].mxu0
        %v1922 = vadd.f32 0.0, %v1921
        %v1923 = vpop.f32.mrb[0].mxu0
        %v1924 = vadd.f32 0.0, %v1923
        %v1925 = vpop.f32.mrb[0].mxu0
        %v1926 = vadd.f32 0.0, %v1925
        %v1927 = vpop.f32.mrb[0].mxu0
        %v1928 = vadd.f32 0.0, %v1927
        %1929 = vmatprep.mubr.bf16.mxu0 0
        %1930 = vmatmul.mubr.bf16.gmra.mrb[0].mxu0 %v1741
        %v1931 = vpop.f32.mrb[0].mxu0
        %v1932 = vadd.f32 0.0, %v1931
        %v1933 = vpop.f32.mrb[0].mxu0
        %v1934 = vadd.f32 0.0, %v1933
        %v1935 = vpop.f32.mrb[0].mxu0
        %v1936 = vadd.f32 0.0, %v1935
        %v1937 = vpop.f32.mrb[0].mxu0
        %v1938 = vadd.f32 0.0, %v1937
        %1939 = vmatprep.mubr.bf16.mxu0 0
        %1940 = vmatmul.mubr.bf16.gmra.mrb[0].mxu0 %v1742
        %v1941 = vpop.f32.mrb[0].mxu0
        %v1942 = vadd.f32 0.0, %v1941
        %v1943 = vpop.f32.mrb[0].mxu0
        %v1944 = vadd.f32 0.0, %v1943
        %v1945 = vpop.f32.mrb[0].mxu0
        %v1946 = vadd.f32 0.0, %v1945
        %v1947 = vpop.f32.mrb[0].mxu0
        %v1948 = vadd.f32 0.0, %v1947
        %1949 = vmatprep.mubr.bf16.mxu0 0
        %1950 = vmatmul.mubr.bf16.gmra.mrb[0].mxu0 %v1743
        %v1951 = vpop.f32.mrb[0].mxu0
        %v1952 = vadd.f32 0.0, %v1951
        %v1953 = vpop.f32.mrb[0].mxu0
        %v1954 = vadd.f32 0.0, %v1953
        %v1955 = vpop.f32.mrb[0].mxu0
        %v1956 = vadd.f32 0.0, %v1955
        %v1957 = vpop.f32.mrb[0].mxu0
        %v1958 = vadd.f32 0.0, %v1957
        %1959 = vmatprep.mubr.bf16.mxu0 0
        %1960 = vmatmul.mubr.bf16.gmra.mrb[0].mxu0 %v1744
        %v1961 = vpop.f32.mrb[0].mxu0
        %v1962 = vadd.f32 0.0, %v1961
        %v1963 = vpop.f32.mrb[0].mxu0
        %v1964 = vadd.f32 0.0, %v1963
        %v1965 = vpop.f32.mrb[0].mxu0
        %v1966 = vadd.f32 0.0, %v1965
        %v1967 = vpop.f32.mrb[0].mxu0
        %v1968 = vadd.f32 0.0, %v1967
        %1969 = vdwg.mxu0
        %1970 = vmatprep.subr.bf16.mxu0 0
        %1971 = vmatpush1.bf16.xpose.msra.mxu0 %v1761
        %1972 = vmatprep.subr.bf16.mxu0 0
        %1973 = vmatpush1.bf16.xpose.msra.mxu0 %v1762
        %1974 = vmatprep.subr.bf16.mxu0 0
        %1975 = vmatpush1.bf16.xpose.msra.mxu0 %v1763
        %1976 = vmatprep.subr.bf16.mxu0 0
        %1977 = vmatpush1.bf16.xpose.msra.mxu0 %v1764
        %1978 = vmatprep.subr.bf16.mxu0 0
        %1979 = vmatpush1.bf16.xpose.msra.mxu0 %v1765
        %1980 = vmatprep.subr.bf16.mxu0 0
        %1981 = vmatpush1.bf16.xpose.msra.mxu0 %v1766
        %1982 = vmatprep.subr.bf16.mxu0 0
        %1983 = vmatpush1.bf16.xpose.msra.mxu0 %v1767
        %1984 = vmatprep.subr.bf16.mxu0 0
        %1985 = vmatpush1.bf16.xpose.msra.mxu0 %v1768
        %1986 = vmatprep.subr.bf16.mxu0 0
        %1987 = vmatpush1.bf16.xpose.msra.mxu0 %v1769
        %1988 = vmatprep.subr.bf16.mxu0 0
        %1989 = vmatpush1.bf16.xpose.msra.mxu0 %v1770
        %1990 = vmatprep.subr.bf16.mxu0 0
        %1991 = vmatpush1.bf16.xpose.msra.mxu0 %v1771
        %1992 = vmatprep.subr.bf16.mxu0 0
        %1993 = vmatpush1.bf16.xpose.msra.mxu0 %v1772
        %1994 = vmatprep.subr.bf16.mxu0 0
        %1995 = vmatpush1.bf16.xpose.msra.mxu0 %v1773
        %1996 = vmatprep.subr.bf16.mxu0 0
        %1997 = vmatpush1.bf16.xpose.msra.mxu0 %v1774
        %1998 = vmatprep.subr.bf16.mxu0 0
        %1999 = vmatpush1.bf16.xpose.msra.mxu0 %v1775
        %2000 = vmatprep.subr.bf16.mxu0 0
        %2001 = vmatpush1.bf16.xpose.msra.mxu0 %v1776
        %2002 = vmatprep.mubr.bf16.mxu0 0
        %2003 = vmatmul.mubr.bf16.gmra.mrb[0].mxu0 %v1729
        %v2004 = vpop.f32.mrb[0].mxu0
        %v2005 = vadd.f32 0.0, %v2004
        %v2006 = vpop.f32.mrb[0].mxu0
        %v2007 = vadd.f32 0.0, %v2006
        %v2008 = vpop.f32.mrb[0].mxu0
        %v2009 = vadd.f32 0.0, %v2008
        %v2010 = vpop.f32.mrb[0].mxu0
        %v2011 = vadd.f32 0.0, %v2010
        %2012 = vmatprep.mubr.bf16.mxu0 0
        %2013 = vmatmul.mubr.bf16.gmra.mrb[0].mxu0 %v1730
        %v2014 = vpop.f32.mrb[0].mxu0
        %v2015 = vadd.f32 0.0, %v2014
        %v2016 = vpop.f32.mrb[0].mxu0
        %v2017 = vadd.f32 0.0, %v2016
        %v2018 = vpop.f32.mrb[0].mxu0
        %v2019 = vadd.f32 0.0, %v2018
        %v2020 = vpop.f32.mrb[0].mxu0
        %v2021 = vadd.f32 0.0, %v2020
        %2022 = vmatprep.mubr.bf16.mxu0 0
        %2023 = vmatmul.mubr.bf16.gmra.mrb[0].mxu0 %v1731
        %v2024 = vpop.f32.mrb[0].mxu0
        %v2025 = vadd.f32 0.0, %v2024
        %v2026 = vpop.f32.mrb[0].mxu0
        %v2027 = vadd.f32 0.0, %v2026
        %v2028 = vpop.f32.mrb[0].mxu0
        %v2029 = vadd.f32 0.0, %v2028
        %v2030 = vpop.f32.mrb[0].mxu0
        %v2031 = vadd.f32 0.0, %v2030
        %2032 = vmatprep.mubr.bf16.mxu0 0
        %2033 = vmatmul.mubr.bf16.gmra.mrb[0].mxu0 %v1732
        %v2034 = vpop.f32.mrb[0].mxu0
        %v2035 = vadd.f32 0.0, %v2034
        %v2036 = vpop.f32.mrb[0].mxu0
        %v2037 = vadd.f32 0.0, %v2036
        %v2038 = vpop.f32.mrb[0].mxu0
        %v2039 = vadd.f32 0.0, %v2038
        %v2040 = vpop.f32.mrb[0].mxu0
        %v2041 = vadd.f32 0.0, %v2040
        %2042 = vmatprep.mubr.bf16.mxu0 0
        %2043 = vmatmul.mubr.bf16.gmra.mrb[0].mxu0 %v1733
        %v2044 = vpop.f32.mrb[0].mxu0
        %v2045 = vadd.f32 0.0, %v2044
        %v2046 = vpop.f32.mrb[0].mxu0
        %v2047 = vadd.f32 0.0, %v2046
        %v2048 = vpop.f32.mrb[0].mxu0
        %v2049 = vadd.f32 0.0, %v2048
        %v2050 = vpop.f32.mrb[0].mxu0
        %v2051 = vadd.f32 0.0, %v2050
        %2052 = vmatprep.mubr.bf16.mxu0 0
        %2053 = vmatmul.mubr.bf16.gmra.mrb[0].mxu0 %v1734
        %v2054 = vpop.f32.mrb[0].mxu0
        %v2055 = vadd.f32 0.0, %v2054
        %v2056 = vpop.f32.mrb[0].mxu0
        %v2057 = vadd.f32 0.0, %v2056
        %v2058 = vpop.f32.mrb[0].mxu0
        %v2059 = vadd.f32 0.0, %v2058
        %v2060 = vpop.f32.mrb[0].mxu0
        %v2061 = vadd.f32 0.0, %v2060
        %2062 = vmatprep.mubr.bf16.mxu0 0
        %2063 = vmatmul.mubr.bf16.gmra.mrb[0].mxu0 %v1735
        %v2064 = vpop.f32.mrb[0].mxu0
        %v2065 = vadd.f32 0.0, %v2064
        %v2066 = vpop.f32.mrb[0].mxu0
        %v2067 = vadd.f32 0.0, %v2066
        %v2068 = vpop.f32.mrb[0].mxu0
        %v2069 = vadd.f32 0.0, %v2068
        %v2070 = vpop.f32.mrb[0].mxu0
        %v2071 = vadd.f32 0.0, %v2070
        %2072 = vmatprep.mubr.bf16.mxu0 0
        %2073 = vmatmul.mubr.bf16.gmra.mrb[0].mxu0 %v1736
        %v2074 = vpop.f32.mrb[0].mxu0
        %v2075 = vadd.f32 0.0, %v2074
        %v2076 = vpop.f32.mrb[0].mxu0
        %v2077 = vadd.f32 0.0, %v2076
        %v2078 = vpop.f32.mrb[0].mxu0
        %v2079 = vadd.f32 0.0, %v2078
        %v2080 = vpop.f32.mrb[0].mxu0
        %v2081 = vadd.f32 0.0, %v2080
        %2082 = vmatprep.mubr.bf16.mxu0 0
        %2083 = vmatmul.mubr.bf16.gmra.mrb[0].mxu0 %v1737
        %v2084 = vpop.f32.mrb[0].mxu0
        %v2085 = vadd.f32 0.0, %v2084
        %v2086 = vpop.f32.mrb[0].mxu0
        %v2087 = vadd.f32 0.0, %v2086
        %v2088 = vpop.f32.mrb[0].mxu0
        %v2089 = vadd.f32 0.0, %v2088
        %v2090 = vpop.f32.mrb[0].mxu0
        %v2091 = vadd.f32 0.0, %v2090
        %2092 = vmatprep.mubr.bf16.mxu0 0
        %2093 = vmatmul.mubr.bf16.gmra.mrb[0].mxu0 %v1738
        %v2094 = vpop.f32.mrb[0].mxu0
        %v2095 = vadd.f32 0.0, %v2094
        %v2096 = vpop.f32.mrb[0].mxu0
        %v2097 = vadd.f32 0.0, %v2096
        %v2098 = vpop.f32.mrb[0].mxu0
        %v2099 = vadd.f32 0.0, %v2098
        %v2100 = vpop.f32.mrb[0].mxu0
        %v2101 = vadd.f32 0.0, %v2100
        %2102 = vmatprep.mubr.bf16.mxu0 0
        %2103 = vmatmul.mubr.bf16.gmra.mrb[0].mxu0 %v1739
        %v2104 = vpop.f32.mrb[0].mxu0
        %v2105 = vadd.f32 0.0, %v2104
        %v2106 = vpop.f32.mrb[0].mxu0
        %v2107 = vadd.f32 0.0, %v2106
        %v2108 = vpop.f32.mrb[0].mxu0
        %v2109 = vadd.f32 0.0, %v2108
        %v2110 = vpop.f32.mrb[0].mxu0
        %v2111 = vadd.f32 0.0, %v2110
        %2112 = vmatprep.mubr.bf16.mxu0 0
        %2113 = vmatmul.mubr.bf16.gmra.mrb[0].mxu0 %v1740
        %v2114 = vpop.f32.mrb[0].mxu0
        %v2115 = vadd.f32 0.0, %v2114
        %v2116 = vpop.f32.mrb[0].mxu0
        %v2117 = vadd.f32 0.0, %v2116
        %v2118 = vpop.f32.mrb[0].mxu0
        %v2119 = vadd.f32 0.0, %v2118
        %v2120 = vpop.f32.mrb[0].mxu0
        %v2121 = vadd.f32 0.0, %v2120
        %2122 = vmatprep.mubr.bf16.mxu0 0
        %2123 = vmatmul.mubr.bf16.gmra.mrb[0].mxu0 %v1741
        %v2124 = vpop.f32.mrb[0].mxu0
        %v2125 = vadd.f32 0.0, %v2124
        %v2126 = vpop.f32.mrb[0].mxu0
        %v2127 = vadd.f32 0.0, %v2126
        %v2128 = vpop.f32.mrb[0].mxu0
        %v2129 = vadd.f32 0.0, %v2128
        %v2130 = vpop.f32.mrb[0].mxu0
        %v2131 = vadd.f32 0.0, %v2130
        %2132 = vmatprep.mubr.bf16.mxu0 0
        %2133 = vmatmul.mubr.bf16.gmra.mrb[0].mxu0 %v1742
        %v2134 = vpop.f32.mrb[0].mxu0
        %v2135 = vadd.f32 0.0, %v2134
        %v2136 = vpop.f32.mrb[0].mxu0
        %v2137 = vadd.f32 0.0, %v2136
        %v2138 = vpop.f32.mrb[0].mxu0
        %v2139 = vadd.f32 0.0, %v2138
        %v2140 = vpop.f32.mrb[0].mxu0
        %v2141 = vadd.f32 0.0, %v2140
        %2142 = vmatprep.mubr.bf16.mxu0 0
        %2143 = vmatmul.mubr.bf16.gmra.mrb[0].mxu0 %v1743
        %v2144 = vpop.f32.mrb[0].mxu0
        %v2145 = vadd.f32 0.0, %v2144
        %v2146 = vpop.f32.mrb[0].mxu0
        %v2147 = vadd.f32 0.0, %v2146
        %v2148 = vpop.f32.mrb[0].mxu0
        %v2149 = vadd.f32 0.0, %v2148
        %v2150 = vpop.f32.mrb[0].mxu0
        %v2151 = vadd.f32 0.0, %v2150
        %2152 = vmatprep.mubr.bf16.mxu0 0
        %2153 = vmatmul.mubr.bf16.gmra.mrb[0].mxu0 %v1744
        %v2154 = vpop.f32.mrb[0].mxu0
        %v2155 = vadd.f32 0.0, %v2154
        %v2156 = vpop.f32.mrb[0].mxu0
        %v2157 = vadd.f32 0.0, %v2156
        %v2158 = vpop.f32.mrb[0].mxu0
        %v2159 = vadd.f32 0.0, %v2158
        %v2160 = vpop.f32.mrb[0].mxu0
        %v2161 = vadd.f32 0.0, %v2160
        %2162 = vdwg.mxu0
        %v2163 = vld [vmem:[#allocation3] sm:$0xff]
        %v2164 = vld [vmem:[#allocation3 + $0x8] sm:$0xff]
        %v2165 = vld [vmem:[#allocation3 + $0x10] sm:$0xff]
        %v2166 = vld [vmem:[#allocation3 + $0x18] sm:$0xff]
        %v2167 = vld [vmem:[#allocation3 + $0x20] sm:$0xff]
        %v2168 = vld [vmem:[#allocation3 + $0x28] sm:$0xff]
        %v2169 = vld [vmem:[#allocation3 + $0x30] sm:$0xff]
        %v2170 = vld [vmem:[#allocation3 + $0x38] sm:$0xff]
        %v2171 = vld [vmem:[#allocation3 + $0x40] sm:$0xff]
        %v2172 = vld [vmem:[#allocation3 + $0x48] sm:$0xff]
        %v2173 = vld [vmem:[#allocation3 + $0x50] sm:$0xff]
        %v2174 = vld [vmem:[#allocation3 + $0x58] sm:$0xff]
        %v2175 = vld [vmem:[#allocation3 + $0x60] sm:$0xff]
        %v2176 = vld [vmem:[#allocation3 + $0x68] sm:$0xff]
        %v2177 = vld [vmem:[#allocation3 + $0x70] sm:$0xff]
        %v2178 = vld [vmem:[#allocation3 + $0x78] sm:$0xff]
        %v2179 = vld [vmem:[#allocation3 + $0x80] sm:$0xff]
        %v2180 = vld [vmem:[#allocation3 + $0x88] sm:$0xff]
        %v2181 = vld [vmem:[#allocation3 + $0x90] sm:$0xff]
        %v2182 = vld [vmem:[#allocation3 + $0x98] sm:$0xff]
        %v2183 = vld [vmem:[#allocation3 + $0xa0] sm:$0xff]
        %v2184 = vld [vmem:[#allocation3 + $0xa8] sm:$0xff]
        %v2185 = vld [vmem:[#allocation3 + $0xb0] sm:$0xff]
        %v2186 = vld [vmem:[#allocation3 + $0xb8] sm:$0xff]
        %v2187 = vld [vmem:[#allocation3 + $0xc0] sm:$0xff]
        %v2188 = vld [vmem:[#allocation3 + $0xc8] sm:$0xff]
        %v2189 = vld [vmem:[#allocation3 + $0xd0] sm:$0xff]
        %v2190 = vld [vmem:[#allocation3 + $0xd8] sm:$0xff]
        %v2191 = vld [vmem:[#allocation3 + $0xe0] sm:$0xff]
        %v2192 = vld [vmem:[#allocation3 + $0xe8] sm:$0xff]
        %v2193 = vld [vmem:[#allocation3 + $0xf0] sm:$0xff]
        %v2194 = vld [vmem:[#allocation3 + $0xf8] sm:$0xff]
        %v2195 = vmax.f32 %v1812, %v1814
        %v2196 = vmax.f32 %v2195, %v2005
        %v2197 = vmax.f32 %v2196, %v2007
        %2198 = vmax.xlane.f32.xlu0 %v2197
        %v2199 = vpop.xlane.xlu0 %2198
        %v2200 = vmax.f32 %v1816, %v1818
        %v2201 = vmax.f32 %v2200, %v2009
        %v2202 = vmax.f32 %v2201, %v2011
        %2203 = vmax.xlane.f32.xlu0 %v2202
        %v2204 = vpop.xlane.xlu0 %2203
        %v2205 = vmax.f32 %v1822, %v1824
        %v2206 = vmax.f32 %v2205, %v2015
        %v2207 = vmax.f32 %v2206, %v2017
        %2208 = vmax.xlane.f32.xlu0 %v2207
        %v2209 = vpop.xlane.xlu0 %2208
        %v2210 = vmax.f32 %v1826, %v1828
        %v2211 = vmax.f32 %v2210, %v2019
        %v2212 = vmax.f32 %v2211, %v2021
        %2213 = vmax.xlane.f32.xlu0 %v2212
        %v2214 = vpop.xlane.xlu0 %2213
        %v2215 = vmax.f32 %v1832, %v1834
        %v2216 = vmax.f32 %v2215, %v2025
        %v2217 = vmax.f32 %v2216, %v2027
        %2218 = vmax.xlane.f32.xlu0 %v2217
        %v2219 = vpop.xlane.xlu0 %2218
        %v2220 = vmax.f32 %v1836, %v1838
        %v2221 = vmax.f32 %v2220, %v2029
        %v2222 = vmax.f32 %v2221, %v2031
        %2223 = vmax.xlane.f32.xlu0 %v2222
        %v2224 = vpop.xlane.xlu0 %2223
        %v2225 = vmax.f32 %v1842, %v1844
        %v2226 = vmax.f32 %v2225, %v2035
        %v2227 = vmax.f32 %v2226, %v2037
        %2228 = vmax.xlane.f32.xlu0 %v2227
        %v2229 = vpop.xlane.xlu0 %2228
        %v2230 = vmax.f32 %v1846, %v1848
        %v2231 = vmax.f32 %v2230, %v2039
        %v2232 = vmax.f32 %v2231, %v2041
        %2233 = vmax.xlane.f32.xlu0 %v2232
        %v2234 = vpop.xlane.xlu0 %2233
        %v2235 = vmax.f32 %v1852, %v1854
        %v2236 = vmax.f32 %v2235, %v2045
        %v2237 = vmax.f32 %v2236, %v2047
        %2238 = vmax.xlane.f32.xlu0 %v2237
        %v2239 = vpop.xlane.xlu0 %2238
        %v2240 = vmax.f32 %v1856, %v1858
        %v2241 = vmax.f32 %v2240, %v2049
        %v2242 = vmax.f32 %v2241, %v2051
        %2243 = vmax.xlane.f32.xlu0 %v2242
        %v2244 = vpop.xlane.xlu0 %2243
        %v2245 = vmax.f32 %v1862, %v1864
        %v2246 = vmax.f32 %v2245, %v2055
        %v2247 = vmax.f32 %v2246, %v2057
        %2248 = vmax.xlane.f32.xlu0 %v2247
        %v2249 = vpop.xlane.xlu0 %2248
        %v2250 = vmax.f32 %v1866, %v1868
        %v2251 = vmax.f32 %v2250, %v2059
        %v2252 = vmax.f32 %v2251, %v2061
        %2253 = vmax.xlane.f32.xlu0 %v2252
        %v2254 = vpop.xlane.xlu0 %2253
        %v2255 = vmax.f32 %v1872, %v1874
        %v2256 = vmax.f32 %v2255, %v2065
        %v2257 = vmax.f32 %v2256, %v2067
        %2258 = vmax.xlane.f32.xlu0 %v2257
        %v2259 = vpop.xlane.xlu0 %2258
        %v2260 = vmax.f32 %v1876, %v1878
        %v2261 = vmax.f32 %v2260, %v2069
        %v2262 = vmax.f32 %v2261, %v2071
        %2263 = vmax.xlane.f32.xlu0 %v2262
        %v2264 = vpop.xlane.xlu0 %2263
        %v2265 = vmax.f32 %v1882, %v1884
        %v2266 = vmax.f32 %v2265, %v2075
        %v2267 = vmax.f32 %v2266, %v2077
        %2268 = vmax.xlane.f32.xlu0 %v2267
        %v2269 = vpop.xlane.xlu0 %2268
        %v2270 = vmax.f32 %v1886, %v1888
        %v2271 = vmax.f32 %v2270, %v2079
        %v2272 = vmax.f32 %v2271, %v2081
        %2273 = vmax.xlane.f32.xlu0 %v2272
        %v2274 = vpop.xlane.xlu0 %2273
        %v2275 = vmax.f32 %v1892, %v1894
        %v2276 = vmax.f32 %v2275, %v2085
        %v2277 = vmax.f32 %v2276, %v2087
        %2278 = vmax.xlane.f32.xlu0 %v2277
        %v2279 = vpop.xlane.xlu0 %2278
        %v2280 = vmax.f32 %v1896, %v1898
        %v2281 = vmax.f32 %v2280, %v2089
        %v2282 = vmax.f32 %v2281, %v2091
        %2283 = vmax.xlane.f32.xlu0 %v2282
        %v2284 = vpop.xlane.xlu0 %2283
        %v2285 = vmax.f32 %v1902, %v1904
        %v2286 = vmax.f32 %v2285, %v2095
        %v2287 = vmax.f32 %v2286, %v2097
        %2288 = vmax.xlane.f32.xlu0 %v2287
        %v2289 = vpop.xlane.xlu0 %2288
        %v2290 = vmax.f32 %v1906, %v1908
        %v2291 = vmax.f32 %v2290, %v2099
        %v2292 = vmax.f32 %v2291, %v2101
        %2293 = vmax.xlane.f32.xlu0 %v2292
        %v2294 = vpop.xlane.xlu0 %2293
        %v2295 = vmax.f32 %v1912, %v1914
        %v2296 = vmax.f32 %v2295, %v2105
        %v2297 = vmax.f32 %v2296, %v2107
        %2298 = vmax.xlane.f32.xlu0 %v2297
        %v2299 = vpop.xlane.xlu0 %2298
        %v2300 = vmax.f32 %v1916, %v1918
        %v2301 = vmax.f32 %v2300, %v2109
        %v2302 = vmax.f32 %v2301, %v2111
        %2303 = vmax.xlane.f32.xlu0 %v2302
        %v2304 = vpop.xlane.xlu0 %2303
        %v2305 = vmax.f32 %v1922, %v1924
        %v2306 = vmax.f32 %v2305, %v2115
        %v2307 = vmax.f32 %v2306, %v2117
        %2308 = vmax.xlane.f32.xlu0 %v2307
        %v2309 = vpop.xlane.xlu0 %2308
        %v2310 = vmax.f32 %v1926, %v1928
        %v2311 = vmax.f32 %v2310, %v2119
        %v2312 = vmax.f32 %v2311, %v2121
        %2313 = vmax.xlane.f32.xlu0 %v2312
        %v2314 = vpop.xlane.xlu0 %2313
        %v2315 = vmax.f32 %v1932, %v1934
        %v2316 = vmax.f32 %v2315, %v2125
        %v2317 = vmax.f32 %v2316, %v2127
        %2318 = vmax.xlane.f32.xlu0 %v2317
        %v2319 = vpop.xlane.xlu0 %2318
        %v2320 = vmax.f32 %v1936, %v1938
        %v2321 = vmax.f32 %v2320, %v2129
        %v2322 = vmax.f32 %v2321, %v2131
        %2323 = vmax.xlane.f32.xlu0 %v2322
        %v2324 = vpop.xlane.xlu0 %2323
        %v2325 = vmax.f32 %v1942, %v1944
        %v2326 = vmax.f32 %v2325, %v2135
        %v2327 = vmax.f32 %v2326, %v2137
        %2328 = vmax.xlane.f32.xlu0 %v2327
        %v2329 = vpop.xlane.xlu0 %2328
        %v2330 = vmax.f32 %v1946, %v1948
        %v2331 = vmax.f32 %v2330, %v2139
        %v2332 = vmax.f32 %v2331, %v2141
        %2333 = vmax.xlane.f32.xlu0 %v2332
        %v2334 = vpop.xlane.xlu0 %2333
        %v2335 = vmax.f32 %v1952, %v1954
        %v2336 = vmax.f32 %v2335, %v2145
        %v2337 = vmax.f32 %v2336, %v2147
        %2338 = vmax.xlane.f32.xlu0 %v2337
        %v2339 = vpop.xlane.xlu0 %2338
        %v2340 = vmax.f32 %v1956, %v1958
        %v2341 = vmax.f32 %v2340, %v2149
        %v2342 = vmax.f32 %v2341, %v2151
        %2343 = vmax.xlane.f32.xlu0 %v2342
        %v2344 = vpop.xlane.xlu0 %2343
        %v2345 = vmax.f32 %v1962, %v1964
        %v2346 = vmax.f32 %v2345, %v2155
        %v2347 = vmax.f32 %v2346, %v2157
        %2348 = vmax.xlane.f32.xlu0 %v2347
        %v2349 = vpop.xlane.xlu0 %2348
        %v2350 = vmax.f32 %v1966, %v1968
        %v2351 = vmax.f32 %v2350, %v2159
        %v2352 = vmax.f32 %v2351, %v2161
        %2353 = vmax.xlane.f32.xlu0 %v2352
        %v2354 = vpop.xlane.xlu0 %2353
        %v2355 = vmax.f32 %v2163, %v2199
        %v2356 = vmax.f32 %v2164, %v2204
        %v2357 = vmax.f32 %v2165, %v2209
        %v2358 = vmax.f32 %v2166, %v2214
        %v2359 = vmax.f32 %v2167, %v2219
        %v2360 = vmax.f32 %v2168, %v2224
        %v2361 = vmax.f32 %v2169, %v2229
        %v2362 = vmax.f32 %v2170, %v2234
        %v2363 = vmax.f32 %v2171, %v2239
        %v2364 = vmax.f32 %v2172, %v2244
        %v2365 = vmax.f32 %v2173, %v2249
        %v2366 = vmax.f32 %v2174, %v2254
        %v2367 = vmax.f32 %v2175, %v2259
        %v2368 = vmax.f32 %v2176, %v2264
        %v2369 = vmax.f32 %v2177, %v2269
        %v2370 = vmax.f32 %v2178, %v2274
        %v2371 = vmax.f32 %v2179, %v2279
        %v2372 = vmax.f32 %v2180, %v2284
        %v2373 = vmax.f32 %v2181, %v2289
        %v2374 = vmax.f32 %v2182, %v2294
        %v2375 = vmax.f32 %v2183, %v2299
        %v2376 = vmax.f32 %v2184, %v2304
        %v2377 = vmax.f32 %v2185, %v2309
        %v2378 = vmax.f32 %v2186, %v2314
        %v2379 = vmax.f32 %v2187, %v2319
        %v2380 = vmax.f32 %v2188, %v2324
        %v2381 = vmax.f32 %v2189, %v2329
        %v2382 = vmax.f32 %v2190, %v2334
        %v2383 = vmax.f32 %v2191, %v2339
        %v2384 = vmax.f32 %v2192, %v2344
        %v2385 = vmax.f32 %v2193, %v2349
        %v2386 = vmax.f32 %v2194, %v2354
        %v2387 = vsub.f32 %v2163, %v2355
        %v2388 = vsub.f32 %v2164, %v2356
        %v2389 = vsub.f32 %v2165, %v2357
        %v2390 = vsub.f32 %v2166, %v2358
        %v2391 = vsub.f32 %v2167, %v2359
        %v2392 = vsub.f32 %v2168, %v2360
        %v2393 = vsub.f32 %v2169, %v2361
        %v2394 = vsub.f32 %v2170, %v2362
        %v2395 = vsub.f32 %v2171, %v2363
        %v2396 = vsub.f32 %v2172, %v2364
        %v2397 = vsub.f32 %v2173, %v2365
        %v2398 = vsub.f32 %v2174, %v2366
        %v2399 = vsub.f32 %v2175, %v2367
        %v2400 = vsub.f32 %v2176, %v2368
        %v2401 = vsub.f32 %v2177, %v2369
        %v2402 = vsub.f32 %v2178, %v2370
        %v2403 = vsub.f32 %v2179, %v2371
        %v2404 = vsub.f32 %v2180, %v2372
        %v2405 = vsub.f32 %v2181, %v2373
        %v2406 = vsub.f32 %v2182, %v2374
        %v2407 = vsub.f32 %v2183, %v2375
        %v2408 = vsub.f32 %v2184, %v2376
        %v2409 = vsub.f32 %v2185, %v2377
        %v2410 = vsub.f32 %v2186, %v2378
        %v2411 = vsub.f32 %v2187, %v2379
        %v2412 = vsub.f32 %v2188, %v2380
        %v2413 = vsub.f32 %v2189, %v2381
        %v2414 = vsub.f32 %v2190, %v2382
        %v2415 = vsub.f32 %v2191, %v2383
        %v2416 = vsub.f32 %v2192, %v2384
        %v2417 = vsub.f32 %v2193, %v2385
        %v2418 = vsub.f32 %v2194, %v2386
        %v2419 = vmul.f32 %v2387, 1.442695
        %v2420 = vpow.pop %v2419
        %v2421 = vmul.f32 %v2388, 1.442695
        %v2422 = vpow.pop %v2421
        %v2423 = vmul.f32 %v2389, 1.442695
        %v2424 = vpow.pop %v2423
        %v2425 = vmul.f32 %v2390, 1.442695
        %v2426 = vpow.pop %v2425
        %v2427 = vmul.f32 %v2391, 1.442695
        %v2428 = vpow.pop %v2427
        %v2429 = vmul.f32 %v2392, 1.442695
        %v2430 = vpow.pop %v2429
        %v2431 = vmul.f32 %v2393, 1.442695
        %v2432 = vpow.pop %v2431
        %v2433 = vmul.f32 %v2394, 1.442695
        %v2434 = vpow.pop %v2433
        %v2435 = vmul.f32 %v2395, 1.442695
        %v2436 = vpow.pop %v2435
        %v2437 = vmul.f32 %v2396, 1.442695
        %v2438 = vpow.pop %v2437
        %v2439 = vmul.f32 %v2397, 1.442695
        %v2440 = vpow.pop %v2439
        %v2441 = vmul.f32 %v2398, 1.442695
        %v2442 = vpow.pop %v2441
        %v2443 = vmul.f32 %v2399, 1.442695
        %v2444 = vpow.pop %v2443
        %v2445 = vmul.f32 %v2400, 1.442695
        %v2446 = vpow.pop %v2445
        %v2447 = vmul.f32 %v2401, 1.442695
        %v2448 = vpow.pop %v2447
        %v2449 = vmul.f32 %v2402, 1.442695
        %v2450 = vpow.pop %v2449
        %v2451 = vmul.f32 %v2403, 1.442695
        %v2452 = vpow.pop %v2451
        %v2453 = vmul.f32 %v2404, 1.442695
        %v2454 = vpow.pop %v2453
        %v2455 = vmul.f32 %v2405, 1.442695
        %v2456 = vpow.pop %v2455
        %v2457 = vmul.f32 %v2406, 1.442695
        %v2458 = vpow.pop %v2457
        %v2459 = vmul.f32 %v2407, 1.442695
        %v2460 = vpow.pop %v2459
        %v2461 = vmul.f32 %v2408, 1.442695
        %v2462 = vpow.pop %v2461
        %v2463 = vmul.f32 %v2409, 1.442695
        %v2464 = vpow.pop %v2463
        %v2465 = vmul.f32 %v2410, 1.442695
        %v2466 = vpow.pop %v2465
        %v2467 = vmul.f32 %v2411, 1.442695
        %v2468 = vpow.pop %v2467
        %v2469 = vmul.f32 %v2412, 1.442695
        %v2470 = vpow.pop %v2469
        %v2471 = vmul.f32 %v2413, 1.442695
        %v2472 = vpow.pop %v2471
        %v2473 = vmul.f32 %v2414, 1.442695
        %v2474 = vpow.pop %v2473
        %v2475 = vmul.f32 %v2415, 1.442695
        %v2476 = vpow.pop %v2475
        %v2477 = vmul.f32 %v2416, 1.442695
        %v2478 = vpow.pop %v2477
        %v2479 = vmul.f32 %v2417, 1.442695
        %v2480 = vpow.pop %v2479
        %v2481 = vmul.f32 %v2418, 1.442695
        %v2482 = vpow.pop %v2481
        %2484 = vset.pattern.permute.xlu0 0
        %2485 = vperm.xlu0 %2484, %v2355
        %v2486 = vpop.permute.xlu0 %2485
        %2489 = vset.pattern.permute.xlu0 0
        %2490 = vperm.xlu0 %2489, %v2356
        %v2491 = vpop.permute.xlu0 %2490
        %2494 = vset.pattern.permute.xlu0 0
        %2495 = vperm.xlu0 %2494, %v2357
        %v2496 = vpop.permute.xlu0 %2495
        %2499 = vset.pattern.permute.xlu0 0
        %2500 = vperm.xlu0 %2499, %v2358
        %v2501 = vpop.permute.xlu0 %2500
        %2504 = vset.pattern.permute.xlu0 0
        %2505 = vperm.xlu0 %2504, %v2359
        %v2506 = vpop.permute.xlu0 %2505
        %2509 = vset.pattern.permute.xlu0 0
        %2510 = vperm.xlu0 %2509, %v2360
        %v2511 = vpop.permute.xlu0 %2510
        %2514 = vset.pattern.permute.xlu0 0
        %2515 = vperm.xlu0 %2514, %v2361
        %v2516 = vpop.permute.xlu0 %2515
        %2519 = vset.pattern.permute.xlu0 0
        %2520 = vperm.xlu0 %2519, %v2362
        %v2521 = vpop.permute.xlu0 %2520
        %2524 = vset.pattern.permute.xlu0 0
        %2525 = vperm.xlu0 %2524, %v2363
        %v2526 = vpop.permute.xlu0 %2525
        %2529 = vset.pattern.permute.xlu0 0
        %2530 = vperm.xlu0 %2529, %v2364
        %v2531 = vpop.permute.xlu0 %2530
        %2534 = vset.pattern.permute.xlu0 0
        %2535 = vperm.xlu0 %2534, %v2365
        %v2536 = vpop.permute.xlu0 %2535
        %2539 = vset.pattern.permute.xlu0 0
        %2540 = vperm.xlu0 %2539, %v2366
        %v2541 = vpop.permute.xlu0 %2540
        %2544 = vset.pattern.permute.xlu0 0
        %2545 = vperm.xlu0 %2544, %v2367
        %v2546 = vpop.permute.xlu0 %2545
        %2549 = vset.pattern.permute.xlu0 0
        %2550 = vperm.xlu0 %2549, %v2368
        %v2551 = vpop.permute.xlu0 %2550
        %2554 = vset.pattern.permute.xlu0 0
        %2555 = vperm.xlu0 %2554, %v2369
        %v2556 = vpop.permute.xlu0 %2555
        %2559 = vset.pattern.permute.xlu0 0
        %2560 = vperm.xlu0 %2559, %v2370
        %v2561 = vpop.permute.xlu0 %2560
        %2564 = vset.pattern.permute.xlu0 0
        %2565 = vperm.xlu0 %2564, %v2371
        %v2566 = vpop.permute.xlu0 %2565
        %2569 = vset.pattern.permute.xlu0 0
        %2570 = vperm.xlu0 %2569, %v2372
        %v2571 = vpop.permute.xlu0 %2570
        %2574 = vset.pattern.permute.xlu0 0
        %2575 = vperm.xlu0 %2574, %v2373
        %v2576 = vpop.permute.xlu0 %2575
        %2579 = vset.pattern.permute.xlu0 0
        %2580 = vperm.xlu0 %2579, %v2374
        %v2581 = vpop.permute.xlu0 %2580
        %2584 = vset.pattern.permute.xlu0 0
        %2585 = vperm.xlu0 %2584, %v2375
        %v2586 = vpop.permute.xlu0 %2585
        %2589 = vset.pattern.permute.xlu0 0
        %2590 = vperm.xlu0 %2589, %v2376
        %v2591 = vpop.permute.xlu0 %2590
        %2594 = vset.pattern.permute.xlu0 0
        %2595 = vperm.xlu0 %2594, %v2377
        %v2596 = vpop.permute.xlu0 %2595
        %2599 = vset.pattern.permute.xlu0 0
        %2600 = vperm.xlu0 %2599, %v2378
        %v2601 = vpop.permute.xlu0 %2600
        %2604 = vset.pattern.permute.xlu0 0
        %2605 = vperm.xlu0 %2604, %v2379
        %v2606 = vpop.permute.xlu0 %2605
        %2609 = vset.pattern.permute.xlu0 0
        %2610 = vperm.xlu0 %2609, %v2380
        %v2611 = vpop.permute.xlu0 %2610
        %2614 = vset.pattern.permute.xlu0 0
        %2615 = vperm.xlu0 %2614, %v2381
        %v2616 = vpop.permute.xlu0 %2615
        %2619 = vset.pattern.permute.xlu0 0
        %2620 = vperm.xlu0 %2619, %v2382
        %v2621 = vpop.permute.xlu0 %2620
        %2624 = vset.pattern.permute.xlu0 0
        %2625 = vperm.xlu0 %2624, %v2383
        %v2626 = vpop.permute.xlu0 %2625
        %2629 = vset.pattern.permute.xlu0 0
        %2630 = vperm.xlu0 %2629, %v2384
        %v2631 = vpop.permute.xlu0 %2630
        %2634 = vset.pattern.permute.xlu0 0
        %2635 = vperm.xlu0 %2634, %v2385
        %v2636 = vpop.permute.xlu0 %2635
        %2639 = vset.pattern.permute.xlu0 0
        %2640 = vperm.xlu0 %2639, %v2386
        %v2641 = vpop.permute.xlu0 %2640
        %v2643 = vsub.f32 %v1812, %v2486
        %v2644 = vsub.f32 %v1814, %v2486
        %v2645 = vsub.f32 %v2005, %v2486
        %v2646 = vsub.f32 %v2007, %v2486
        %v2647 = vsub.f32 %v1816, %v2491
        %v2648 = vsub.f32 %v1818, %v2491
        %v2649 = vsub.f32 %v2009, %v2491
        %v2650 = vsub.f32 %v2011, %v2491
        %v2651 = vsub.f32 %v1822, %v2496
        %v2652 = vsub.f32 %v1824, %v2496
        %v2653 = vsub.f32 %v2015, %v2496
        %v2654 = vsub.f32 %v2017, %v2496
        %v2655 = vsub.f32 %v1826, %v2501
        %v2656 = vsub.f32 %v1828, %v2501
        %v2657 = vsub.f32 %v2019, %v2501
        %v2658 = vsub.f32 %v2021, %v2501
        %v2659 = vsub.f32 %v1832, %v2506
        %v2660 = vsub.f32 %v1834, %v2506
        %v2661 = vsub.f32 %v2025, %v2506
        %v2662 = vsub.f32 %v2027, %v2506
        %v2663 = vsub.f32 %v1836, %v2511
        %v2664 = vsub.f32 %v1838, %v2511
        %v2665 = vsub.f32 %v2029, %v2511
        %v2666 = vsub.f32 %v2031, %v2511
        %v2667 = vsub.f32 %v1842, %v2516
        %v2668 = vsub.f32 %v1844, %v2516
        %v2669 = vsub.f32 %v2035, %v2516
        %v2670 = vsub.f32 %v2037, %v2516
        %v2671 = vsub.f32 %v1846, %v2521
        %v2672 = vsub.f32 %v1848, %v2521
        %v2673 = vsub.f32 %v2039, %v2521
        %v2674 = vsub.f32 %v2041, %v2521
        %v2675 = vsub.f32 %v1852, %v2526
        %v2676 = vsub.f32 %v1854, %v2526
        %v2677 = vsub.f32 %v2045, %v2526
        %v2678 = vsub.f32 %v2047, %v2526
        %v2679 = vsub.f32 %v1856, %v2531
        %v2680 = vsub.f32 %v1858, %v2531
        %v2681 = vsub.f32 %v2049, %v2531
        %v2682 = vsub.f32 %v2051, %v2531
        %v2683 = vsub.f32 %v1862, %v2536
        %v2684 = vsub.f32 %v1864, %v2536
        %v2685 = vsub.f32 %v2055, %v2536
        %v2686 = vsub.f32 %v2057, %v2536
        %v2687 = vsub.f32 %v1866, %v2541
        %v2688 = vsub.f32 %v1868, %v2541
        %v2689 = vsub.f32 %v2059, %v2541
        %v2690 = vsub.f32 %v2061, %v2541
        %v2691 = vsub.f32 %v1872, %v2546
        %v2692 = vsub.f32 %v1874, %v2546
        %v2693 = vsub.f32 %v2065, %v2546
        %v2694 = vsub.f32 %v2067, %v2546
        %v2695 = vsub.f32 %v1876, %v2551
        %v2696 = vsub.f32 %v1878, %v2551
        %v2697 = vsub.f32 %v2069, %v2551
        %v2698 = vsub.f32 %v2071, %v2551
        %v2699 = vsub.f32 %v1882, %v2556
        %v2700 = vsub.f32 %v1884, %v2556
        %v2701 = vsub.f32 %v2075, %v2556
        %v2702 = vsub.f32 %v2077, %v2556
        %v2703 = vsub.f32 %v1886, %v2561
        %v2704 = vsub.f32 %v1888, %v2561
        %v2705 = vsub.f32 %v2079, %v2561
        %v2706 = vsub.f32 %v2081, %v2561
        %v2707 = vsub.f32 %v1892, %v2566
        %v2708 = vsub.f32 %v1894, %v2566
        %v2709 = vsub.f32 %v2085, %v2566
        %v2710 = vsub.f32 %v2087, %v2566
        %v2711 = vsub.f32 %v1896, %v2571
        %v2712 = vsub.f32 %v1898, %v2571
        %v2713 = vsub.f32 %v2089, %v2571
        %v2714 = vsub.f32 %v2091, %v2571
        %v2715 = vsub.f32 %v1902, %v2576
        %v2716 = vsub.f32 %v1904, %v2576
        %v2717 = vsub.f32 %v2095, %v2576
        %v2718 = vsub.f32 %v2097, %v2576
        %v2719 = vsub.f32 %v1906, %v2581
        %v2720 = vsub.f32 %v1908, %v2581
        %v2721 = vsub.f32 %v2099, %v2581
        %v2722 = vsub.f32 %v2101, %v2581
        %v2723 = vsub.f32 %v1912, %v2586
        %v2724 = vsub.f32 %v1914, %v2586
        %v2725 = vsub.f32 %v2105, %v2586
        %v2726 = vsub.f32 %v2107, %v2586
        %v2727 = vsub.f32 %v1916, %v2591
        %v2728 = vsub.f32 %v1918, %v2591
        %v2729 = vsub.f32 %v2109, %v2591
        %v2730 = vsub.f32 %v2111, %v2591
        %v2731 = vsub.f32 %v1922, %v2596
        %v2732 = vsub.f32 %v1924, %v2596
        %v2733 = vsub.f32 %v2115, %v2596
        %v2734 = vsub.f32 %v2117, %v2596
        %v2735 = vsub.f32 %v1926, %v2601
        %v2736 = vsub.f32 %v1928, %v2601
        %v2737 = vsub.f32 %v2119, %v2601
        %v2738 = vsub.f32 %v2121, %v2601
        %v2739 = vsub.f32 %v1932, %v2606
        %v2740 = vsub.f32 %v1934, %v2606
        %v2741 = vsub.f32 %v2125, %v2606
        %v2742 = vsub.f32 %v2127, %v2606
        %v2743 = vsub.f32 %v1936, %v2611
        %v2744 = vsub.f32 %v1938, %v2611
        %v2745 = vsub.f32 %v2129, %v2611
        %v2746 = vsub.f32 %v2131, %v2611
        %v2747 = vsub.f32 %v1942, %v2616
        %v2748 = vsub.f32 %v1944, %v2616
        %v2749 = vsub.f32 %v2135, %v2616
        %v2750 = vsub.f32 %v2137, %v2616
        %v2751 = vsub.f32 %v1946, %v2621
        %v2752 = vsub.f32 %v1948, %v2621
        %v2753 = vsub.f32 %v2139, %v2621
        %v2754 = vsub.f32 %v2141, %v2621
        %v2755 = vsub.f32 %v1952, %v2626
        %v2756 = vsub.f32 %v1954, %v2626
        %v2757 = vsub.f32 %v2145, %v2626
        %v2758 = vsub.f32 %v2147, %v2626
        %v2759 = vsub.f32 %v1956, %v2631
        %v2760 = vsub.f32 %v1958, %v2631
        %v2761 = vsub.f32 %v2149, %v2631
        %v2762 = vsub.f32 %v2151, %v2631
        %v2763 = vsub.f32 %v1962, %v2636
        %v2764 = vsub.f32 %v1964, %v2636
        %v2765 = vsub.f32 %v2155, %v2636
        %v2766 = vsub.f32 %v2157, %v2636
        %v2767 = vsub.f32 %v1966, %v2641
        %v2768 = vsub.f32 %v1968, %v2641
        %v2769 = vsub.f32 %v2159, %v2641
        %v2770 = vsub.f32 %v2161, %v2641
        %v2771 = vmul.f32 %v2643, 1.442695
        %v2772 = vpow.pop %v2771
        %v2773 = vmul.f32 %v2644, 1.442695
        %v2774 = vpow.pop %v2773
        %v2775 = vmul.f32 %v2645, 1.442695
        %v2776 = vpow.pop %v2775
        %v2777 = vmul.f32 %v2646, 1.442695
        %v2778 = vpow.pop %v2777
        %v2779 = vmul.f32 %v2647, 1.442695
        %v2780 = vpow.pop %v2779
        %v2781 = vmul.f32 %v2648, 1.442695
        %v2782 = vpow.pop %v2781
        %v2783 = vmul.f32 %v2649, 1.442695
        %v2784 = vpow.pop %v2783
        %v2785 = vmul.f32 %v2650, 1.442695
        %v2786 = vpow.pop %v2785
        %v2787 = vmul.f32 %v2651, 1.442695
        %v2788 = vpow.pop %v2787
        %v2789 = vmul.f32 %v2652, 1.442695
        %v2790 = vpow.pop %v2789
        %v2791 = vmul.f32 %v2653, 1.442695
        %v2792 = vpow.pop %v2791
        %v2793 = vmul.f32 %v2654, 1.442695
        %v2794 = vpow.pop %v2793
        %v2795 = vmul.f32 %v2655, 1.442695
        %v2796 = vpow.pop %v2795
        %v2797 = vmul.f32 %v2656, 1.442695
        %v2798 = vpow.pop %v2797
        %v2799 = vmul.f32 %v2657, 1.442695
        %v2800 = vpow.pop %v2799
        %v2801 = vmul.f32 %v2658, 1.442695
        %v2802 = vpow.pop %v2801
        %v2803 = vmul.f32 %v2659, 1.442695
        %v2804 = vpow.pop %v2803
        %v2805 = vmul.f32 %v2660, 1.442695
        %v2806 = vpow.pop %v2805
        %v2807 = vmul.f32 %v2661, 1.442695
        %v2808 = vpow.pop %v2807
        %v2809 = vmul.f32 %v2662, 1.442695
        %v2810 = vpow.pop %v2809
        %v2811 = vmul.f32 %v2663, 1.442695
        %v2812 = vpow.pop %v2811
        %v2813 = vmul.f32 %v2664, 1.442695
        %v2814 = vpow.pop %v2813
        %v2815 = vmul.f32 %v2665, 1.442695
        %v2816 = vpow.pop %v2815
        %v2817 = vmul.f32 %v2666, 1.442695
        %v2818 = vpow.pop %v2817
        %v2819 = vmul.f32 %v2667, 1.442695
        %v2820 = vpow.pop %v2819
        %v2821 = vmul.f32 %v2668, 1.442695
        %v2822 = vpow.pop %v2821
        %v2823 = vmul.f32 %v2669, 1.442695
        %v2824 = vpow.pop %v2823
        %v2825 = vmul.f32 %v2670, 1.442695
        %v2826 = vpow.pop %v2825
        %v2827 = vmul.f32 %v2671, 1.442695
        %v2828 = vpow.pop %v2827
        %v2829 = vmul.f32 %v2672, 1.442695
        %v2830 = vpow.pop %v2829
        %v2831 = vmul.f32 %v2673, 1.442695
        %v2832 = vpow.pop %v2831
        %v2833 = vmul.f32 %v2674, 1.442695
        %v2834 = vpow.pop %v2833
        %v2835 = vmul.f32 %v2675, 1.442695
        %v2836 = vpow.pop %v2835
        %v2837 = vmul.f32 %v2676, 1.442695
        %v2838 = vpow.pop %v2837
        %v2839 = vmul.f32 %v2677, 1.442695
        %v2840 = vpow.pop %v2839
        %v2841 = vmul.f32 %v2678, 1.442695
        %v2842 = vpow.pop %v2841
        %v2843 = vmul.f32 %v2679, 1.442695
        %v2844 = vpow.pop %v2843
        %v2845 = vmul.f32 %v2680, 1.442695
        %v2846 = vpow.pop %v2845
        %v2847 = vmul.f32 %v2681, 1.442695
        %v2848 = vpow.pop %v2847
        %v2849 = vmul.f32 %v2682, 1.442695
        %v2850 = vpow.pop %v2849
        %v2851 = vmul.f32 %v2683, 1.442695
        %v2852 = vpow.pop %v2851
        %v2853 = vmul.f32 %v2684, 1.442695
        %v2854 = vpow.pop %v2853
        %v2855 = vmul.f32 %v2685, 1.442695
        %v2856 = vpow.pop %v2855
        %v2857 = vmul.f32 %v2686, 1.442695
        %v2858 = vpow.pop %v2857
        %v2859 = vmul.f32 %v2687, 1.442695
        %v2860 = vpow.pop %v2859
        %v2861 = vmul.f32 %v2688, 1.442695
        %v2862 = vpow.pop %v2861
        %v2863 = vmul.f32 %v2689, 1.442695
        %v2864 = vpow.pop %v2863
        %v2865 = vmul.f32 %v2690, 1.442695
        %v2866 = vpow.pop %v2865
        %v2867 = vmul.f32 %v2691, 1.442695
        %v2868 = vpow.pop %v2867
        %v2869 = vmul.f32 %v2692, 1.442695
        %v2870 = vpow.pop %v2869
        %v2871 = vmul.f32 %v2693, 1.442695
        %v2872 = vpow.pop %v2871
        %v2873 = vmul.f32 %v2694, 1.442695
        %v2874 = vpow.pop %v2873
        %v2875 = vmul.f32 %v2695, 1.442695
        %v2876 = vpow.pop %v2875
        %v2877 = vmul.f32 %v2696, 1.442695
        %v2878 = vpow.pop %v2877
        %v2879 = vmul.f32 %v2697, 1.442695
        %v2880 = vpow.pop %v2879
        %v2881 = vmul.f32 %v2698, 1.442695
        %v2882 = vpow.pop %v2881
        %v2883 = vmul.f32 %v2699, 1.442695
        %v2884 = vpow.pop %v2883
        %v2885 = vmul.f32 %v2700, 1.442695
        %v2886 = vpow.pop %v2885
        %v2887 = vmul.f32 %v2701, 1.442695
        %v2888 = vpow.pop %v2887
        %v2889 = vmul.f32 %v2702, 1.442695
        %v2890 = vpow.pop %v2889
        %v2891 = vmul.f32 %v2703, 1.442695
        %v2892 = vpow.pop %v2891
        %v2893 = vmul.f32 %v2704, 1.442695
        %v2894 = vpow.pop %v2893
        %v2895 = vmul.f32 %v2705, 1.442695
        %v2896 = vpow.pop %v2895
        %v2897 = vmul.f32 %v2706, 1.442695
        %v2898 = vpow.pop %v2897
        %v2899 = vmul.f32 %v2707, 1.442695
        %v2900 = vpow.pop %v2899
        %v2901 = vmul.f32 %v2708, 1.442695
        %v2902 = vpow.pop %v2901
        %v2903 = vmul.f32 %v2709, 1.442695
        %v2904 = vpow.pop %v2903
        %v2905 = vmul.f32 %v2710, 1.442695
        %v2906 = vpow.pop %v2905
        %v2907 = vmul.f32 %v2711, 1.442695
        %v2908 = vpow.pop %v2907
        %v2909 = vmul.f32 %v2712, 1.442695
        %v2910 = vpow.pop %v2909
        %v2911 = vmul.f32 %v2713, 1.442695
        %v2912 = vpow.pop %v2911
        %v2913 = vmul.f32 %v2714, 1.442695
        %v2914 = vpow.pop %v2913
        %v2915 = vmul.f32 %v2715, 1.442695
        %v2916 = vpow.pop %v2915
        %v2917 = vmul.f32 %v2716, 1.442695
        %v2918 = vpow.pop %v2917
        %v2919 = vmul.f32 %v2717, 1.442695
        %v2920 = vpow.pop %v2919
        %v2921 = vmul.f32 %v2718, 1.442695
        %v2922 = vpow.pop %v2921
        %v2923 = vmul.f32 %v2719, 1.442695
        %v2924 = vpow.pop %v2923
        %v2925 = vmul.f32 %v2720, 1.442695
        %v2926 = vpow.pop %v2925
        %v2927 = vmul.f32 %v2721, 1.442695
        %v2928 = vpow.pop %v2927
        %v2929 = vmul.f32 %v2722, 1.442695
        %v2930 = vpow.pop %v2929
        %v2931 = vmul.f32 %v2723, 1.442695
        %v2932 = vpow.pop %v2931
        %v2933 = vmul.f32 %v2724, 1.442695
        %v2934 = vpow.pop %v2933
        %v2935 = vmul.f32 %v2725, 1.442695
        %v2936 = vpow.pop %v2935
        %v2937 = vmul.f32 %v2726, 1.442695
        %v2938 = vpow.pop %v2937
        %v2939 = vmul.f32 %v2727, 1.442695
        %v2940 = vpow.pop %v2939
        %v2941 = vmul.f32 %v2728, 1.442695
        %v2942 = vpow.pop %v2941
        %v2943 = vmul.f32 %v2729, 1.442695
        %v2944 = vpow.pop %v2943
        %v2945 = vmul.f32 %v2730, 1.442695
        %v2946 = vpow.pop %v2945
        %v2947 = vmul.f32 %v2731, 1.442695
        %v2948 = vpow.pop %v2947
        %v2949 = vmul.f32 %v2732, 1.442695
        %v2950 = vpow.pop %v2949
        %v2951 = vmul.f32 %v2733, 1.442695
        %v2952 = vpow.pop %v2951
        %v2953 = vmul.f32 %v2734, 1.442695
        %v2954 = vpow.pop %v2953
        %v2955 = vmul.f32 %v2735, 1.442695
        %v2956 = vpow.pop %v2955
        %v2957 = vmul.f32 %v2736, 1.442695
        %v2958 = vpow.pop %v2957
        %v2959 = vmul.f32 %v2737, 1.442695
        %v2960 = vpow.pop %v2959
        %v2961 = vmul.f32 %v2738, 1.442695
        %v2962 = vpow.pop %v2961
        %v2963 = vmul.f32 %v2739, 1.442695
        %v2964 = vpow.pop %v2963
        %v2965 = vmul.f32 %v2740, 1.442695
        %v2966 = vpow.pop %v2965
        %v2967 = vmul.f32 %v2741, 1.442695
        %v2968 = vpow.pop %v2967
        %v2969 = vmul.f32 %v2742, 1.442695
        %v2970 = vpow.pop %v2969
        %v2971 = vmul.f32 %v2743, 1.442695
        %v2972 = vpow.pop %v2971
        %v2973 = vmul.f32 %v2744, 1.442695
        %v2974 = vpow.pop %v2973
        %v2975 = vmul.f32 %v2745, 1.442695
        %v2976 = vpow.pop %v2975
        %v2977 = vmul.f32 %v2746, 1.442695
        %v2978 = vpow.pop %v2977
        %v2979 = vmul.f32 %v2747, 1.442695
        %v2980 = vpow.pop %v2979
        %v2981 = vmul.f32 %v2748, 1.442695
        %v2982 = vpow.pop %v2981
        %v2983 = vmul.f32 %v2749, 1.442695
        %v2984 = vpow.pop %v2983
        %v2985 = vmul.f32 %v2750, 1.442695
        %v2986 = vpow.pop %v2985
        %v2987 = vmul.f32 %v2751, 1.442695
        %v2988 = vpow.pop %v2987
        %v2989 = vmul.f32 %v2752, 1.442695
        %v2990 = vpow.pop %v2989
        %v2991 = vmul.f32 %v2753, 1.442695
        %v2992 = vpow.pop %v2991
        %v2993 = vmul.f32 %v2754, 1.442695
        %v2994 = vpow.pop %v2993
        %v2995 = vmul.f32 %v2755, 1.442695
        %v2996 = vpow.pop %v2995
        %v2997 = vmul.f32 %v2756, 1.442695
        %v2998 = vpow.pop %v2997
        %v2999 = vmul.f32 %v2757, 1.442695
        %v3000 = vpow.pop %v2999
        %v3001 = vmul.f32 %v2758, 1.442695
        %v3002 = vpow.pop %v3001
        %v3003 = vmul.f32 %v2759, 1.442695
        %v3004 = vpow.pop %v3003
        %v3005 = vmul.f32 %v2760, 1.442695
        %v3006 = vpow.pop %v3005
        %v3007 = vmul.f32 %v2761, 1.442695
        %v3008 = vpow.pop %v3007
        %v3009 = vmul.f32 %v2762, 1.442695
        %v3010 = vpow.pop %v3009
        %v3011 = vmul.f32 %v2763, 1.442695
        %v3012 = vpow.pop %v3011
        %v3013 = vmul.f32 %v2764, 1.442695
        %v3014 = vpow.pop %v3013
        %v3015 = vmul.f32 %v2765, 1.442695
        %v3016 = vpow.pop %v3015
        %v3017 = vmul.f32 %v2766, 1.442695
        %v3018 = vpow.pop %v3017
        %v3019 = vmul.f32 %v2767, 1.442695
        %v3020 = vpow.pop %v3019
        %v3021 = vmul.f32 %v2768, 1.442695
        %v3022 = vpow.pop %v3021
        %v3023 = vmul.f32 %v2769, 1.442695
        %v3024 = vpow.pop %v3023
        %v3025 = vmul.f32 %v2770, 1.442695
        %v3026 = vpow.pop %v3025
        %v3027 = vld [vmem:[#allocation4] sm:$0xff]
        %v3028 = vld [vmem:[#allocation4 + $0x8] sm:$0xff]
        %v3029 = vld [vmem:[#allocation4 + $0x10] sm:$0xff]
        %v3030 = vld [vmem:[#allocation4 + $0x18] sm:$0xff]
        %v3031 = vld [vmem:[#allocation4 + $0x20] sm:$0xff]
        %v3032 = vld [vmem:[#allocation4 + $0x28] sm:$0xff]
        %v3033 = vld [vmem:[#allocation4 + $0x30] sm:$0xff]
        %v3034 = vld [vmem:[#allocation4 + $0x38] sm:$0xff]
        %v3035 = vld [vmem:[#allocation4 + $0x40] sm:$0xff]
        %v3036 = vld [vmem:[#allocation4 + $0x48] sm:$0xff]
        %v3037 = vld [vmem:[#allocation4 + $0x50] sm:$0xff]
        %v3038 = vld [vmem:[#allocation4 + $0x58] sm:$0xff]
        %v3039 = vld [vmem:[#allocation4 + $0x60] sm:$0xff]
        %v3040 = vld [vmem:[#allocation4 + $0x68] sm:$0xff]
        %v3041 = vld [vmem:[#allocation4 + $0x70] sm:$0xff]
        %v3042 = vld [vmem:[#allocation4 + $0x78] sm:$0xff]
        %v3043 = vld [vmem:[#allocation4 + $0x80] sm:$0xff]
        %v3044 = vld [vmem:[#allocation4 + $0x88] sm:$0xff]
        %v3045 = vld [vmem:[#allocation4 + $0x90] sm:$0xff]
        %v3046 = vld [vmem:[#allocation4 + $0x98] sm:$0xff]
        %v3047 = vld [vmem:[#allocation4 + $0xa0] sm:$0xff]
        %v3048 = vld [vmem:[#allocation4 + $0xa8] sm:$0xff]
        %v3049 = vld [vmem:[#allocation4 + $0xb0] sm:$0xff]
        %v3050 = vld [vmem:[#allocation4 + $0xb8] sm:$0xff]
        %v3051 = vld [vmem:[#allocation4 + $0xc0] sm:$0xff]
        %v3052 = vld [vmem:[#allocation4 + $0xc8] sm:$0xff]
        %v3053 = vld [vmem:[#allocation4 + $0xd0] sm:$0xff]
        %v3054 = vld [vmem:[#allocation4 + $0xd8] sm:$0xff]
        %v3055 = vld [vmem:[#allocation4 + $0xe0] sm:$0xff]
        %v3056 = vld [vmem:[#allocation4 + $0xe8] sm:$0xff]
        %v3057 = vld [vmem:[#allocation4 + $0xf0] sm:$0xff]
        %v3058 = vld [vmem:[#allocation4 + $0xf8] sm:$0xff]
        %v3059 = vmul.f32 %v2420, %v3027
        %v3060 = vmul.f32 %v2422, %v3028
        %v3061 = vmul.f32 %v2424, %v3029
        %v3062 = vmul.f32 %v2426, %v3030
        %v3063 = vmul.f32 %v2428, %v3031
        %v3064 = vmul.f32 %v2430, %v3032
        %v3065 = vmul.f32 %v2432, %v3033
        %v3066 = vmul.f32 %v2434, %v3034
        %v3067 = vmul.f32 %v2436, %v3035
        %v3068 = vmul.f32 %v2438, %v3036
        %v3069 = vmul.f32 %v2440, %v3037
        %v3070 = vmul.f32 %v2442, %v3038
        %v3071 = vmul.f32 %v2444, %v3039
        %v3072 = vmul.f32 %v2446, %v3040
        %v3073 = vmul.f32 %v2448, %v3041
        %v3074 = vmul.f32 %v2450, %v3042
        %v3075 = vmul.f32 %v2452, %v3043
        %v3076 = vmul.f32 %v2454, %v3044
        %v3077 = vmul.f32 %v2456, %v3045
        %v3078 = vmul.f32 %v2458, %v3046
        %v3079 = vmul.f32 %v2460, %v3047
        %v3080 = vmul.f32 %v2462, %v3048
        %v3081 = vmul.f32 %v2464, %v3049
        %v3082 = vmul.f32 %v2466, %v3050
        %v3083 = vmul.f32 %v2468, %v3051
        %v3084 = vmul.f32 %v2470, %v3052
        %v3085 = vmul.f32 %v2472, %v3053
        %v3086 = vmul.f32 %v2474, %v3054
        %v3087 = vmul.f32 %v2476, %v3055
        %v3088 = vmul.f32 %v2478, %v3056
        %v3089 = vmul.f32 %v2480, %v3057
        %v3090 = vmul.f32 %v2482, %v3058
        %v3091 = vadd.f32 %v2772, %v2774
        %v3092 = vadd.f32 %v3091, %v2776
        %v3093 = vadd.f32 %v3092, %v2778
        %3094 = vadd.xlane.f32.xlu0 %v3093
        %v3095 = vpop.xlane.xlu0 %3094
        %v3096 = vadd.f32 %v2780, %v2782
        %v3097 = vadd.f32 %v3096, %v2784
        %v3098 = vadd.f32 %v3097, %v2786
        %3099 = vadd.xlane.f32.xlu0 %v3098
        %v3100 = vpop.xlane.xlu0 %3099
        %v3101 = vadd.f32 %v2788, %v2790
        %v3102 = vadd.f32 %v3101, %v2792
        %v3103 = vadd.f32 %v3102, %v2794
        %3104 = vadd.xlane.f32.xlu0 %v3103
        %v3105 = vpop.xlane.xlu0 %3104
        %v3106 = vadd.f32 %v2796, %v2798
        %v3107 = vadd.f32 %v3106, %v2800
        %v3108 = vadd.f32 %v3107, %v2802
        %3109 = vadd.xlane.f32.xlu0 %v3108
        %v3110 = vpop.xlane.xlu0 %3109
        %v3111 = vadd.f32 %v2804, %v2806
        %v3112 = vadd.f32 %v3111, %v2808
        %v3113 = vadd.f32 %v3112, %v2810
        %3114 = vadd.xlane.f32.xlu0 %v3113
        %v3115 = vpop.xlane.xlu0 %3114
        %v3116 = vadd.f32 %v2812, %v2814
        %v3117 = vadd.f32 %v3116, %v2816
        %v3118 = vadd.f32 %v3117, %v2818
        %3119 = vadd.xlane.f32.xlu0 %v3118
        %v3120 = vpop.xlane.xlu0 %3119
        %v3121 = vadd.f32 %v2820, %v2822
        %v3122 = vadd.f32 %v3121, %v2824
        %v3123 = vadd.f32 %v3122, %v2826
        %3124 = vadd.xlane.f32.xlu0 %v3123
        %v3125 = vpop.xlane.xlu0 %3124
        %v3126 = vadd.f32 %v2828, %v2830
        %v3127 = vadd.f32 %v3126, %v2832
        %v3128 = vadd.f32 %v3127, %v2834
        %3129 = vadd.xlane.f32.xlu0 %v3128
        %v3130 = vpop.xlane.xlu0 %3129
        %v3131 = vadd.f32 %v2836, %v2838
        %v3132 = vadd.f32 %v3131, %v2840
        %v3133 = vadd.f32 %v3132, %v2842
        %3134 = vadd.xlane.f32.xlu0 %v3133
        %v3135 = vpop.xlane.xlu0 %3134
        %v3136 = vadd.f32 %v2844, %v2846
        %v3137 = vadd.f32 %v3136, %v2848
        %v3138 = vadd.f32 %v3137, %v2850
        %3139 = vadd.xlane.f32.xlu0 %v3138
        %v3140 = vpop.xlane.xlu0 %3139
        %v3141 = vadd.f32 %v2852, %v2854
        %v3142 = vadd.f32 %v3141, %v2856
        %v3143 = vadd.f32 %v3142, %v2858
        %3144 = vadd.xlane.f32.xlu0 %v3143
        %v3145 = vpop.xlane.xlu0 %3144
        %v3146 = vadd.f32 %v2860, %v2862
        %v3147 = vadd.f32 %v3146, %v2864
        %v3148 = vadd.f32 %v3147, %v2866
        %3149 = vadd.xlane.f32.xlu0 %v3148
        %v3150 = vpop.xlane.xlu0 %3149
        %v3151 = vadd.f32 %v2868, %v2870
        %v3152 = vadd.f32 %v3151, %v2872
        %v3153 = vadd.f32 %v3152, %v2874
        %3154 = vadd.xlane.f32.xlu0 %v3153
        %v3155 = vpop.xlane.xlu0 %3154
        %v3156 = vadd.f32 %v2876, %v2878
        %v3157 = vadd.f32 %v3156, %v2880
        %v3158 = vadd.f32 %v3157, %v2882
        %3159 = vadd.xlane.f32.xlu0 %v3158
        %v3160 = vpop.xlane.xlu0 %3159
        %v3161 = vadd.f32 %v2884, %v2886
        %v3162 = vadd.f32 %v3161, %v2888
        %v3163 = vadd.f32 %v3162, %v2890
        %3164 = vadd.xlane.f32.xlu0 %v3163
        %v3165 = vpop.xlane.xlu0 %3164
        %v3166 = vadd.f32 %v2892, %v2894
        %v3167 = vadd.f32 %v3166, %v2896
        %v3168 = vadd.f32 %v3167, %v2898
        %3169 = vadd.xlane.f32.xlu0 %v3168
        %v3170 = vpop.xlane.xlu0 %3169
        %v3171 = vadd.f32 %v2900, %v2902
        %v3172 = vadd.f32 %v3171, %v2904
        %v3173 = vadd.f32 %v3172, %v2906
        %3174 = vadd.xlane.f32.xlu0 %v3173
        %v3175 = vpop.xlane.xlu0 %3174
        %v3176 = vadd.f32 %v2908, %v2910
        %v3177 = vadd.f32 %v3176, %v2912
        %v3178 = vadd.f32 %v3177, %v2914
        %3179 = vadd.xlane.f32.xlu0 %v3178
        %v3180 = vpop.xlane.xlu0 %3179
        %v3181 = vadd.f32 %v2916, %v2918
        %v3182 = vadd.f32 %v3181, %v2920
        %v3183 = vadd.f32 %v3182, %v2922
        %3184 = vadd.xlane.f32.xlu0 %v3183
        %v3185 = vpop.xlane.xlu0 %3184
        %v3186 = vadd.f32 %v2924, %v2926
        %v3187 = vadd.f32 %v3186, %v2928
        %v3188 = vadd.f32 %v3187, %v2930
        %3189 = vadd.xlane.f32.xlu0 %v3188
        %v3190 = vpop.xlane.xlu0 %3189
        %v3191 = vadd.f32 %v2932, %v2934
        %v3192 = vadd.f32 %v3191, %v2936
        %v3193 = vadd.f32 %v3192, %v2938
        %3194 = vadd.xlane.f32.xlu0 %v3193
        %v3195 = vpop.xlane.xlu0 %3194
        %v3196 = vadd.f32 %v2940, %v2942
        %v3197 = vadd.f32 %v3196, %v2944
        %v3198 = vadd.f32 %v3197, %v2946
        %3199 = vadd.xlane.f32.xlu0 %v3198
        %v3200 = vpop.xlane.xlu0 %3199
        %v3201 = vadd.f32 %v2948, %v2950
        %v3202 = vadd.f32 %v3201, %v2952
        %v3203 = vadd.f32 %v3202, %v2954
        %3204 = vadd.xlane.f32.xlu0 %v3203
        %v3205 = vpop.xlane.xlu0 %3204
        %v3206 = vadd.f32 %v2956, %v2958
        %v3207 = vadd.f32 %v3206, %v2960
        %v3208 = vadd.f32 %v3207, %v2962
        %3209 = vadd.xlane.f32.xlu0 %v3208
        %v3210 = vpop.xlane.xlu0 %3209
        %v3211 = vadd.f32 %v2964, %v2966
        %v3212 = vadd.f32 %v3211, %v2968
        %v3213 = vadd.f32 %v3212, %v2970
        %3214 = vadd.xlane.f32.xlu0 %v3213
        %v3215 = vpop.xlane.xlu0 %3214
        %v3216 = vadd.f32 %v2972, %v2974
        %v3217 = vadd.f32 %v3216, %v2976
        %v3218 = vadd.f32 %v3217, %v2978
        %3219 = vadd.xlane.f32.xlu0 %v3218
        %v3220 = vpop.xlane.xlu0 %3219
        %v3221 = vadd.f32 %v2980, %v2982
        %v3222 = vadd.f32 %v3221, %v2984
        %v3223 = vadd.f32 %v3222, %v2986
        %3224 = vadd.xlane.f32.xlu0 %v3223
        %v3225 = vpop.xlane.xlu0 %3224
        %v3226 = vadd.f32 %v2988, %v2990
        %v3227 = vadd.f32 %v3226, %v2992
        %v3228 = vadd.f32 %v3227, %v2994
        %3229 = vadd.xlane.f32.xlu0 %v3228
        %v3230 = vpop.xlane.xlu0 %3229
        %v3231 = vadd.f32 %v2996, %v2998
        %v3232 = vadd.f32 %v3231, %v3000
        %v3233 = vadd.f32 %v3232, %v3002
        %3234 = vadd.xlane.f32.xlu0 %v3233
        %v3235 = vpop.xlane.xlu0 %3234
        %v3236 = vadd.f32 %v3004, %v3006
        %v3237 = vadd.f32 %v3236, %v3008
        %v3238 = vadd.f32 %v3237, %v3010
        %3239 = vadd.xlane.f32.xlu0 %v3238
        %v3240 = vpop.xlane.xlu0 %3239
        %v3241 = vadd.f32 %v3012, %v3014
        %v3242 = vadd.f32 %v3241, %v3016
        %v3243 = vadd.f32 %v3242, %v3018
        %3244 = vadd.xlane.f32.xlu0 %v3243
        %v3245 = vpop.xlane.xlu0 %3244
        %v3246 = vadd.f32 %v3020, %v3022
        %v3247 = vadd.f32 %v3246, %v3024
        %v3248 = vadd.f32 %v3247, %v3026
        %3249 = vadd.xlane.f32.xlu0 %v3248
        %v3250 = vpop.xlane.xlu0 %3249
        %v3251 = vadd.f32 %v3059, %v3095
        %v3252 = vadd.f32 %v3060, %v3100
        %v3253 = vadd.f32 %v3061, %v3105
        %v3254 = vadd.f32 %v3062, %v3110
        %v3255 = vadd.f32 %v3063, %v3115
        %v3256 = vadd.f32 %v3064, %v3120
        %v3257 = vadd.f32 %v3065, %v3125
        %v3258 = vadd.f32 %v3066, %v3130
        %v3259 = vadd.f32 %v3067, %v3135
        %v3260 = vadd.f32 %v3068, %v3140
        %v3261 = vadd.f32 %v3069, %v3145
        %v3262 = vadd.f32 %v3070, %v3150
        %v3263 = vadd.f32 %v3071, %v3155
        %v3264 = vadd.f32 %v3072, %v3160
        %v3265 = vadd.f32 %v3073, %v3165
        %v3266 = vadd.f32 %v3074, %v3170
        %v3267 = vadd.f32 %v3075, %v3175
        %v3268 = vadd.f32 %v3076, %v3180
        %v3269 = vadd.f32 %v3077, %v3185
        %v3270 = vadd.f32 %v3078, %v3190
        %v3271 = vadd.f32 %v3079, %v3195
        %v3272 = vadd.f32 %v3080, %v3200
        %v3273 = vadd.f32 %v3081, %v3205
        %v3274 = vadd.f32 %v3082, %v3210
        %v3275 = vadd.f32 %v3083, %v3215
        %v3276 = vadd.f32 %v3084, %v3220
        %v3277 = vadd.f32 %v3085, %v3225
        %v3278 = vadd.f32 %v3086, %v3230
        %v3279 = vadd.f32 %v3087, %v3235
        %v3280 = vadd.f32 %v3088, %v3240
        %v3281 = vadd.f32 %v3089, %v3245
        %v3282 = vadd.f32 %v3090, %v3250
        %vm3283 = vcmask 7168
        %3284 = vst.msk [vmem:[#allocation4] sm:$0xff] %vm3283, %v3251
        %3285 = vst.msk [vmem:[#allocation4 + $0x8] sm:$0xff] %vm3283, %v3252
        %3286 = vst.msk [vmem:[#allocation4 + $0x10] sm:$0xff] %vm3283, %v3253
        %3287 = vst.msk [vmem:[#allocation4 + $0x18] sm:$0xff] %vm3283, %v3254
        %3288 = vst.msk [vmem:[#allocation4 + $0x20] sm:$0xff] %vm3283, %v3255
        %3289 = vst.msk [vmem:[#allocation4 + $0x28] sm:$0xff] %vm3283, %v3256
        %3290 = vst.msk [vmem:[#allocation4 + $0x30] sm:$0xff] %vm3283, %v3257
        %3291 = vst.msk [vmem:[#allocation4 + $0x38] sm:$0xff] %vm3283, %v3258
        %3292 = vst.msk [vmem:[#allocation4 + $0x40] sm:$0xff] %vm3283, %v3259
        %3293 = vst.msk [vmem:[#allocation4 + $0x48] sm:$0xff] %vm3283, %v3260
        %3294 = vst.msk [vmem:[#allocation4 + $0x50] sm:$0xff] %vm3283, %v3261
        %3295 = vst.msk [vmem:[#allocation4 + $0x58] sm:$0xff] %vm3283, %v3262
        %3296 = vst.msk [vmem:[#allocation4 + $0x60] sm:$0xff] %vm3283, %v3263
        %3297 = vst.msk [vmem:[#allocation4 + $0x68] sm:$0xff] %vm3283, %v3264
        %3298 = vst.msk [vmem:[#allocation4 + $0x70] sm:$0xff] %vm3283, %v3265
        %3299 = vst.msk [vmem:[#allocation4 + $0x78] sm:$0xff] %vm3283, %v3266
        %3300 = vst.msk [vmem:[#allocation4 + $0x80] sm:$0xff] %vm3283, %v3267
        %3301 = vst.msk [vmem:[#allocation4 + $0x88] sm:$0xff] %vm3283, %v3268
        %3302 = vst.msk [vmem:[#allocation4 + $0x90] sm:$0xff] %vm3283, %v3269
        %3303 = vst.msk [vmem:[#allocation4 + $0x98] sm:$0xff] %vm3283, %v3270
        %3304 = vst.msk [vmem:[#allocation4 + $0xa0] sm:$0xff] %vm3283, %v3271
        %3305 = vst.msk [vmem:[#allocation4 + $0xa8] sm:$0xff] %vm3283, %v3272
        %3306 = vst.msk [vmem:[#allocation4 + $0xb0] sm:$0xff] %vm3283, %v3273
        %3307 = vst.msk [vmem:[#allocation4 + $0xb8] sm:$0xff] %vm3283, %v3274
        %3308 = vst.msk [vmem:[#allocation4 + $0xc0] sm:$0xff] %vm3283, %v3275
        %3309 = vst.msk [vmem:[#allocation4 + $0xc8] sm:$0xff] %vm3283, %v3276
        %3310 = vst.msk [vmem:[#allocation4 + $0xd0] sm:$0xff] %vm3283, %v3277
        %3311 = vst.msk [vmem:[#allocation4 + $0xd8] sm:$0xff] %vm3283, %v3278
        %3312 = vst.msk [vmem:[#allocation4 + $0xe0] sm:$0xff] %vm3283, %v3279
        %3313 = vst.msk [vmem:[#allocation4 + $0xe8] sm:$0xff] %vm3283, %v3280
        %3314 = vst.msk [vmem:[#allocation4 + $0xf0] sm:$0xff] %vm3283, %v3281
        %3315 = vst.msk [vmem:[#allocation4 + $0xf8] sm:$0xff] %vm3283, %v3282
        %v3316 = vld [vmem:[#allocation5] sm:$0xff]
        %v3317 = vld [vmem:[#allocation5 + $0x8] sm:$0xff]
        %v3318 = vld [vmem:[#allocation5 + $0x10] sm:$0xff]
        %v3319 = vld [vmem:[#allocation5 + $0x18] sm:$0xff]
        %v3320 = vld [vmem:[#allocation5 + $0x20] sm:$0xff]
        %v3321 = vld [vmem:[#allocation5 + $0x28] sm:$0xff]
        %v3322 = vld [vmem:[#allocation5 + $0x30] sm:$0xff]
        %v3323 = vld [vmem:[#allocation5 + $0x38] sm:$0xff]
        %v3324 = vld [vmem:[#allocation5 + $0x40] sm:$0xff]
        %v3325 = vld [vmem:[#allocation5 + $0x48] sm:$0xff]
        %v3326 = vld [vmem:[#allocation5 + $0x50] sm:$0xff]
        %v3327 = vld [vmem:[#allocation5 + $0x58] sm:$0xff]
        %v3328 = vld [vmem:[#allocation5 + $0x60] sm:$0xff]
        %v3329 = vld [vmem:[#allocation5 + $0x68] sm:$0xff]
        %v3330 = vld [vmem:[#allocation5 + $0x70] sm:$0xff]
        %v3331 = vld [vmem:[#allocation5 + $0x78] sm:$0xff]
        %v3332 = vld [vmem:[#allocation5 + $0x80] sm:$0xff]
        %v3333 = vld [vmem:[#allocation5 + $0x88] sm:$0xff]
        %v3334 = vld [vmem:[#allocation5 + $0x90] sm:$0xff]
        %v3335 = vld [vmem:[#allocation5 + $0x98] sm:$0xff]
        %v3336 = vld [vmem:[#allocation5 + $0xa0] sm:$0xff]
        %v3337 = vld [vmem:[#allocation5 + $0xa8] sm:$0xff]
        %v3338 = vld [vmem:[#allocation5 + $0xb0] sm:$0xff]
        %v3339 = vld [vmem:[#allocation5 + $0xb8] sm:$0xff]
        %v3340 = vld [vmem:[#allocation5 + $0xc0] sm:$0xff]
        %v3341 = vld [vmem:[#allocation5 + $0xc8] sm:$0xff]
        %v3342 = vld [vmem:[#allocation5 + $0xd0] sm:$0xff]
        %v3343 = vld [vmem:[#allocation5 + $0xd8] sm:$0xff]
        %v3344 = vld [vmem:[#allocation5 + $0xe0] sm:$0xff]
        %v3345 = vld [vmem:[#allocation5 + $0xe8] sm:$0xff]
        %v3346 = vld [vmem:[#allocation5 + $0xf0] sm:$0xff]
        %v3347 = vld [vmem:[#allocation5 + $0xf8] sm:$0xff]
        %3349 = vset.pattern.permute.xlu0 0
        %3350 = vperm.xlu0 %3349, %v2420
        %v3351 = vpop.permute.xlu0 %3350
        %3354 = vset.pattern.permute.xlu0 0
        %3355 = vperm.xlu0 %3354, %v2422
        %v3356 = vpop.permute.xlu0 %3355
        %3359 = vset.pattern.permute.xlu0 0
        %3360 = vperm.xlu0 %3359, %v2424
        %v3361 = vpop.permute.xlu0 %3360
        %3364 = vset.pattern.permute.xlu0 0
        %3365 = vperm.xlu0 %3364, %v2426
        %v3366 = vpop.permute.xlu0 %3365
        %3369 = vset.pattern.permute.xlu0 0
        %3370 = vperm.xlu0 %3369, %v2428
        %v3371 = vpop.permute.xlu0 %3370
        %3374 = vset.pattern.permute.xlu0 0
        %3375 = vperm.xlu0 %3374, %v2430
        %v3376 = vpop.permute.xlu0 %3375
        %3379 = vset.pattern.permute.xlu0 0
        %3380 = vperm.xlu0 %3379, %v2432
        %v3381 = vpop.permute.xlu0 %3380
        %3384 = vset.pattern.permute.xlu0 0
        %3385 = vperm.xlu0 %3384, %v2434
        %v3386 = vpop.permute.xlu0 %3385
        %3389 = vset.pattern.permute.xlu0 0
        %3390 = vperm.xlu0 %3389, %v2436
        %v3391 = vpop.permute.xlu0 %3390
        %3394 = vset.pattern.permute.xlu0 0
        %3395 = vperm.xlu0 %3394, %v2438
        %v3396 = vpop.permute.xlu0 %3395
        %3399 = vset.pattern.permute.xlu0 0
        %3400 = vperm.xlu0 %3399, %v2440
        %v3401 = vpop.permute.xlu0 %3400
        %3404 = vset.pattern.permute.xlu0 0
        %3405 = vperm.xlu0 %3404, %v2442
        %v3406 = vpop.permute.xlu0 %3405
        %3409 = vset.pattern.permute.xlu0 0
        %3410 = vperm.xlu0 %3409, %v2444
        %v3411 = vpop.permute.xlu0 %3410
        %3414 = vset.pattern.permute.xlu0 0
        %3415 = vperm.xlu0 %3414, %v2446
        %v3416 = vpop.permute.xlu0 %3415
        %3419 = vset.pattern.permute.xlu0 0
        %3420 = vperm.xlu0 %3419, %v2448
        %v3421 = vpop.permute.xlu0 %3420
        %3424 = vset.pattern.permute.xlu0 0
        %3425 = vperm.xlu0 %3424, %v2450
        %v3426 = vpop.permute.xlu0 %3425
        %3429 = vset.pattern.permute.xlu0 0
        %3430 = vperm.xlu0 %3429, %v2452
        %v3431 = vpop.permute.xlu0 %3430
        %3434 = vset.pattern.permute.xlu0 0
        %3435 = vperm.xlu0 %3434, %v2454
        %v3436 = vpop.permute.xlu0 %3435
        %3439 = vset.pattern.permute.xlu0 0
        %3440 = vperm.xlu0 %3439, %v2456
        %v3441 = vpop.permute.xlu0 %3440
        %3444 = vset.pattern.permute.xlu0 0
        %3445 = vperm.xlu0 %3444, %v2458
        %v3446 = vpop.permute.xlu0 %3445
        %3449 = vset.pattern.permute.xlu0 0
        %3450 = vperm.xlu0 %3449, %v2460
        %v3451 = vpop.permute.xlu0 %3450
        %3454 = vset.pattern.permute.xlu0 0
        %3455 = vperm.xlu0 %3454, %v2462
        %v3456 = vpop.permute.xlu0 %3455
        %3459 = vset.pattern.permute.xlu0 0
        %3460 = vperm.xlu0 %3459, %v2464
        %v3461 = vpop.permute.xlu0 %3460
        %3464 = vset.pattern.permute.xlu0 0
        %3465 = vperm.xlu0 %3464, %v2466
        %v3466 = vpop.permute.xlu0 %3465
        %3469 = vset.pattern.permute.xlu0 0
        %3470 = vperm.xlu0 %3469, %v2468
        %v3471 = vpop.permute.xlu0 %3470
        %3474 = vset.pattern.permute.xlu0 0
        %3475 = vperm.xlu0 %3474, %v2470
        %v3476 = vpop.permute.xlu0 %3475
        %3479 = vset.pattern.permute.xlu0 0
        %3480 = vperm.xlu0 %3479, %v2472
        %v3481 = vpop.permute.xlu0 %3480
        %3484 = vset.pattern.permute.xlu0 0
        %3485 = vperm.xlu0 %3484, %v2474
        %v3486 = vpop.permute.xlu0 %3485
        %3489 = vset.pattern.permute.xlu0 0
        %3490 = vperm.xlu0 %3489, %v2476
        %v3491 = vpop.permute.xlu0 %3490
        %3494 = vset.pattern.permute.xlu0 0
        %3495 = vperm.xlu0 %3494, %v2478
        %v3496 = vpop.permute.xlu0 %3495
        %3499 = vset.pattern.permute.xlu0 0
        %3500 = vperm.xlu0 %3499, %v2480
        %v3501 = vpop.permute.xlu0 %3500
        %3504 = vset.pattern.permute.xlu0 0
        %3505 = vperm.xlu0 %3504, %v2482
        %v3506 = vpop.permute.xlu0 %3505
        %v3508 = vmul.f32 %v3351, %v3316
        %v3509 = vmul.f32 %v3356, %v3317
        %v3510 = vmul.f32 %v3361, %v3318
        %v3511 = vmul.f32 %v3366, %v3319
        %v3512 = vmul.f32 %v3371, %v3320
        %v3513 = vmul.f32 %v3376, %v3321
        %v3514 = vmul.f32 %v3381, %v3322
        %v3515 = vmul.f32 %v3386, %v3323
        %v3516 = vmul.f32 %v3391, %v3324
        %v3517 = vmul.f32 %v3396, %v3325
        %v3518 = vmul.f32 %v3401, %v3326
        %v3519 = vmul.f32 %v3406, %v3327
        %v3520 = vmul.f32 %v3411, %v3328
        %v3521 = vmul.f32 %v3416, %v3329
        %v3522 = vmul.f32 %v3421, %v3330
        %v3523 = vmul.f32 %v3426, %v3331
        %v3524 = vmul.f32 %v3431, %v3332
        %v3525 = vmul.f32 %v3436, %v3333
        %v3526 = vmul.f32 %v3441, %v3334
        %v3527 = vmul.f32 %v3446, %v3335
        %v3528 = vmul.f32 %v3451, %v3336
        %v3529 = vmul.f32 %v3456, %v3337
        %v3530 = vmul.f32 %v3461, %v3338
        %v3531 = vmul.f32 %v3466, %v3339
        %v3532 = vmul.f32 %v3471, %v3340
        %v3533 = vmul.f32 %v3476, %v3341
        %v3534 = vmul.f32 %v3481, %v3342
        %v3535 = vmul.f32 %v3486, %v3343
        %v3536 = vmul.f32 %v3491, %v3344
        %v3537 = vmul.f32 %v3496, %v3345
        %v3538 = vmul.f32 %v3501, %v3346
        %v3539 = vmul.f32 %v3506, %v3347
        %v3540 = vpack.c.bf16 %v2780, %v2772
        %v3541 = vpack.c.bf16 %v2782, %v2774
        %v3542 = vpack.c.bf16 %v2784, %v2776
        %v3543 = vpack.c.bf16 %v2786, %v2778
        %v3544 = vpack.c.bf16 %v2796, %v2788
        %v3545 = vpack.c.bf16 %v2798, %v2790
        %v3546 = vpack.c.bf16 %v2800, %v2792
        %v3547 = vpack.c.bf16 %v2802, %v2794
        %v3548 = vpack.c.bf16 %v2812, %v2804
        %v3549 = vpack.c.bf16 %v2814, %v2806
        %v3550 = vpack.c.bf16 %v2816, %v2808
        %v3551 = vpack.c.bf16 %v2818, %v2810
        %v3552 = vpack.c.bf16 %v2828, %v2820
        %v3553 = vpack.c.bf16 %v2830, %v2822
        %v3554 = vpack.c.bf16 %v2832, %v2824
        %v3555 = vpack.c.bf16 %v2834, %v2826
        %v3556 = vpack.c.bf16 %v2844, %v2836
        %v3557 = vpack.c.bf16 %v2846, %v2838
        %v3558 = vpack.c.bf16 %v2848, %v2840
        %v3559 = vpack.c.bf16 %v2850, %v2842
        %v3560 = vpack.c.bf16 %v2860, %v2852
        %v3561 = vpack.c.bf16 %v2862, %v2854
        %v3562 = vpack.c.bf16 %v2864, %v2856
        %v3563 = vpack.c.bf16 %v2866, %v2858
        %v3564 = vpack.c.bf16 %v2876, %v2868
        %v3565 = vpack.c.bf16 %v2878, %v2870
        %v3566 = vpack.c.bf16 %v2880, %v2872
        %v3567 = vpack.c.bf16 %v2882, %v2874
        %v3568 = vpack.c.bf16 %v2892, %v2884
        %v3569 = vpack.c.bf16 %v2894, %v2886
        %v3570 = vpack.c.bf16 %v2896, %v2888
        %v3571 = vpack.c.bf16 %v2898, %v2890
        %v3572 = vpack.c.bf16 %v2908, %v2900
        %v3573 = vpack.c.bf16 %v2910, %v2902
        %v3574 = vpack.c.bf16 %v2912, %v2904
        %v3575 = vpack.c.bf16 %v2914, %v2906
        %v3576 = vpack.c.bf16 %v2924, %v2916
        %v3577 = vpack.c.bf16 %v2926, %v2918
        %v3578 = vpack.c.bf16 %v2928, %v2920
        %v3579 = vpack.c.bf16 %v2930, %v2922
        %v3580 = vpack.c.bf16 %v2940, %v2932
        %v3581 = vpack.c.bf16 %v2942, %v2934
        %v3582 = vpack.c.bf16 %v2944, %v2936
        %v3583 = vpack.c.bf16 %v2946, %v2938
        %v3584 = vpack.c.bf16 %v2956, %v2948
        %v3585 = vpack.c.bf16 %v2958, %v2950
        %v3586 = vpack.c.bf16 %v2960, %v2952
        %v3587 = vpack.c.bf16 %v2962, %v2954
        %v3588 = vpack.c.bf16 %v2972, %v2964
        %v3589 = vpack.c.bf16 %v2974, %v2966
        %v3590 = vpack.c.bf16 %v2976, %v2968
        %v3591 = vpack.c.bf16 %v2978, %v2970
        %v3592 = vpack.c.bf16 %v2988, %v2980
        %v3593 = vpack.c.bf16 %v2990, %v2982
        %v3594 = vpack.c.bf16 %v2992, %v2984
        %v3595 = vpack.c.bf16 %v2994, %v2986
        %v3596 = vpack.c.bf16 %v3004, %v2996
        %v3597 = vpack.c.bf16 %v3006, %v2998
        %v3598 = vpack.c.bf16 %v3008, %v3000
        %v3599 = vpack.c.bf16 %v3010, %v3002
        %v3600 = vpack.c.bf16 %v3020, %v3012
        %v3601 = vpack.c.bf16 %v3022, %v3014
        %v3602 = vpack.c.bf16 %v3024, %v3016
        %v3603 = vpack.c.bf16 %v3026, %v3018
        %v3604 = vpack.c.bf16 %v1446, %v1443
        %v3605 = vpack.c.bf16 %v1454, %v1451
        %v3606 = vpack.c.bf16 %v1462, %v1459
        %v3607 = vpack.c.bf16 %v1470, %v1467
        %v3608 = vpack.c.bf16 %v1478, %v1475
        %v3609 = vpack.c.bf16 %v1486, %v1483
        %v3610 = vpack.c.bf16 %v1494, %v1491
        %v3611 = vpack.c.bf16 %v1502, %v1499
        %v3612 = vpack.c.bf16 %v1510, %v1507
        %v3613 = vpack.c.bf16 %v1518, %v1515
        %v3614 = vpack.c.bf16 %v1526, %v1523
        %v3615 = vpack.c.bf16 %v1534, %v1531
        %v3616 = vpack.c.bf16 %v1542, %v1539
        %v3617 = vpack.c.bf16 %v1550, %v1547
        %v3618 = vpack.c.bf16 %v1558, %v1555
        %v3619 = vpack.c.bf16 %v1566, %v1563
        %v3620 = vpack.c.bf16 %v1574, %v1571
        %v3621 = vpack.c.bf16 %v1582, %v1579
        %v3622 = vpack.c.bf16 %v1590, %v1587
        %v3623 = vpack.c.bf16 %v1598, %v1595
        %v3624 = vpack.c.bf16 %v1606, %v1603
        %v3625 = vpack.c.bf16 %v1614, %v1611
        %v3626 = vpack.c.bf16 %v1622, %v1619
        %v3627 = vpack.c.bf16 %v1630, %v1627
        %v3628 = vpack.c.bf16 %v1638, %v1635
        %v3629 = vpack.c.bf16 %v1646, %v1643
        %v3630 = vpack.c.bf16 %v1654, %v1651
        %v3631 = vpack.c.bf16 %v1662, %v1659
        %v3632 = vpack.c.bf16 %v1670, %v1667
        %v3633 = vpack.c.bf16 %v1678, %v1675
        %v3634 = vpack.c.bf16 %v1686, %v1683
        %v3635 = vpack.c.bf16 %v1694, %v1691
        %3636 = vmatprep.subr.bf16.mxu0 0
        %3637 = vmatpush1.bf16.msra.mxu0 %v3604
        %3638 = vmatprep.subr.bf16.mxu0 0
        %3639 = vmatpush1.bf16.msra.mxu0 %v3605
        %3640 = vmatprep.subr.bf16.mxu0 0
        %3641 = vmatpush1.bf16.msra.mxu0 %v3606
        %3642 = vmatprep.subr.bf16.mxu0 0
        %3643 = vmatpush1.bf16.msra.mxu0 %v3607
        %3644 = vmatprep.subr.bf16.mxu0 0
        %3645 = vmatpush1.bf16.msra.mxu0 %v3608
        %3646 = vmatprep.subr.bf16.mxu0 0
        %3647 = vmatpush1.bf16.msra.mxu0 %v3609
        %3648 = vmatprep.subr.bf16.mxu0 0
        %3649 = vmatpush1.bf16.msra.mxu0 %v3610
        %3650 = vmatprep.subr.bf16.mxu0 0
        %3651 = vmatpush1.bf16.msra.mxu0 %v3611
        %3652 = vmatprep.subr.bf16.mxu0 0
        %3653 = vmatpush1.bf16.msra.mxu0 %v3612
        %3654 = vmatprep.subr.bf16.mxu0 0
        %3655 = vmatpush1.bf16.msra.mxu0 %v3613
        %3656 = vmatprep.subr.bf16.mxu0 0
        %3657 = vmatpush1.bf16.msra.mxu0 %v3614
        %3658 = vmatprep.subr.bf16.mxu0 0
        %3659 = vmatpush1.bf16.msra.mxu0 %v3615
        %3660 = vmatprep.subr.bf16.mxu0 0
        %3661 = vmatpush1.bf16.msra.mxu0 %v3616
        %3662 = vmatprep.subr.bf16.mxu0 0
        %3663 = vmatpush1.bf16.msra.mxu0 %v3617
        %3664 = vmatprep.subr.bf16.mxu0 0
        %3665 = vmatpush1.bf16.msra.mxu0 %v3618
        %3666 = vmatprep.subr.bf16.mxu0 0
        %3667 = vmatpush1.bf16.msra.mxu0 %v3619
        %3668 = vmatprep.mubr.bf16.mxu0 %v3541
        %3669 = vmatmul.mubr.bf16.gmra.mrb[0].mxu0 %v3540
        %v3670 = vpop.f32.mrb[0].mxu0
        %v3671 = vadd.f32 0.0, %v3670
        %v3672 = vpop.f32.mrb[0].mxu0
        %v3673 = vpop.f32.mrb[0].mxu0
        %v3674 = vadd.f32 0.0, %v3673
        %v3675 = vpop.f32.mrb[0].mxu0
        %3676 = vmatprep.mubr.bf16.mxu0 %v3545
        %3677 = vmatmul.mubr.bf16.gmra.mrb[0].mxu0 %v3544
        %v3678 = vpop.f32.mrb[0].mxu0
        %v3679 = vadd.f32 0.0, %v3678
        %v3680 = vpop.f32.mrb[0].mxu0
        %v3681 = vpop.f32.mrb[0].mxu0
        %v3682 = vadd.f32 0.0, %v3681
        %v3683 = vpop.f32.mrb[0].mxu0
        %3684 = vmatprep.mubr.bf16.mxu0 %v3549
        %3685 = vmatmul.mubr.bf16.gmra.mrb[0].mxu0 %v3548
        %v3686 = vpop.f32.mrb[0].mxu0
        %v3687 = vadd.f32 0.0, %v3686
        %v3688 = vpop.f32.mrb[0].mxu0
        %v3689 = vpop.f32.mrb[0].mxu0
        %v3690 = vadd.f32 0.0, %v3689
        %v3691 = vpop.f32.mrb[0].mxu0
        %3692 = vmatprep.mubr.bf16.mxu0 %v3553
        %3693 = vmatmul.mubr.bf16.gmra.mrb[0].mxu0 %v3552
        %v3694 = vpop.f32.mrb[0].mxu0
        %v3695 = vadd.f32 0.0, %v3694
        %v3696 = vpop.f32.mrb[0].mxu0
        %v3697 = vpop.f32.mrb[0].mxu0
        %v3698 = vadd.f32 0.0, %v3697
        %v3699 = vpop.f32.mrb[0].mxu0
        %3700 = vmatprep.mubr.bf16.mxu0 %v3557
        %3701 = vmatmul.mubr.bf16.gmra.mrb[0].mxu0 %v3556
        %v3702 = vpop.f32.mrb[0].mxu0
        %v3703 = vadd.f32 0.0, %v3702
        %v3704 = vpop.f32.mrb[0].mxu0
        %v3705 = vpop.f32.mrb[0].mxu0
        %v3706 = vadd.f32 0.0, %v3705
        %v3707 = vpop.f32.mrb[0].mxu0
        %3708 = vmatprep.mubr.bf16.mxu0 %v3561
        %3709 = vmatmul.mubr.bf16.gmra.mrb[0].mxu0 %v3560
        %v3710 = vpop.f32.mrb[0].mxu0
        %v3711 = vadd.f32 0.0, %v3710
        %v3712 = vpop.f32.mrb[0].mxu0
        %v3713 = vpop.f32.mrb[0].mxu0
        %v3714 = vadd.f32 0.0, %v3713
        %v3715 = vpop.f32.mrb[0].mxu0
        %3716 = vmatprep.mubr.bf16.mxu0 %v3565
        %3717 = vmatmul.mubr.bf16.gmra.mrb[0].mxu0 %v3564
        %v3718 = vpop.f32.mrb[0].mxu0
        %v3719 = vadd.f32 0.0, %v3718
        %v3720 = vpop.f32.mrb[0].mxu0
        %v3721 = vpop.f32.mrb[0].mxu0
        %v3722 = vadd.f32 0.0, %v3721
        %v3723 = vpop.f32.mrb[0].mxu0
        %3724 = vmatprep.mubr.bf16.mxu0 %v3569
        %3725 = vmatmul.mubr.bf16.gmra.mrb[0].mxu0 %v3568
        %v3726 = vpop.f32.mrb[0].mxu0
        %v3727 = vadd.f32 0.0, %v3726
        %v3728 = vpop.f32.mrb[0].mxu0
        %v3729 = vpop.f32.mrb[0].mxu0
        %v3730 = vadd.f32 0.0, %v3729
        %v3731 = vpop.f32.mrb[0].mxu0
        %3732 = vmatprep.mubr.bf16.mxu0 %v3573
        %3733 = vmatmul.mubr.bf16.gmra.mrb[0].mxu0 %v3572
        %v3734 = vpop.f32.mrb[0].mxu0
        %v3735 = vadd.f32 0.0, %v3734
        %v3736 = vpop.f32.mrb[0].mxu0
        %v3737 = vpop.f32.mrb[0].mxu0
        %v3738 = vadd.f32 0.0, %v3737
        %v3739 = vpop.f32.mrb[0].mxu0
        %3740 = vmatprep.mubr.bf16.mxu0 %v3577
        %3741 = vmatmul.mubr.bf16.gmra.mrb[0].mxu0 %v3576
        %v3742 = vpop.f32.mrb[0].mxu0
        %v3743 = vadd.f32 0.0, %v3742
        %v3744 = vpop.f32.mrb[0].mxu0
        %v3745 = vpop.f32.mrb[0].mxu0
        %v3746 = vadd.f32 0.0, %v3745
        %v3747 = vpop.f32.mrb[0].mxu0
        %3748 = vmatprep.mubr.bf16.mxu0 %v3581
        %3749 = vmatmul.mubr.bf16.gmra.mrb[0].mxu0 %v3580
        %v3750 = vpop.f32.mrb[0].mxu0
        %v3751 = vadd.f32 0.0, %v3750
        %v3752 = vpop.f32.mrb[0].mxu0
        %v3753 = vpop.f32.mrb[0].mxu0
        %v3754 = vadd.f32 0.0, %v3753
        %v3755 = vpop.f32.mrb[0].mxu0
        %3756 = vmatprep.mubr.bf16.mxu0 %v3585
        %3757 = vmatmul.mubr.bf16.gmra.mrb[0].mxu0 %v3584
        %v3758 = vpop.f32.mrb[0].mxu0
        %v3759 = vadd.f32 0.0, %v3758
        %v3760 = vpop.f32.mrb[0].mxu0
        %v3761 = vpop.f32.mrb[0].mxu0
        %v3762 = vadd.f32 0.0, %v3761
        %v3763 = vpop.f32.mrb[0].mxu0
        %3764 = vmatprep.mubr.bf16.mxu0 %v3589
        %3765 = vmatmul.mubr.bf16.gmra.mrb[0].mxu0 %v3588
        %v3766 = vpop.f32.mrb[0].mxu0
        %v3767 = vadd.f32 0.0, %v3766
        %v3768 = vpop.f32.mrb[0].mxu0
        %v3769 = vpop.f32.mrb[0].mxu0
        %v3770 = vadd.f32 0.0, %v3769
        %v3771 = vpop.f32.mrb[0].mxu0
        %3772 = vmatprep.mubr.bf16.mxu0 %v3593
        %3773 = vmatmul.mubr.bf16.gmra.mrb[0].mxu0 %v3592
        %v3774 = vpop.f32.mrb[0].mxu0
        %v3775 = vadd.f32 0.0, %v3774
        %v3776 = vpop.f32.mrb[0].mxu0
        %v3777 = vpop.f32.mrb[0].mxu0
        %v3778 = vadd.f32 0.0, %v3777
        %v3779 = vpop.f32.mrb[0].mxu0
        %3780 = vmatprep.mubr.bf16.mxu0 %v3597
        %3781 = vmatmul.mubr.bf16.gmra.mrb[0].mxu0 %v3596
        %v3782 = vpop.f32.mrb[0].mxu0
        %v3783 = vadd.f32 0.0, %v3782
        %v3784 = vpop.f32.mrb[0].mxu0
        %v3785 = vpop.f32.mrb[0].mxu0
        %v3786 = vadd.f32 0.0, %v3785
        %v3787 = vpop.f32.mrb[0].mxu0
        %3788 = vmatprep.mubr.bf16.mxu0 %v3601
        %3789 = vmatmul.mubr.bf16.gmra.mrb[0].mxu0 %v3600
        %v3790 = vpop.f32.mrb[0].mxu0
        %v3791 = vadd.f32 0.0, %v3790
        %v3792 = vpop.f32.mrb[0].mxu0
        %v3793 = vpop.f32.mrb[0].mxu0
        %v3794 = vadd.f32 0.0, %v3793
        %v3795 = vpop.f32.mrb[0].mxu0
        %3796 = vdwg.mxu0
        %3797 = vmatprep.subr.bf16.mxu0 0
        %3798 = vmatpush1.bf16.msra.mxu0 %v3620
        %3799 = vmatprep.subr.bf16.mxu0 0
        %3800 = vmatpush1.bf16.msra.mxu0 %v3621
        %3801 = vmatprep.subr.bf16.mxu0 0
        %3802 = vmatpush1.bf16.msra.mxu0 %v3622
        %3803 = vmatprep.subr.bf16.mxu0 0
        %3804 = vmatpush1.bf16.msra.mxu0 %v3623
        %3805 = vmatprep.subr.bf16.mxu0 0
        %3806 = vmatpush1.bf16.msra.mxu0 %v3624
        %3807 = vmatprep.subr.bf16.mxu0 0
        %3808 = vmatpush1.bf16.msra.mxu0 %v3625
        %3809 = vmatprep.subr.bf16.mxu0 0
        %3810 = vmatpush1.bf16.msra.mxu0 %v3626
        %3811 = vmatprep.subr.bf16.mxu0 0
        %3812 = vmatpush1.bf16.msra.mxu0 %v3627
        %3813 = vmatprep.subr.bf16.mxu0 0
        %3814 = vmatpush1.bf16.msra.mxu0 %v3628
        %3815 = vmatprep.subr.bf16.mxu0 0
        %3816 = vmatpush1.bf16.msra.mxu0 %v3629
        %3817 = vmatprep.subr.bf16.mxu0 0
        %3818 = vmatpush1.bf16.msra.mxu0 %v3630
        %3819 = vmatprep.subr.bf16.mxu0 0
        %3820 = vmatpush1.bf16.msra.mxu0 %v3631
        %3821 = vmatprep.subr.bf16.mxu0 0
        %3822 = vmatpush1.bf16.msra.mxu0 %v3632
        %3823 = vmatprep.subr.bf16.mxu0 0
        %3824 = vmatpush1.bf16.msra.mxu0 %v3633
        %3825 = vmatprep.subr.bf16.mxu0 0
        %3826 = vmatpush1.bf16.msra.mxu0 %v3634
        %3827 = vmatprep.subr.bf16.mxu0 0
        %3828 = vmatpush1.bf16.msra.mxu0 %v3635
        %3829 = vmatprep.mubr.bf16.mxu0 %v3543
        %3830 = vmatmul.mubr.bf16.gmra.mrb[0].mxu0 %v3542
        %v3831 = vpop.f32.mrb[0].mxu0
        %v3832 = vadd.f32 %v3671, %v3831
        %v3833 = vpop.f32.mrb[0].mxu0
        %v3834 = vpop.f32.mrb[0].mxu0
        %v3835 = vadd.f32 %v3674, %v3834
        %v3836 = vpop.f32.mrb[0].mxu0
        %3837 = vmatprep.mubr.bf16.mxu0 %v3547
        %3838 = vmatmul.mubr.bf16.gmra.mrb[0].mxu0 %v3546
        %v3839 = vpop.f32.mrb[0].mxu0
        %v3840 = vadd.f32 %v3679, %v3839
        %v3841 = vpop.f32.mrb[0].mxu0
        %v3842 = vpop.f32.mrb[0].mxu0
        %v3843 = vadd.f32 %v3682, %v3842
        %v3844 = vpop.f32.mrb[0].mxu0
        %3845 = vmatprep.mubr.bf16.mxu0 %v3551
        %3846 = vmatmul.mubr.bf16.gmra.mrb[0].mxu0 %v3550
        %v3847 = vpop.f32.mrb[0].mxu0
        %v3848 = vadd.f32 %v3687, %v3847
        %v3849 = vpop.f32.mrb[0].mxu0
        %v3850 = vpop.f32.mrb[0].mxu0
        %v3851 = vadd.f32 %v3690, %v3850
        %v3852 = vpop.f32.mrb[0].mxu0
        %3853 = vmatprep.mubr.bf16.mxu0 %v3555
        %3854 = vmatmul.mubr.bf16.gmra.mrb[0].mxu0 %v3554
        %v3855 = vpop.f32.mrb[0].mxu0
        %v3856 = vadd.f32 %v3695, %v3855
        %v3857 = vpop.f32.mrb[0].mxu0
        %v3858 = vpop.f32.mrb[0].mxu0
        %v3859 = vadd.f32 %v3698, %v3858
        %v3860 = vpop.f32.mrb[0].mxu0
        %3861 = vmatprep.mubr.bf16.mxu0 %v3559
        %3862 = vmatmul.mubr.bf16.gmra.mrb[0].mxu0 %v3558
        %v3863 = vpop.f32.mrb[0].mxu0
        %v3864 = vadd.f32 %v3703, %v3863
        %v3865 = vpop.f32.mrb[0].mxu0
        %v3866 = vpop.f32.mrb[0].mxu0
        %v3867 = vadd.f32 %v3706, %v3866
        %v3868 = vpop.f32.mrb[0].mxu0
        %3869 = vmatprep.mubr.bf16.mxu0 %v3563
        %3870 = vmatmul.mubr.bf16.gmra.mrb[0].mxu0 %v3562
        %v3871 = vpop.f32.mrb[0].mxu0
        %v3872 = vadd.f32 %v3711, %v3871
        %v3873 = vpop.f32.mrb[0].mxu0
        %v3874 = vpop.f32.mrb[0].mxu0
        %v3875 = vadd.f32 %v3714, %v3874
        %v3876 = vpop.f32.mrb[0].mxu0
        %3877 = vmatprep.mubr.bf16.mxu0 %v3567
        %3878 = vmatmul.mubr.bf16.gmra.mrb[0].mxu0 %v3566
        %v3879 = vpop.f32.mrb[0].mxu0
        %v3880 = vadd.f32 %v3719, %v3879
        %v3881 = vpop.f32.mrb[0].mxu0
        %v3882 = vpop.f32.mrb[0].mxu0
        %v3883 = vadd.f32 %v3722, %v3882
        %v3884 = vpop.f32.mrb[0].mxu0
        %3885 = vmatprep.mubr.bf16.mxu0 %v3571
        %3886 = vmatmul.mubr.bf16.gmra.mrb[0].mxu0 %v3570
        %v3887 = vpop.f32.mrb[0].mxu0
        %v3888 = vadd.f32 %v3727, %v3887
        %v3889 = vpop.f32.mrb[0].mxu0
        %v3890 = vpop.f32.mrb[0].mxu0
        %v3891 = vadd.f32 %v3730, %v3890
        %v3892 = vpop.f32.mrb[0].mxu0
        %3893 = vmatprep.mubr.bf16.mxu0 %v3575
        %3894 = vmatmul.mubr.bf16.gmra.mrb[0].mxu0 %v3574
        %v3895 = vpop.f32.mrb[0].mxu0
        %v3896 = vadd.f32 %v3735, %v3895
        %v3897 = vpop.f32.mrb[0].mxu0
        %v3898 = vpop.f32.mrb[0].mxu0
        %v3899 = vadd.f32 %v3738, %v3898
        %v3900 = vpop.f32.mrb[0].mxu0
        %3901 = vmatprep.mubr.bf16.mxu0 %v3579
        %3902 = vmatmul.mubr.bf16.gmra.mrb[0].mxu0 %v3578
        %v3903 = vpop.f32.mrb[0].mxu0
        %v3904 = vadd.f32 %v3743, %v3903
        %v3905 = vpop.f32.mrb[0].mxu0
        %v3906 = vpop.f32.mrb[0].mxu0
        %v3907 = vadd.f32 %v3746, %v3906
        %v3908 = vpop.f32.mrb[0].mxu0
        %3909 = vmatprep.mubr.bf16.mxu0 %v3583
        %3910 = vmatmul.mubr.bf16.gmra.mrb[0].mxu0 %v3582
        %v3911 = vpop.f32.mrb[0].mxu0
        %v3912 = vadd.f32 %v3751, %v3911
        %v3913 = vpop.f32.mrb[0].mxu0
        %v3914 = vpop.f32.mrb[0].mxu0
        %v3915 = vadd.f32 %v3754, %v3914
        %v3916 = vpop.f32.mrb[0].mxu0
        %3917 = vmatprep.mubr.bf16.mxu0 %v3587
        %3918 = vmatmul.mubr.bf16.gmra.mrb[0].mxu0 %v3586
        %v3919 = vpop.f32.mrb[0].mxu0
        %v3920 = vadd.f32 %v3759, %v3919
        %v3921 = vpop.f32.mrb[0].mxu0
        %v3922 = vpop.f32.mrb[0].mxu0
        %v3923 = vadd.f32 %v3762, %v3922
        %v3924 = vpop.f32.mrb[0].mxu0
        %3925 = vmatprep.mubr.bf16.mxu0 %v3591
        %3926 = vmatmul.mubr.bf16.gmra.mrb[0].mxu0 %v3590
        %v3927 = vpop.f32.mrb[0].mxu0
        %v3928 = vadd.f32 %v3767, %v3927
        %v3929 = vpop.f32.mrb[0].mxu0
        %v3930 = vpop.f32.mrb[0].mxu0
        %v3931 = vadd.f32 %v3770, %v3930
        %v3932 = vpop.f32.mrb[0].mxu0
        %3933 = vmatprep.mubr.bf16.mxu0 %v3595
        %3934 = vmatmul.mubr.bf16.gmra.mrb[0].mxu0 %v3594
        %v3935 = vpop.f32.mrb[0].mxu0
        %v3936 = vadd.f32 %v3775, %v3935
        %v3937 = vpop.f32.mrb[0].mxu0
        %v3938 = vpop.f32.mrb[0].mxu0
        %v3939 = vadd.f32 %v3778, %v3938
        %v3940 = vpop.f32.mrb[0].mxu0
        %3941 = vmatprep.mubr.bf16.mxu0 %v3599
        %3942 = vmatmul.mubr.bf16.gmra.mrb[0].mxu0 %v3598
        %v3943 = vpop.f32.mrb[0].mxu0
        %v3944 = vadd.f32 %v3783, %v3943
        %v3945 = vpop.f32.mrb[0].mxu0
        %v3946 = vpop.f32.mrb[0].mxu0
        %v3947 = vadd.f32 %v3786, %v3946
        %v3948 = vpop.f32.mrb[0].mxu0
        %3949 = vmatprep.mubr.bf16.mxu0 %v3603
        %3950 = vmatmul.mubr.bf16.gmra.mrb[0].mxu0 %v3602
        %v3951 = vpop.f32.mrb[0].mxu0
        %v3952 = vadd.f32 %v3791, %v3951
        %v3953 = vpop.f32.mrb[0].mxu0
        %v3954 = vpop.f32.mrb[0].mxu0
        %v3955 = vadd.f32 %v3794, %v3954
        %v3956 = vpop.f32.mrb[0].mxu0
        %3957 = vdwg.mxu0
        %v3958 = vadd.f32 %v3508, %v3832
        %v3959 = vadd.f32 %v3509, %v3835
        %v3960 = vadd.f32 %v3510, %v3840
        %v3961 = vadd.f32 %v3511, %v3843
        %v3962 = vadd.f32 %v3512, %v3848
        %v3963 = vadd.f32 %v3513, %v3851
        %v3964 = vadd.f32 %v3514, %v3856
        %v3965 = vadd.f32 %v3515, %v3859
        %v3966 = vadd.f32 %v3516, %v3864
        %v3967 = vadd.f32 %v3517, %v3867
        %v3968 = vadd.f32 %v3518, %v3872
        %v3969 = vadd.f32 %v3519, %v3875
        %v3970 = vadd.f32 %v3520, %v3880
        %v3971 = vadd.f32 %v3521, %v3883
        %v3972 = vadd.f32 %v3522, %v3888
        %v3973 = vadd.f32 %v3523, %v3891
        %v3974 = vadd.f32 %v3524, %v3896
        %v3975 = vadd.f32 %v3525, %v3899
        %v3976 = vadd.f32 %v3526, %v3904
        %v3977 = vadd.f32 %v3527, %v3907
        %v3978 = vadd.f32 %v3528, %v3912
        %v3979 = vadd.f32 %v3529, %v3915
        %v3980 = vadd.f32 %v3530, %v3920
        %v3981 = vadd.f32 %v3531, %v3923
        %v3982 = vadd.f32 %v3532, %v3928
        %v3983 = vadd.f32 %v3533, %v3931
        %v3984 = vadd.f32 %v3534, %v3936
        %v3985 = vadd.f32 %v3535, %v3939
        %v3986 = vadd.f32 %v3536, %v3944
        %v3987 = vadd.f32 %v3537, %v3947
        %v3988 = vadd.f32 %v3538, %v3952
        %v3989 = vadd.f32 %v3539, %v3955
        %3990 = vst [vmem:[#allocation5] sm:$0xff] %v3958
        %3991 = vst [vmem:[#allocation5 + $0x8] sm:$0xff] %v3959
        %3992 = vst [vmem:[#allocation5 + $0x10] sm:$0xff] %v3960
        %3993 = vst [vmem:[#allocation5 + $0x18] sm:$0xff] %v3961
        %3994 = vst [vmem:[#allocation5 + $0x20] sm:$0xff] %v3962
        %3995 = vst [vmem:[#allocation5 + $0x28] sm:$0xff] %v3963
        %3996 = vst [vmem:[#allocation5 + $0x30] sm:$0xff] %v3964
        %3997 = vst [vmem:[#allocation5 + $0x38] sm:$0xff] %v3965
        %3998 = vst [vmem:[#allocation5 + $0x40] sm:$0xff] %v3966
        %3999 = vst [vmem:[#allocation5 + $0x48] sm:$0xff] %v3967
        %4000 = vst [vmem:[#allocation5 + $0x50] sm:$0xff] %v3968
        %4001 = vst [vmem:[#allocation5 + $0x58] sm:$0xff] %v3969
        %4002 = vst [vmem:[#allocation5 + $0x60] sm:$0xff] %v3970
        %4003 = vst [vmem:[#allocation5 + $0x68] sm:$0xff] %v3971
        %4004 = vst [vmem:[#allocation5 + $0x70] sm:$0xff] %v3972
        %4005 = vst [vmem:[#allocation5 + $0x78] sm:$0xff] %v3973
        %4006 = vst [vmem:[#allocation5 + $0x80] sm:$0xff] %v3974
        %4007 = vst [vmem:[#allocation5 + $0x88] sm:$0xff] %v3975
        %4008 = vst [vmem:[#allocation5 + $0x90] sm:$0xff] %v3976
        %4009 = vst [vmem:[#allocation5 + $0x98] sm:$0xff] %v3977
        %4010 = vst [vmem:[#allocation5 + $0xa0] sm:$0xff] %v3978
        %4011 = vst [vmem:[#allocation5 + $0xa8] sm:$0xff] %v3979
        %4012 = vst [vmem:[#allocation5 + $0xb0] sm:$0xff] %v3980
        %4013 = vst [vmem:[#allocation5 + $0xb8] sm:$0xff] %v3981
        %4014 = vst [vmem:[#allocation5 + $0xc0] sm:$0xff] %v3982
        %4015 = vst [vmem:[#allocation5 + $0xc8] sm:$0xff] %v3983
        %4016 = vst [vmem:[#allocation5 + $0xd0] sm:$0xff] %v3984
        %4017 = vst [vmem:[#allocation5 + $0xd8] sm:$0xff] %v3985
        %4018 = vst [vmem:[#allocation5 + $0xe0] sm:$0xff] %v3986
        %4019 = vst [vmem:[#allocation5 + $0xe8] sm:$0xff] %v3987
        %4020 = vst [vmem:[#allocation5 + $0xf0] sm:$0xff] %v3988
        %4021 = vst [vmem:[#allocation5 + $0xf8] sm:$0xff] %v3989
        %4022 = vst.msk [vmem:[#allocation3] sm:$0xff] %vm3283, %v2355
        %4023 = vst.msk [vmem:[#allocation3 + $0x8] sm:$0xff] %vm3283, %v2356
        %4024 = vst.msk [vmem:[#allocation3 + $0x10] sm:$0xff] %vm3283, %v2357
        %4025 = vst.msk [vmem:[#allocation3 + $0x18] sm:$0xff] %vm3283, %v2358
        %4026 = vst.msk [vmem:[#allocation3 + $0x20] sm:$0xff] %vm3283, %v2359
        %4027 = vst.msk [vmem:[#allocation3 + $0x28] sm:$0xff] %vm3283, %v2360
        %4028 = vst.msk [vmem:[#allocation3 + $0x30] sm:$0xff] %vm3283, %v2361
        %4029 = vst.msk [vmem:[#allocation3 + $0x38] sm:$0xff] %vm3283, %v2362
        %4030 = vst.msk [vmem:[#allocation3 + $0x40] sm:$0xff] %vm3283, %v2363
        %4031 = vst.msk [vmem:[#allocation3 + $0x48] sm:$0xff] %vm3283, %v2364
        %4032 = vst.msk [vmem:[#allocation3 + $0x50] sm:$0xff] %vm3283, %v2365
        %4033 = vst.msk [vmem:[#allocation3 + $0x58] sm:$0xff] %vm3283, %v2366
        %4034 = vst.msk [vmem:[#allocation3 + $0x60] sm:$0xff] %vm3283, %v2367
        %4035 = vst.msk [vmem:[#allocation3 + $0x68] sm:$0xff] %vm3283, %v2368
        %4036 = vst.msk [vmem:[#allocation3 + $0x70] sm:$0xff] %vm3283, %v2369
        %4037 = vst.msk [vmem:[#allocation3 + $0x78] sm:$0xff] %vm3283, %v2370
        %4038 = vst.msk [vmem:[#allocation3 + $0x80] sm:$0xff] %vm3283, %v2371
        %4039 = vst.msk [vmem:[#allocation3 + $0x88] sm:$0xff] %vm3283, %v2372
        %4040 = vst.msk [vmem:[#allocation3 + $0x90] sm:$0xff] %vm3283, %v2373
        %4041 = vst.msk [vmem:[#allocation3 + $0x98] sm:$0xff] %vm3283, %v2374
        %4042 = vst.msk [vmem:[#allocation3 + $0xa0] sm:$0xff] %vm3283, %v2375
        %4043 = vst.msk [vmem:[#allocation3 + $0xa8] sm:$0xff] %vm3283, %v2376
        %4044 = vst.msk [vmem:[#allocation3 + $0xb0] sm:$0xff] %vm3283, %v2377
        %4045 = vst.msk [vmem:[#allocation3 + $0xb8] sm:$0xff] %vm3283, %v2378
        %4046 = vst.msk [vmem:[#allocation3 + $0xc0] sm:$0xff] %vm3283, %v2379
        %4047 = vst.msk [vmem:[#allocation3 + $0xc8] sm:$0xff] %vm3283, %v2380
        %4048 = vst.msk [vmem:[#allocation3 + $0xd0] sm:$0xff] %vm3283, %v2381
        %4049 = vst.msk [vmem:[#allocation3 + $0xd8] sm:$0xff] %vm3283, %v2382
        %4050 = vst.msk [vmem:[#allocation3 + $0xe0] sm:$0xff] %vm3283, %v2383
        %4051 = vst.msk [vmem:[#allocation3 + $0xe8] sm:$0xff] %vm3283, %v2384
        %4052 = vst.msk [vmem:[#allocation3 + $0xf0] sm:$0xff] %vm3283, %v2385
        %4053 = vst.msk [vmem:[#allocation3 + $0xf8] sm:$0xff] %vm3283, %v2386
        %p4054 = scmp.eq.s32.totalorder %s38, 1
        // Predicated region
        $region81: #{tpu_custom_call.1} parent=55 // pred_check
          %p4055 = pneg %p4054
        $region82: #{tpu_custom_call.1} parent=55 // pred_check_branch
          %4057 = sbr.rel (%p4055) target = $region84
        $region83: #{tpu_custom_call.1} parent=55 // pred_region
          %v4058 = vld [vmem:[#allocation5] sm:$0xff]
          %v4059 = vld [vmem:[#allocation5 + $0x8] sm:$0xff]
          %v4060 = vld [vmem:[#allocation5 + $0x10] sm:$0xff]
          %v4061 = vld [vmem:[#allocation5 + $0x18] sm:$0xff]
          %v4062 = vld [vmem:[#allocation5 + $0x20] sm:$0xff]
          %v4063 = vld [vmem:[#allocation5 + $0x28] sm:$0xff]
          %v4064 = vld [vmem:[#allocation5 + $0x30] sm:$0xff]
          %v4065 = vld [vmem:[#allocation5 + $0x38] sm:$0xff]
          %v4066 = vld [vmem:[#allocation5 + $0x40] sm:$0xff]
          %v4067 = vld [vmem:[#allocation5 + $0x48] sm:$0xff]
          %v4068 = vld [vmem:[#allocation5 + $0x50] sm:$0xff]
          %v4069 = vld [vmem:[#allocation5 + $0x58] sm:$0xff]
          %v4070 = vld [vmem:[#allocation5 + $0x60] sm:$0xff]
          %v4071 = vld [vmem:[#allocation5 + $0x68] sm:$0xff]
          %v4072 = vld [vmem:[#allocation5 + $0x70] sm:$0xff]
          %v4073 = vld [vmem:[#allocation5 + $0x78] sm:$0xff]
          %v4074 = vld [vmem:[#allocation5 + $0x80] sm:$0xff]
          %v4075 = vld [vmem:[#allocation5 + $0x88] sm:$0xff]
          %v4076 = vld [vmem:[#allocation5 + $0x90] sm:$0xff]
          %v4077 = vld [vmem:[#allocation5 + $0x98] sm:$0xff]
          %v4078 = vld [vmem:[#allocation5 + $0xa0] sm:$0xff]
          %v4079 = vld [vmem:[#allocation5 + $0xa8] sm:$0xff]
          %v4080 = vld [vmem:[#allocation5 + $0xb0] sm:$0xff]
          %v4081 = vld [vmem:[#allocation5 + $0xb8] sm:$0xff]
          %v4082 = vld [vmem:[#allocation5 + $0xc0] sm:$0xff]
          %v4083 = vld [vmem:[#allocation5 + $0xc8] sm:$0xff]
          %v4084 = vld [vmem:[#allocation5 + $0xd0] sm:$0xff]
          %v4085 = vld [vmem:[#allocation5 + $0xd8] sm:$0xff]
          %v4086 = vld [vmem:[#allocation5 + $0xe0] sm:$0xff]
          %v4087 = vld [vmem:[#allocation5 + $0xe8] sm:$0xff]
          %v4088 = vld [vmem:[#allocation5 + $0xf0] sm:$0xff]
          %v4089 = vld [vmem:[#allocation5 + $0xf8] sm:$0xff]
          %v4090 = vld [vmem:[#allocation4] sm:$0xff]
          %v4091 = vld [vmem:[#allocation4 + $0x8] sm:$0xff]
          %v4092 = vld [vmem:[#allocation4 + $0x10] sm:$0xff]
          %v4093 = vld [vmem:[#allocation4 + $0x18] sm:$0xff]
          %v4094 = vld [vmem:[#allocation4 + $0x20] sm:$0xff]
          %v4095 = vld [vmem:[#allocation4 + $0x28] sm:$0xff]
          %v4096 = vld [vmem:[#allocation4 + $0x30] sm:$0xff]
          %v4097 = vld [vmem:[#allocation4 + $0x38] sm:$0xff]
          %v4098 = vld [vmem:[#allocation4 + $0x40] sm:$0xff]
          %v4099 = vld [vmem:[#allocation4 + $0x48] sm:$0xff]
          %v4100 = vld [vmem:[#allocation4 + $0x50] sm:$0xff]
          %v4101 = vld [vmem:[#allocation4 + $0x58] sm:$0xff]
          %v4102 = vld [vmem:[#allocation4 + $0x60] sm:$0xff]
          %v4103 = vld [vmem:[#allocation4 + $0x68] sm:$0xff]
          %v4104 = vld [vmem:[#allocation4 + $0x70] sm:$0xff]
          %v4105 = vld [vmem:[#allocation4 + $0x78] sm:$0xff]
          %v4106 = vld [vmem:[#allocation4 + $0x80] sm:$0xff]
          %v4107 = vld [vmem:[#allocation4 + $0x88] sm:$0xff]
          %v4108 = vld [vmem:[#allocation4 + $0x90] sm:$0xff]
          %v4109 = vld [vmem:[#allocation4 + $0x98] sm:$0xff]
          %v4110 = vld [vmem:[#allocation4 + $0xa0] sm:$0xff]
          %v4111 = vld [vmem:[#allocation4 + $0xa8] sm:$0xff]
          %v4112 = vld [vmem:[#allocation4 + $0xb0] sm:$0xff]
          %v4113 = vld [vmem:[#allocation4 + $0xb8] sm:$0xff]
          %v4114 = vld [vmem:[#allocation4 + $0xc0] sm:$0xff]
          %v4115 = vld [vmem:[#allocation4 + $0xc8] sm:$0xff]
          %v4116 = vld [vmem:[#allocation4 + $0xd0] sm:$0xff]
          %v4117 = vld [vmem:[#allocation4 + $0xd8] sm:$0xff]
          %v4118 = vld [vmem:[#allocation4 + $0xe0] sm:$0xff]
          %v4119 = vld [vmem:[#allocation4 + $0xe8] sm:$0xff]
          %v4120 = vld [vmem:[#allocation4 + $0xf0] sm:$0xff]
          %v4121 = vld [vmem:[#allocation4 + $0xf8] sm:$0xff]
          %v4122 = vrcp.pop %v4090
          %v4123 = vrcp.pop %v4091
          %v4124 = vrcp.pop %v4092
          %v4125 = vrcp.pop %v4093
          %v4126 = vrcp.pop %v4094
          %v4127 = vrcp.pop %v4095
          %v4128 = vrcp.pop %v4096
          %v4129 = vrcp.pop %v4097
          %v4130 = vrcp.pop %v4098
          %v4131 = vrcp.pop %v4099
          %v4132 = vrcp.pop %v4100
          %v4133 = vrcp.pop %v4101
          %v4134 = vrcp.pop %v4102
          %v4135 = vrcp.pop %v4103
          %v4136 = vrcp.pop %v4104
          %v4137 = vrcp.pop %v4105
          %v4138 = vrcp.pop %v4106
          %v4139 = vrcp.pop %v4107
          %v4140 = vrcp.pop %v4108
          %v4141 = vrcp.pop %v4109
          %v4142 = vrcp.pop %v4110
          %v4143 = vrcp.pop %v4111
          %v4144 = vrcp.pop %v4112
          %v4145 = vrcp.pop %v4113
          %v4146 = vrcp.pop %v4114
          %v4147 = vrcp.pop %v4115
          %v4148 = vrcp.pop %v4116
          %v4149 = vrcp.pop %v4117
          %v4150 = vrcp.pop %v4118
          %v4151 = vrcp.pop %v4119
          %v4152 = vrcp.pop %v4120
          %v4153 = vrcp.pop %v4121
          %4155 = vset.pattern.permute.xlu0 0
          %4156 = vperm.xlu0 %4155, %v4122
          %v4157 = vpop.permute.xlu0 %4156
          %4160 = vset.pattern.permute.xlu0 0
          %4161 = vperm.xlu0 %4160, %v4123
          %v4162 = vpop.permute.xlu0 %4161
          %4165 = vset.pattern.permute.xlu0 0
          %4166 = vperm.xlu0 %4165, %v4124
          %v4167 = vpop.permute.xlu0 %4166
          %4170 = vset.pattern.permute.xlu0 0
          %4171 = vperm.xlu0 %4170, %v4125
          %v4172 = vpop.permute.xlu0 %4171
          %4175 = vset.pattern.permute.xlu0 0
          %4176 = vperm.xlu0 %4175, %v4126
          %v4177 = vpop.permute.xlu0 %4176
          %4180 = vset.pattern.permute.xlu0 0
          %4181 = vperm.xlu0 %4180, %v4127
          %v4182 = vpop.permute.xlu0 %4181
          %4185 = vset.pattern.permute.xlu0 0
          %4186 = vperm.xlu0 %4185, %v4128
          %v4187 = vpop.permute.xlu0 %4186
          %4190 = vset.pattern.permute.xlu0 0
          %4191 = vperm.xlu0 %4190, %v4129
          %v4192 = vpop.permute.xlu0 %4191
          %4195 = vset.pattern.permute.xlu0 0
          %4196 = vperm.xlu0 %4195, %v4130
          %v4197 = vpop.permute.xlu0 %4196
          %4200 = vset.pattern.permute.xlu0 0
          %4201 = vperm.xlu0 %4200, %v4131
          %v4202 = vpop.permute.xlu0 %4201
          %4205 = vset.pattern.permute.xlu0 0
          %4206 = vperm.xlu0 %4205, %v4132
          %v4207 = vpop.permute.xlu0 %4206
          %4210 = vset.pattern.permute.xlu0 0
          %4211 = vperm.xlu0 %4210, %v4133
          %v4212 = vpop.permute.xlu0 %4211
          %4215 = vset.pattern.permute.xlu0 0
          %4216 = vperm.xlu0 %4215, %v4134
          %v4217 = vpop.permute.xlu0 %4216
          %4220 = vset.pattern.permute.xlu0 0
          %4221 = vperm.xlu0 %4220, %v4135
          %v4222 = vpop.permute.xlu0 %4221
          %4225 = vset.pattern.permute.xlu0 0
          %4226 = vperm.xlu0 %4225, %v4136
          %v4227 = vpop.permute.xlu0 %4226
          %4230 = vset.pattern.permute.xlu0 0
          %4231 = vperm.xlu0 %4230, %v4137
          %v4232 = vpop.permute.xlu0 %4231
          %4235 = vset.pattern.permute.xlu0 0
          %4236 = vperm.xlu0 %4235, %v4138
          %v4237 = vpop.permute.xlu0 %4236
          %4240 = vset.pattern.permute.xlu0 0
          %4241 = vperm.xlu0 %4240, %v4139
          %v4242 = vpop.permute.xlu0 %4241
          %4245 = vset.pattern.permute.xlu0 0
          %4246 = vperm.xlu0 %4245, %v4140
          %v4247 = vpop.permute.xlu0 %4246
          %4250 = vset.pattern.permute.xlu0 0
          %4251 = vperm.xlu0 %4250, %v4141
          %v4252 = vpop.permute.xlu0 %4251
          %4255 = vset.pattern.permute.xlu0 0
          %4256 = vperm.xlu0 %4255, %v4142
          %v4257 = vpop.permute.xlu0 %4256
          %4260 = vset.pattern.permute.xlu0 0
          %4261 = vperm.xlu0 %4260, %v4143
          %v4262 = vpop.permute.xlu0 %4261
          %4265 = vset.pattern.permute.xlu0 0
          %4266 = vperm.xlu0 %4265, %v4144
          %v4267 = vpop.permute.xlu0 %4266
          %4270 = vset.pattern.permute.xlu0 0
          %4271 = vperm.xlu0 %4270, %v4145
          %v4272 = vpop.permute.xlu0 %4271
          %4275 = vset.pattern.permute.xlu0 0
          %4276 = vperm.xlu0 %4275, %v4146
          %v4277 = vpop.permute.xlu0 %4276
          %4280 = vset.pattern.permute.xlu0 0
          %4281 = vperm.xlu0 %4280, %v4147
          %v4282 = vpop.permute.xlu0 %4281
          %4285 = vset.pattern.permute.xlu0 0
          %4286 = vperm.xlu0 %4285, %v4148
          %v4287 = vpop.permute.xlu0 %4286
          %4290 = vset.pattern.permute.xlu0 0
          %4291 = vperm.xlu0 %4290, %v4149
          %v4292 = vpop.permute.xlu0 %4291
          %4295 = vset.pattern.permute.xlu0 0
          %4296 = vperm.xlu0 %4295, %v4150
          %v4297 = vpop.permute.xlu0 %4296
          %4300 = vset.pattern.permute.xlu0 0
          %4301 = vperm.xlu0 %4300, %v4151
          %v4302 = vpop.permute.xlu0 %4301
          %4305 = vset.pattern.permute.xlu0 0
          %4306 = vperm.xlu0 %4305, %v4152
          %v4307 = vpop.permute.xlu0 %4306
          %4310 = vset.pattern.permute.xlu0 0
          %4311 = vperm.xlu0 %4310, %v4153
          %v4312 = vpop.permute.xlu0 %4311
          %v4314 = vmul.f32 %v4058, %v4157
          %v4315 = vmul.f32 %v4059, %v4162
          %v4316 = vmul.f32 %v4060, %v4167
          %v4317 = vmul.f32 %v4061, %v4172
          %v4318 = vmul.f32 %v4062, %v4177
          %v4319 = vmul.f32 %v4063, %v4182
          %v4320 = vmul.f32 %v4064, %v4187
          %v4321 = vmul.f32 %v4065, %v4192
          %v4322 = vmul.f32 %v4066, %v4197
          %v4323 = vmul.f32 %v4067, %v4202
          %v4324 = vmul.f32 %v4068, %v4207
          %v4325 = vmul.f32 %v4069, %v4212
          %v4326 = vmul.f32 %v4070, %v4217
          %v4327 = vmul.f32 %v4071, %v4222
          %v4328 = vmul.f32 %v4072, %v4227
          %v4329 = vmul.f32 %v4073, %v4232
          %v4330 = vmul.f32 %v4074, %v4237
          %v4331 = vmul.f32 %v4075, %v4242
          %v4332 = vmul.f32 %v4076, %v4247
          %v4333 = vmul.f32 %v4077, %v4252
          %v4334 = vmul.f32 %v4078, %v4257
          %v4335 = vmul.f32 %v4079, %v4262
          %v4336 = vmul.f32 %v4080, %v4267
          %v4337 = vmul.f32 %v4081, %v4272
          %v4338 = vmul.f32 %v4082, %v4277
          %v4339 = vmul.f32 %v4083, %v4282
          %v4340 = vmul.f32 %v4084, %v4287
          %v4341 = vmul.f32 %v4085, %v4292
          %v4342 = vmul.f32 %v4086, %v4297
          %v4343 = vmul.f32 %v4087, %v4302
          %v4344 = vmul.f32 %v4088, %v4307
          %v4345 = vmul.f32 %v4089, %v4312
          %s4346 = sld [smem:[#allocation6]]
          %v4347 = vstv %s4346
          %v4348 = vmul.f32 %v4347, %v4314
          %v4349 = vmul.f32 %v4347, %v4315
          %v4350 = vmul.f32 %v4347, %v4316
          %v4351 = vmul.f32 %v4347, %v4317
          %v4352 = vmul.f32 %v4347, %v4318
          %v4353 = vmul.f32 %v4347, %v4319
          %v4354 = vmul.f32 %v4347, %v4320
          %v4355 = vmul.f32 %v4347, %v4321
          %v4356 = vmul.f32 %v4347, %v4322
          %v4357 = vmul.f32 %v4347, %v4323
          %v4358 = vmul.f32 %v4347, %v4324
          %v4359 = vmul.f32 %v4347, %v4325
          %v4360 = vmul.f32 %v4347, %v4326
          %v4361 = vmul.f32 %v4347, %v4327
          %v4362 = vmul.f32 %v4347, %v4328
          %v4363 = vmul.f32 %v4347, %v4329
          %v4364 = vmul.f32 %v4347, %v4330
          %v4365 = vmul.f32 %v4347, %v4331
          %v4366 = vmul.f32 %v4347, %v4332
          %v4367 = vmul.f32 %v4347, %v4333
          %v4368 = vmul.f32 %v4347, %v4334
          %v4369 = vmul.f32 %v4347, %v4335
          %v4370 = vmul.f32 %v4347, %v4336
          %v4371 = vmul.f32 %v4347, %v4337
          %v4372 = vmul.f32 %v4347, %v4338
          %v4373 = vmul.f32 %v4347, %v4339
          %v4374 = vmul.f32 %v4347, %v4340
          %v4375 = vmul.f32 %v4347, %v4341
          %v4376 = vmul.f32 %v4347, %v4342
          %v4377 = vmul.f32 %v4347, %v4343
          %v4378 = vmul.f32 %v4347, %v4344
          %v4379 = vmul.f32 %v4347, %v4345
          %v4380 = vld [vmem:[%s403] sm:$0xff]
          %v4381 = vld [vmem:[%s403 + $0x8] sm:$0xff]
          %v4382 = vld [vmem:[%s403 + $0x10] sm:$0xff]
          %v4383 = vld [vmem:[%s403 + $0x18] sm:$0xff]
          %v4384 = vld [vmem:[%s403 + $0x20] sm:$0xff]
          %v4385 = vld [vmem:[%s403 + $0x28] sm:$0xff]
          %v4386 = vld [vmem:[%s403 + $0x30] sm:$0xff]
          %v4387 = vld [vmem:[%s403 + $0x38] sm:$0xff]
          %v4388 = vld [vmem:[%s403 + $0x40] sm:$0xff]
          %v4389 = vld [vmem:[%s403 + $0x48] sm:$0xff]
          %v4390 = vld [vmem:[%s403 + $0x50] sm:$0xff]
          %v4391 = vld [vmem:[%s403 + $0x58] sm:$0xff]
          %v4392 = vld [vmem:[%s403 + $0x60] sm:$0xff]
          %v4393 = vld [vmem:[%s403 + $0x68] sm:$0xff]
          %v4394 = vld [vmem:[%s403 + $0x70] sm:$0xff]
          %v4395 = vld [vmem:[%s403 + $0x78] sm:$0xff]
          %v4396 = vld [vmem:[%s403 + $0x80] sm:$0xff]
          %v4397 = vld [vmem:[%s403 + $0x88] sm:$0xff]
          %v4398 = vld [vmem:[%s403 + $0x90] sm:$0xff]
          %v4399 = vld [vmem:[%s403 + $0x98] sm:$0xff]
          %v4400 = vld [vmem:[%s403 + $0xa0] sm:$0xff]
          %v4401 = vld [vmem:[%s403 + $0xa8] sm:$0xff]
          %v4402 = vld [vmem:[%s403 + $0xb0] sm:$0xff]
          %v4403 = vld [vmem:[%s403 + $0xb8] sm:$0xff]
          %v4404 = vld [vmem:[%s403 + $0xc0] sm:$0xff]
          %v4405 = vld [vmem:[%s403 + $0xc8] sm:$0xff]
          %v4406 = vld [vmem:[%s403 + $0xd0] sm:$0xff]
          %v4407 = vld [vmem:[%s403 + $0xd8] sm:$0xff]
          %v4408 = vld [vmem:[%s403 + $0xe0] sm:$0xff]
          %v4409 = vld [vmem:[%s403 + $0xe8] sm:$0xff]
          %v4410 = vld [vmem:[%s403 + $0xf0] sm:$0xff]
          %v4411 = vld [vmem:[%s403 + $0xf8] sm:$0xff]
          %v4412 = vadd.f32 %v4348, %v4380
          %v4413 = vadd.f32 %v4349, %v4381
          %v4414 = vadd.f32 %v4350, %v4382
          %v4415 = vadd.f32 %v4351, %v4383
          %v4416 = vadd.f32 %v4352, %v4384
          %v4417 = vadd.f32 %v4353, %v4385
          %v4418 = vadd.f32 %v4354, %v4386
          %v4419 = vadd.f32 %v4355, %v4387
          %v4420 = vadd.f32 %v4356, %v4388
          %v4421 = vadd.f32 %v4357, %v4389
          %v4422 = vadd.f32 %v4358, %v4390
          %v4423 = vadd.f32 %v4359, %v4391
          %v4424 = vadd.f32 %v4360, %v4392
          %v4425 = vadd.f32 %v4361, %v4393
          %v4426 = vadd.f32 %v4362, %v4394
          %v4427 = vadd.f32 %v4363, %v4395
          %v4428 = vadd.f32 %v4364, %v4396
          %v4429 = vadd.f32 %v4365, %v4397
          %v4430 = vadd.f32 %v4366, %v4398
          %v4431 = vadd.f32 %v4367, %v4399
          %v4432 = vadd.f32 %v4368, %v4400
          %v4433 = vadd.f32 %v4369, %v4401
          %v4434 = vadd.f32 %v4370, %v4402
          %v4435 = vadd.f32 %v4371, %v4403
          %v4436 = vadd.f32 %v4372, %v4404
          %v4437 = vadd.f32 %v4373, %v4405
          %v4438 = vadd.f32 %v4374, %v4406
          %v4439 = vadd.f32 %v4375, %v4407
          %v4440 = vadd.f32 %v4376, %v4408
          %v4441 = vadd.f32 %v4377, %v4409
          %v4442 = vadd.f32 %v4378, %v4410
          %v4443 = vadd.f32 %v4379, %v4411
          %4444 = vst [vmem:[%s463] sm:$0xff] %v4412
          %4445 = vst [vmem:[%s463 + $0x8] sm:$0xff] %v4413
          %4446 = vst [vmem:[%s463 + $0x10] sm:$0xff] %v4414
          %4447 = vst [vmem:[%s463 + $0x18] sm:$0xff] %v4415
          %4448 = vst [vmem:[%s463 + $0x20] sm:$0xff] %v4416
          %4449 = vst [vmem:[%s463 + $0x28] sm:$0xff] %v4417
          %4450 = vst [vmem:[%s463 + $0x30] sm:$0xff] %v4418
          %4451 = vst [vmem:[%s463 + $0x38] sm:$0xff] %v4419
          %4452 = vst [vmem:[%s463 + $0x40] sm:$0xff] %v4420
          %4453 = vst [vmem:[%s463 + $0x48] sm:$0xff] %v4421
          %4454 = vst [vmem:[%s463 + $0x50] sm:$0xff] %v4422
          %4455 = vst [vmem:[%s463 + $0x58] sm:$0xff] %v4423
          %4456 = vst [vmem:[%s463 + $0x60] sm:$0xff] %v4424
          %4457 = vst [vmem:[%s463 + $0x68] sm:$0xff] %v4425
          %4458 = vst [vmem:[%s463 + $0x70] sm:$0xff] %v4426
          %4459 = vst [vmem:[%s463 + $0x78] sm:$0xff] %v4427
          %4460 = vst [vmem:[%s463 + $0x80] sm:$0xff] %v4428
          %4461 = vst [vmem:[%s463 + $0x88] sm:$0xff] %v4429
          %4462 = vst [vmem:[%s463 + $0x90] sm:$0xff] %v4430
          %4463 = vst [vmem:[%s463 + $0x98] sm:$0xff] %v4431
          %4464 = vst [vmem:[%s463 + $0xa0] sm:$0xff] %v4432
          %4465 = vst [vmem:[%s463 + $0xa8] sm:$0xff] %v4433
          %4466 = vst [vmem:[%s463 + $0xb0] sm:$0xff] %v4434
          %4467 = vst [vmem:[%s463 + $0xb8] sm:$0xff] %v4435
          %4468 = vst [vmem:[%s463 + $0xc0] sm:$0xff] %v4436
          %4469 = vst [vmem:[%s463 + $0xc8] sm:$0xff] %v4437
          %4470 = vst [vmem:[%s463 + $0xd0] sm:$0xff] %v4438
          %4471 = vst [vmem:[%s463 + $0xd8] sm:$0xff] %v4439
          %4472 = vst [vmem:[%s463 + $0xe0] sm:$0xff] %v4440
          %4473 = vst [vmem:[%s463 + $0xe8] sm:$0xff] %v4441
          %4474 = vst [vmem:[%s463 + $0xf0] sm:$0xff] %v4442
          %4475 = vst [vmem:[%s463 + $0xf8] sm:$0xff] %v4443
        $region84: #{tpu_custom_call.1} parent=55 // pred_fallthru
          _
        %s4476 = sand.u32 %s263, 1
        %s4477 = scalar_lea.sflag [#allocation9], %s4476
        %s4478 = sand.u32 %s263, 1
        %s4479 = smul.addr %s4478, 256
        %s4480 = scalar_lea.vmem [#allocation16], %s4479
        // Predicated region
        $region85: #{tpu_custom_call.1} parent=55 // pred_check
          %p4481 = pneg %p273
        $region86: #{tpu_custom_call.1} parent=55 // pred_check_branch
          %4483 = sbr.rel (%p4481) target = $region88
        $region87: #{tpu_custom_call.1} parent=55 // pred_region
          %s4484 = smul.u32 32, %s37
          %s4486 = ssub.s32 4096, 4096
          %4487 = vsyncadd %s4477, %s4486
          %s4488 = smul.addr %s36, 128
          %s4489 = sadd.s32 %s4484, %s4488
          %s4490 = smul.addr %s4489, 128
          %s4491 = scalar_lea.hbm %s9, %s4490
          %s4492 = sshll.u32 %s4480, 4
          %s4493 = int_to_ptr.vmem [resolvable:$true] %s4492
          %4498 = dma.vmem_to_hbm [thread:$0]  %s4493, 4096, %s4491, %s4477, 128, 128, 8
        $region88: #{tpu_custom_call.1} parent=55 // pred_fallthru
          _
      $region56: #{tpu_custom_call.1} parent=5 // pred_fallthru
        _
      %p4499 = scmp.le.s32.totalorder 2, %s26
      // Predicated region
      $region89: #{tpu_custom_call.1} parent=5 // pred_check
        %p4500 = pneg %p4499
      $region90: #{tpu_custom_call.1} parent=5 // pred_check_branch
        %4502 = sbr.rel (%p4500) target = $region92
      $region91: #{tpu_custom_call.1} parent=5 // pred_region
        %s4503 = ssub.s32 %s26, 2
        // Predicated region
        $region93: #{tpu_custom_call.1} parent=91 // pred_check
          %p4504 = pneg %p279
        $region94: #{tpu_custom_call.1} parent=91 // pred_check_branch
          %4506 = sbr.rel (%p4504) target = $region96
        $region95: #{tpu_custom_call.1} parent=91 // pred_region
          %s4507 = sand.u32 %s264, 1
          %s4508 = scalar_lea.sflag [#allocation9], %s4507
          %s4509 = sand.u32 %s264, 1
          %s4510 = smul.addr %s4509, 256
          %s4511 = scalar_lea.vmem [#allocation16], %s4510
          %4512 = dma.done %s4508, 4096
        $region96: #{tpu_custom_call.1} parent=91 // pred_fallthru
          _
      $region92: #{tpu_custom_call.1} parent=5 // pred_fallthru
        _
    $region6: #{tpu_custom_call.1} parent=1 // loop_footer
      %s30 = sadd.s32 1, %s26
    $region7: #{tpu_custom_call.1} parent=1 // loop_footer_branch
      %25 = sbr.rel target = $region3
    $region8: #{tpu_custom_call.1} parent=1 // loop_exit
      _
    %4513 = vsyncpa [#allocation8], 1
    %s4514 = scalar_lea.sflag [#allocation8], 1
    %4515 = vsyncpa %s4514, 1
    %4516 = vsyncpa [#allocation11], 1
    %s4517 = scalar_lea.sflag [#allocation11], 1
    %4518 = vsyncpa %s4517, 1
    %4519 = vsyncpa [#allocation14], 1
    %4520 = vsyncpa [#allocation9], 1
    %s4521 = scalar_lea.sflag [#allocation9], 1
    %4522 = vsyncpa %s4521, 1

</llo_original>
